<compile_context>
chip_gen: v7x
topology: tpu7x:2x2x1
jax: 0.10.0
libtpu: 0.0.40
codegen_flags: <defaults>
</compile_context>

<pallas_src>
import math
import functools

import jax
import jax.numpy as jnp
from jax.experimental import pallas as pl
from jax.experimental.pallas import tpu as pltpu


# ----------------------------- tiling configuration -----------------------------

VMEM_LIMIT = 64 * 1024 * 1024   # explicit scoped-VMEM cap (>= default 16/32 MiB)

# Preferred tiles: 256-aligned feeds v6e/v7x's 256-wide MXU; falls back to the full
# dimension when the problem dim is smaller or not divisible (as in the tiny test).
TM = 256      # row tiles over B*S
TN = 256      # output-column tiles for projections
TK = 256      # contraction tiles
TQ = 128      # attention query tile
TKV = 128     # attention key/value tile
TF = 512      # gated-FF hidden (d_ff) tile -- kept <= 1024 for v7x's 64 MiB VMEM


def _tile(dim, preferred):
    if dim >= preferred and dim % preferred == 0:
        return preferred
    return dim


def _cparams(sem):
    return pltpu.CompilerParams(dimension_semantics=sem,
                                vmem_limit_bytes=VMEM_LIMIT)


# ----------------------------- kernel 1: RMSNorm + fused QKV projection ------------

def _ln_qkv_kernel(x_ref, lnw_ref, w_ref, o_ref, normed_ref, *, eps, compute_dtype):
    # T5LayerNorm (RMS, fp32, no bias) fused into the q/k/v projection matmul.
    # The normed row tile is cached in VMEM and reused for every (s, j) output tile.
    @pl.when((pl.program_id(1) == 0) & (pl.program_id(2) == 0))
    def _():
        x = x_ref[...].astype(jnp.float32)
        var = jnp.mean(x * x, axis=-1, keepdims=True)
        normed_ref[...] = ((x * jax.lax.rsqrt(var + eps)) *
                           lnw_ref[...].astype(jnp.float32)).astype(compute_dtype)

    o_ref[0] = jnp.dot(normed_ref[...], w_ref[0],
                       preferred_element_type=jnp.float32).astype(o_ref.dtype)


def ln_qkv_proj(x, ln_w, w_qkv, eps, compute_dtype):
    # x: (M, D) f32 ; ln_w: (D,) f32 ; w_qkv: (3, D, inner)  ->  (3, M, inner)
    M, D = x.shape
    _, _, inner = w_qkv.shape
    tm = _tile(M, TM)
    tn = _tile(inner, TN)
    grid = (M // tm, 3, inner // tn)
    return pl.pallas_call(
        functools.partial(_ln_qkv_kernel, eps=eps, compute_dtype=compute_dtype),
        out_shape=jax.ShapeDtypeStruct((3, M, inner), compute_dtype),
        grid=grid,
        in_specs=[pl.BlockSpec((tm, D), lambda i, s, j: (i, 0)),
                  pl.BlockSpec((1, D), lambda i, s, j: (0, 0)),
                  pl.BlockSpec((1, D, tn), lambda i, s, j: (s, 0, j))],
        out_specs=pl.BlockSpec((1, tm, tn), lambda i, s, j: (s, i, j)),
        scratch_shapes=[pltpu.VMEM((tm, D), compute_dtype)],
        compiler_params=_cparams(("parallel", "arbitrary", "arbitrary")),
    )(x, ln_w.reshape(1, D), w_qkv)


# ----------------------------- kernel 2: flash-style T5 attention ------------------

def _attn_kernel(q_ref, k_ref, v_ref, bias_ref, mask_ref, o_ref,
                 m_ref, l_ref, acc_ref, *, num_heads, d_kv):
    ki = pl.program_id(2)

    @pl.when(ki == 0)
    def _():
        m_ref[...] = jnp.full_like(m_ref, -jnp.inf)
        l_ref[...] = jnp.zeros_like(l_ref)
        acc_ref[...] = jnp.zeros_like(acc_ref)

    q = q_ref[0, 0]                          # (tq, inner) compute dtype
    k = k_ref[0, 0]                          # (tk, inner)
    v = v_ref[0, 0]                          # (tk, inner)
    mask = mask_ref[0].astype(jnp.float32)   # (1, tk) additive mask

    for h in range(num_heads):               # static unrolled head loop
        sl = slice(h * d_kv, (h + 1) * d_kv)
        qh, kh, vh = q[:, sl], k[:, sl], v[:, sl]
        # T5 attention has NO 1/sqrt(d_kv) scaling; bias + mask are additive.
        s = jax.lax.dot_general(qh, kh, (((1,), (1,)), ((), ())),
                                preferred_element_type=jnp.float32)
        s = s + bias_ref[0, h].astype(jnp.float32) + mask
        # online softmax (fp32)
        m_prev = m_ref[h]
        m_new = jnp.maximum(m_prev, jnp.max(s, axis=-1, keepdims=True))
        alpha = jnp.exp(m_prev - m_new)
        p = jnp.exp(s - m_new)
        l_ref[h] = alpha * l_ref[h] + jnp.sum(p, axis=-1, keepdims=True)
        acc_ref[h] = alpha * acc_ref[h] + jnp.dot(
            p.astype(vh.dtype), vh, preferred_element_type=jnp.float32)
        m_ref[h] = m_new

    @pl.when(ki == pl.num_programs(2) - 1)
    def _():
        outs = [acc_ref[h] * pl.reciprocal(l_ref[h], approx=True)
                for h in range(num_heads)]
        # single lane-dense (tq, inner) store
        o_ref[0] = jnp.concatenate(outs, axis=-1).astype(o_ref.dtype)


def attention(qkv, bias, mask, num_heads, d_kv, out_dtype):
    # qkv: (3, B, S, inner) ; bias: (1, H, S, S) f32 ; mask: (B, 1, S) f32
    _, B, S, inner = qkv.shape
    tq = _tile(S, TQ)
    tk = _tile(S, TKV)
    grid = (B, S // tq, S // tk)
    kernel = functools.partial(_attn_kernel, num_heads=num_heads, d_kv=d_kv)
    return pl.pallas_call(
        kernel,
        out_shape=jax.ShapeDtypeStruct((B, S, inner), out_dtype),
        grid=grid,
        in_specs=[pl.BlockSpec((1, 1, tq, inner), lambda b, qi, ki: (0, b, qi, 0)),
                  pl.BlockSpec((1, 1, tk, inner), lambda b, qi, ki: (1, b, ki, 0)),
                  pl.BlockSpec((1, 1, tk, inner), lambda b, qi, ki: (2, b, ki, 0)),
                  pl.BlockSpec((1, num_heads, tq, tk), lambda b, qi, ki: (0, 0, qi, ki)),
                  pl.BlockSpec((1, 1, tk), lambda b, qi, ki: (b, 0, ki))],
        out_specs=pl.BlockSpec((1, tq, inner), lambda b, qi, ki: (b, qi, 0)),
        scratch_shapes=[pltpu.VMEM((num_heads, tq, 1), jnp.float32),
                        pltpu.VMEM((num_heads, tq, 1), jnp.float32),
                        pltpu.VMEM((num_heads, tq, d_kv), jnp.float32)],
        compiler_params=_cparams(("parallel", "parallel", "arbitrary")),
    )(qkv, qkv, qkv, bias, mask)


# ----------------------------- kernel 3: output projection + residual --------------

def _matmul_residual_kernel(a_ref, b_ref, res_ref, o_ref, acc_ref):
    @pl.when(pl.program_id(2) == 0)
    def _():
        acc_ref[...] = jnp.zeros_like(acc_ref)

    acc_ref[...] += jnp.dot(a_ref[...], b_ref[...],
                            preferred_element_type=jnp.float32)

    @pl.when(pl.program_id(2) == pl.num_programs(2) - 1)
    def _():
        o_ref[...] = (acc_ref[...] +
                      res_ref[...].astype(jnp.float32)).astype(o_ref.dtype)


def matmul_residual(a, b, res):
    # a: (M, K), b: (K, N) in compute dtype, res: (M, N) f32  ->  res + a @ b  (f32)
    M, K = a.shape
    _, N = b.shape
    tm, tn, tk = _tile(M, TM), _tile(N, TN), _tile(K, TK)
    grid = (M // tm, N // tn, K // tk)
    return pl.pallas_call(
        _matmul_residual_kernel,
        out_shape=jax.ShapeDtypeStruct((M, N), res.dtype),
        grid=grid,
        in_specs=[pl.BlockSpec((tm, tk), lambda i, j, k: (i, k)),
                  pl.BlockSpec((tk, tn), lambda i, j, k: (k, j)),
                  pl.BlockSpec((tm, tn), lambda i, j, k: (i, j))],
        out_specs=pl.BlockSpec((tm, tn), lambda i, j, k: (i, j)),
        scratch_shapes=[pltpu.VMEM((tm, tn), jnp.float32)],
        compiler_params=_cparams(("parallel", "parallel", "arbitrary")),
    )(a, b, res)


# ----------------------------- kernel 4: RMSNorm + gated FF + residual -------------

def _ln_gated_ff_kernel(x_ref, lnw_ref, wi0_ref, wi1_ref, wo_ref, o_ref,
                        acc_ref, normed_ref, *, eps, compute_dtype):
    f = pl.program_id(1)

    @pl.when(f == 0)
    def _():
        acc_ref[...] = jnp.zeros_like(acc_ref)
        x = x_ref[...].astype(jnp.float32)
        var = jnp.mean(x * x, axis=-1, keepdims=True)
        normed_ref[...] = ((x * jax.lax.rsqrt(var + eps)) *
                           lnw_ref[...].astype(jnp.float32)).astype(compute_dtype)

    normed = normed_ref[...]
    h0 = jnp.dot(normed, wi0_ref[...], preferred_element_type=jnp.float32)
    h1 = jnp.dot(normed, wi1_ref[...], preferred_element_type=jnp.float32)
    # gelu_new (fp32 on the VPU/EUP)
    g = 0.5 * h0 * (1.0 + jnp.tanh(0.7978845608028654 *
                                   (h0 + 0.044715 * h0 * h0 * h0)))
    h = (g * h1).astype(compute_dtype)
    acc_ref[...] += jnp.dot(h, wo_ref[...], preferred_element_type=jnp.float32)

    @pl.when(f == pl.num_programs(1) - 1)
    def _():
        o_ref[...] = (acc_ref[...] +
                      x_ref[...].astype(jnp.float32)).astype(o_ref.dtype)   # residual


def ln_gated_ff_residual(x, ln_w, wi0, wi1, wo, eps, compute_dtype):
    # x: (M, D) f32 (also the residual); wi0/wi1: (D, F); wo: (F, D)  ->  (M, D) f32
    M, D = x.shape
    F = wi0.shape[1]
    tm = _tile(M, TM)
    tf = _tile(F, TF)
    grid = (M // tm, F // tf)
    return pl.pallas_call(
        functools.partial(_ln_gated_ff_kernel, eps=eps, compute_dtype=compute_dtype),
        out_shape=jax.ShapeDtypeStruct((M, D), x.dtype),
        grid=grid,
        in_specs=[pl.BlockSpec((tm, D), lambda i, f: (i, 0)),
                  pl.BlockSpec((1, D), lambda i, f: (0, 0)),
                  pl.BlockSpec((D, tf), lambda i, f: (0, f)),
                  pl.BlockSpec((D, tf), lambda i, f: (0, f)),
                  pl.BlockSpec((tf, D), lambda i, f: (f, 0))],
        out_specs=pl.BlockSpec((tm, D), lambda i, f: (i, 0)),
        scratch_shapes=[pltpu.VMEM((tm, D), jnp.float32),
                        pltpu.VMEM((tm, D), compute_dtype)],
        compiler_params=_cparams(("parallel", "arbitrary")),
    )(x, ln_w.reshape(1, D), wi0, wi1, wo)


# ----------------------------- kernel 5: final RMSNorm -----------------------------

def _rmsnorm_kernel(x_ref, w_ref, o_ref, *, eps):
    x = x_ref[...].astype(jnp.float32)
    var = jnp.mean(x * x, axis=-1, keepdims=True)
    o_ref[...] = (x * jax.lax.rsqrt(var + eps) *
                  w_ref[...].astype(jnp.float32)).astype(o_ref.dtype)


def rmsnorm(x, w, eps):
    M, D = x.shape
    tm = _tile(M, TM)
    return pl.pallas_call(
        functools.partial(_rmsnorm_kernel, eps=eps),
        out_shape=jax.ShapeDtypeStruct((M, D), x.dtype),
        grid=(M // tm,),
        in_specs=[pl.BlockSpec((tm, D), lambda i: (i, 0)),
                  pl.BlockSpec((1, D), lambda i: (0, 0))],
        out_specs=pl.BlockSpec((tm, D), lambda i: (i, 0)),
        compiler_params=_cparams(("parallel",)),
    )(x, w.reshape(1, D))


# ----------------------------- glue (plain JAX) -----------------------------

def relative_position_bucket(rel_pos, num_buckets, max_distance):
    # bidirectional=True (encoder)
    num_buckets //= 2
    rel_buckets = (rel_pos > 0).astype(jnp.int32) * num_buckets
    rel_abs = jnp.abs(rel_pos)
    max_exact = num_buckets // 2
    is_small = rel_abs < max_exact
    rel_float = jnp.maximum(rel_abs.astype(jnp.float32), 1.0)
    rel_if_large = max_exact + (jnp.log(rel_float / max_exact) /
                                math.log(max_distance / max_exact) *
                                (num_buckets - max_exact)).astype(jnp.int32)
    rel_if_large = jnp.minimum(rel_if_large, num_buckets - 1)
    return rel_buckets + jnp.where(is_small, rel_abs, rel_if_large)


def compute_bias(rel_table, q_len, k_len, num_buckets, max_distance):
    ctx = jnp.arange(q_len, dtype=jnp.int32)[:, None]
    mem = jnp.arange(k_len, dtype=jnp.int32)[None, :]
    rel = mem - ctx
    buckets = relative_position_bucket(rel, num_buckets, max_distance)
    values = rel_table[buckets]                      # (q, k, H)
    return jnp.transpose(values, (2, 0, 1))[None]    # (1, H, q, k) -- NOT broadcast over B


def init_params(key, cfg):
    D, H, dk, F = cfg["d_model"], cfg["num_heads"], cfg["d_kv"], cfg["d_ff"]
    inner = H * dk
    n_layers = cfg["num_layers"]
    keys = jax.random.split(key, 2 + 5 * n_layers)
    ki = iter(keys)

    def w(k, shape, scale=0.02):
        return (scale * jax.random.normal(k, shape)).astype(jnp.float32)

    params = {
        "embed": w(next(ki), (cfg["vocab_size"], D)),
        "rel_bias": w(next(ki), (cfg["relative_attention_num_buckets"], H)),
        "final_ln": jnp.ones((D,), jnp.float32),
        "layers": [],
    }
    for _ in range(n_layers):
        params["layers"].append({
            "ln1": jnp.ones((D,), jnp.float32),
            "qkv": w(next(ki), (3, D, inner)),   # stacked q/k/v projection weights
            "o": w(next(ki), (inner, D)),
            "ln2": jnp.ones((D,), jnp.float32),
            "wi0": w(next(ki), (D, F)),
            "wi1": w(next(ki), (D, F)),
            "wo": w(next(ki), (F, D)),
        })
    return params


def t5_stack_forward(params, input_ids, attention_mask, cfg):
    D, H, dk = cfg["d_model"], cfg["num_heads"], cfg["d_kv"]
    inner = H * dk
    eps = cfg["layer_norm_epsilon"]
    cdt = cfg["compute_dtype"]

    hidden = params["embed"][input_ids].astype(jnp.float32)   # (B, S, D); dropout = identity
    B, S, _ = hidden.shape
    M = B * S

    # get_extended_attention_mask (encoder): additive (B,1,S) mask, broadcast in-kernel.
    ext_mask = ((1.0 - attention_mask.astype(jnp.float32))[:, None, :]
                * jnp.finfo(jnp.float32).min)

    # Layer-0 relative attention bias, reused by every layer (mask is added in-kernel
    # each layer, equivalent to HF folding the mask into position_bias once).
    position_bias = compute_bias(params["rel_bias"], S, S,
                                 cfg["relative_attention_num_buckets"],
                                 cfg["relative_attention_max_distance"])  # (1,H,S,S)

    for layer in params["layers"]:
        # ---- self-attention sublayer: ln1 + fused QKV proj -> flash attention ----
        qkv = ln_qkv_proj(hidden.reshape(M, D), layer["ln1"],
                          layer["qkv"].astype(cdt), eps, cdt)          # (3, M, inner)
        qkv = qkv.reshape(3, B, S, inner)
        attn = attention(qkv, position_bias, ext_mask, H, dk, cdt)     # (B, S, inner)
        hidden = matmul_residual(attn.reshape(M, inner),
                                 layer["o"].astype(cdt),
                                 hidden.reshape(M, D)).reshape(B, S, D)

        # ---- gated feed-forward sublayer: ln2 + wi0/wi1 + gelu_new + wo + residual ----
        hidden = ln_gated_ff_residual(hidden.reshape(M, D), layer["ln2"],
                                      layer["wi0"].astype(cdt),
                                      layer["wi1"].astype(cdt),
                                      layer["wo"].astype(cdt),
                                      eps, cdt).reshape(B, S, D)

    hidden = rmsnorm(hidden.reshape(M, D), params["final_ln"], eps).reshape(B, S, D)
    return hidden, attention_mask


# ----------------------------- main -----------------------------

if __name__ == "__main__":
    cfg = dict(
        d_model=32,
        d_kv=8,
        num_heads=4,
        d_ff=64,
        num_layers=2,
        vocab_size=128,
        relative_attention_num_buckets=32,
        relative_attention_max_distance=128,
        layer_norm_epsilon=1e-6,
        is_decoder=False,
        # bf16 MXU operands (fp32 accumulation / norms / softmax / bias adds).
        compute_dtype=jnp.bfloat16,
    )
    B, S = 2, 8

    key = jax.random.PRNGKey(0)
    k_param, k_ids = jax.random.split(key)
    params = init_params(k_param, cfg)
    input_ids = jax.random.randint(k_ids, (B, S), 0, cfg["vocab_size"], dtype=jnp.int32)
    attention_mask = jnp.ones((B, S), jnp.float32)

    fwd = jax.jit(functools.partial(t5_stack_forward, cfg=cfg))
    hidden_states, out_mask = fwd(params, input_ids, attention_mask)
    hidden_states = jax.block_until_ready(hidden_states)

    assert hidden_states.shape == (B, S, cfg["d_model"])
    assert bool(jnp.all(jnp.isfinite(hidden_states)))
    print("KERNEL_OK")
</pallas_src>

<mosaic_0001>
module attributes {stable_mosaic.version = 11 : i64} {
  func.func @_ln_qkv_kernel(%arg0: i32, %arg1: i32, %arg2: i32, %arg3: memref<16x32xf32, #tpu.memory_space<vmem>>, %arg4: memref<1x32xf32, #tpu.memory_space<vmem>>, %arg5: memref<1x32x32xbf16, #tpu.memory_space<vmem>>, %arg6: memref<1x16x32xbf16, #tpu.memory_space<vmem>>, %arg7: memref<16x32xbf16, #tpu.memory_space<vmem>>) attributes {dimension_semantics = [#tpu.dimension_semantics<parallel>, #tpu.dimension_semantics<arbitrary>, #tpu.dimension_semantics<arbitrary>], iteration_bounds = array<i64: 1, 3, 1>, scalar_prefetch = 0 : i64, scratch_operands = 1 : i64, tpu.core_type = #tpu.core_type<tc>, window_params = [{transform_indices = @transform_0, window_bounds = array<i64: 16, 32>}, {pipeline_mode = #tpu.pipeline_mode<synchronous>, transform_indices = @transform_1, window_bounds = array<i64: 1, 32>}, {transform_indices = @transform_2, window_bounds = array<i64: 1, 32, 32>}, {transform_indices = @transform_3, window_bounds = array<i64: 1, 16, 32>}]} {
    %c0_i32 = arith.constant 0 : i32
    %0 = arith.cmpi eq, %arg1, %c0_i32 : i32
    %c0_i32_0 = arith.constant 0 : i32
    %1 = arith.cmpi eq, %arg2, %c0_i32_0 : i32
    %2 = arith.andi %0, %1 : i1
    %3 = arith.extui %2 : i1 to i32
    %c0_i32_1 = arith.constant 0 : i32
    %4 = arith.cmpi ne, %3, %c0_i32_1 : i32
    scf.if %4 {
      %c0_9 = arith.constant 0 : index
      %c0_10 = arith.constant 0 : index
      %13 = vector.load %arg3[%c0_9, %c0_10] : memref<16x32xf32, #tpu.memory_space<vmem>>, vector<16x32xf32>
      %14 = arith.mulf %13, %13 : vector<16x32xf32>
      %cst_11 = arith.constant dense<0.000000e+00> : vector<16xf32>
      %15 = vector.multi_reduction <add>, %14, %cst_11 [1] : vector<16x32xf32> to vector<16xf32>
      %16 = vector.shape_cast %15 : vector<16xf32> to vector<16x1xf32>
      %cst_12 = arith.constant 3.200000e+01 : f32
      %17 = vector.broadcast %cst_12 : f32 to vector<16x1xf32>
      %18 = arith.divf %16, %17 : vector<16x1xf32>
      %cst_13 = arith.constant 9.99999997E-7 : f32
      %19 = vector.broadcast %cst_13 : f32 to vector<16x1xf32>
      %20 = arith.addf %18, %19 : vector<16x1xf32>
      %21 = math.rsqrt %20 : vector<16x1xf32>
      %22 = vector.broadcast %21 : vector<16x1xf32> to vector<16x32xf32>
      %23 = arith.mulf %13, %22 : vector<16x32xf32>
      %c0_14 = arith.constant 0 : index
      %c0_15 = arith.constant 0 : index
      %24 = vector.load %arg4[%c0_14, %c0_15] : memref<1x32xf32, #tpu.memory_space<vmem>>, vector<1x32xf32>
      %25 = vector.broadcast %24 : vector<1x32xf32> to vector<16x32xf32>
      %26 = arith.mulf %23, %25 : vector<16x32xf32>
      %27 = arith.truncf %26 : vector<16x32xf32> to vector<16x32xbf16>
      %c0_16 = arith.constant 0 : index
      %c0_17 = arith.constant 0 : index
      %28 = vector.load %arg7[%c0_16, %c0_17] : memref<16x32xbf16, #tpu.memory_space<vmem>>, vector<16x32xbf16>
      tpu.vector_store %arg7[%c0_16, %c0_17], %27 {strides = array<i32>} : memref<16x32xbf16, #tpu.memory_space<vmem>>, vector<16x32xbf16>,
    } else {
    }
    %c0 = arith.constant 0 : index
    %c0_2 = arith.constant 0 : index
    %5 = vector.load %arg7[%c0, %c0_2] : memref<16x32xbf16, #tpu.memory_space<vmem>>, vector<16x32xbf16>
    %c0_3 = arith.constant 0 : index
    %c0_4 = arith.constant 0 : index
    %c0_5 = arith.constant 0 : index
    %6 = vector.load %arg5[%c0_3, %c0_4, %c0_5] : memref<1x32x32xbf16, #tpu.memory_space<vmem>>, vector<1x32x32xbf16>
    %7 = vector.shape_cast %6 : vector<1x32x32xbf16> to vector<32x32xbf16>
    %cst = arith.constant dense<0.000000e+00> : vector<16x32xf32>
    %8 = tpu.matmul %5, %7, %cst {dimension_numbers = #tpu.dot_dimension_numbers<[1], [0], [0], [1], [0, 0, 1, 1], [], []>} : vector<16x32xbf16>, vector<32x32xbf16>, vector<16x32xf32> -> vector<16x32xf32>
    %9 = arith.truncf %8 : vector<16x32xf32> to vector<16x32xbf16>
    %c0_6 = arith.constant 0 : index
    %c0_7 = arith.constant 0 : index
    %c0_8 = arith.constant 0 : index
    %10 = vector.load %arg6[%c0_6, %c0_7, %c0_8] : memref<1x16x32xbf16, #tpu.memory_space<vmem>>, vector<1x16x32xbf16>
    %11 = vector.shape_cast %10 : vector<1x16x32xbf16> to vector<16x32xbf16>
    %12 = vector.shape_cast %9 : vector<16x32xbf16> to vector<1x16x32xbf16>
    tpu.vector_store %arg6[%c0_6, %c0_7, %c0_8], %12 {strides = array<i32>} : memref<1x16x32xbf16, #tpu.memory_space<vmem>>, vector<1x16x32xbf16>,
    return
  }
  func.func @transform_0(%arg0: i32, %arg1: i32, %arg2: i32) -> (i32, i32) {
    %c0_i32 = arith.constant 0 : i32
    %c0_i32_0 = arith.constant 0 : i32
    return %arg0, %c0_i32 : i32, i32
  }
  func.func @transform_1(%arg0: i32, %arg1: i32, %arg2: i32) -> (i32, i32) {
    %c0_i32 = arith.constant 0 : i32
    %c0_i32_0 = arith.constant 0 : i32
    %c0_i32_1 = arith.constant 0 : i32
    return %c0_i32, %c0_i32_0 : i32, i32
  }
  func.func @transform_2(%arg0: i32, %arg1: i32, %arg2: i32) -> (i32, i32, i32) {
    %c0_i32 = arith.constant 0 : i32
    %c0_i32_0 = arith.constant 0 : i32
    return %arg1, %c0_i32, %arg2 : i32, i32, i32
  }
  func.func @transform_3(%arg0: i32, %arg1: i32, %arg2: i32) -> (i32, i32, i32) {
    %c0_i32 = arith.constant 0 : i32
    return %arg1, %arg0, %arg2 : i32, i32, i32
  }
}

module attributes {stable_mosaic.version = 11 : i64} {
  func.func @_attn_kernel(%arg0: i32, %arg1: i32, %arg2: i32, %arg3: memref<1x1x8x32xbf16, #tpu.memory_space<vmem>>, %arg4: memref<1x1x8x32xbf16, #tpu.memory_space<vmem>>, %arg5: memref<1x1x8x32xbf16, #tpu.memory_space<vmem>>, %arg6: memref<1x4x8x8xf32, #tpu.memory_space<vmem>>, %arg7: memref<1x1x8xf32, #tpu.memory_space<vmem>>, %arg8: memref<1x8x32xbf16, #tpu.memory_space<vmem>>, %arg9: memref<4x8x1xf32, #tpu.memory_space<vmem>>, %arg10: memref<4x8x1xf32, #tpu.memory_space<vmem>>, %arg11: memref<4x8x8xf32, #tpu.memory_space<vmem>>) attributes {dimension_semantics = [#tpu.dimension_semantics<parallel>, #tpu.dimension_semantics<parallel>, #tpu.dimension_semantics<arbitrary>], iteration_bounds = array<i64: 2, 1, 1>, scalar_prefetch = 0 : i64, scratch_operands = 3 : i64, tpu.core_type = #tpu.core_type<tc>, window_params = [{transform_indices = @transform_0, window_bounds = array<i64: 1, 1, 8, 32>}, {transform_indices = @transform_1, window_bounds = array<i64: 1, 1, 8, 32>}, {transform_indices = @transform_2, window_bounds = array<i64: 1, 1, 8, 32>}, {transform_indices = @transform_3, window_bounds = array<i64: 1, 4, 8, 8>}, {transform_indices = @transform_4, window_bounds = array<i64: 1, 1, 8>}, {transform_indices = @transform_5, window_bounds = array<i64: 1, 8, 32>}]} {
    %c0_i32 = arith.constant 0 : i32
    %0 = arith.cmpi eq, %arg2, %c0_i32 : i32
    %1 = arith.extui %0 : i1 to i32
    %c0_i32_0 = arith.constant 0 : i32
    %2 = arith.cmpi ne, %1, %c0_i32_0 : i32
    scf.if %2 {
      %cst_117 = arith.constant 0xFF800000 : f32
      %178 = vector.broadcast %cst_117 : f32 to vector<4x8x1xf32>
      %c0_118 = arith.constant 0 : index
      %c0_119 = arith.constant 0 : index
      %c0_120 = arith.constant 0 : index
      %179 = vector.load %arg9[%c0_118, %c0_119, %c0_120] : memref<4x8x1xf32, #tpu.memory_space<vmem>>, vector<4x8x1xf32>
      tpu.vector_store %arg9[%c0_118, %c0_119, %c0_120], %178 {strides = array<i32>} : memref<4x8x1xf32, #tpu.memory_space<vmem>>, vector<4x8x1xf32>,
      %cst_121 = arith.constant 0.000000e+00 : f32
      %180 = vector.broadcast %cst_121 : f32 to vector<4x8x1xf32>
      %c0_122 = arith.constant 0 : index
      %c0_123 = arith.constant 0 : index
      %c0_124 = arith.constant 0 : index
      %181 = vector.load %arg10[%c0_122, %c0_123, %c0_124] : memref<4x8x1xf32, #tpu.memory_space<vmem>>, vector<4x8x1xf32>
      tpu.vector_store %arg10[%c0_122, %c0_123, %c0_124], %180 {strides = array<i32>} : memref<4x8x1xf32, #tpu.memory_space<vmem>>, vector<4x8x1xf32>,
      %cst_125 = arith.constant 0.000000e+00 : f32
      %182 = vector.broadcast %cst_125 : f32 to vector<4x8x8xf32>
      %c0_126 = arith.constant 0 : index
      %c0_127 = arith.constant 0 : index
      %c0_128 = arith.constant 0 : index
      %183 = vector.load %arg11[%c0_126, %c0_127, %c0_128] : memref<4x8x8xf32, #tpu.memory_space<vmem>>, vector<4x8x8xf32>
      tpu.vector_store %arg11[%c0_126, %c0_127, %c0_128], %182 {strides = array<i32>} : memref<4x8x8xf32, #tpu.memory_space<vmem>>, vector<4x8x8xf32>,
    } else {
    }
    %c0 = arith.constant 0 : index
    %c0_1 = arith.constant 0 : index
    %c0_2 = arith.constant 0 : index
    %c0_3 = arith.constant 0 : index
    %3 = vector.load %arg3[%c0, %c0_1, %c0_2, %c0_3] : memref<1x1x8x32xbf16, #tpu.memory_space<vmem>>, vector<1x1x8x32xbf16>
    %4 = vector.shape_cast %3 : vector<1x1x8x32xbf16> to vector<8x32xbf16>
    %c0_4 = arith.constant 0 : index
    %c0_5 = arith.constant 0 : index
    %c0_6 = arith.constant 0 : index
    %c0_7 = arith.constant 0 : index
    %5 = vector.load %arg4[%c0_4, %c0_5, %c0_6, %c0_7] : memref<1x1x8x32xbf16, #tpu.memory_space<vmem>>, vector<1x1x8x32xbf16>
    %6 = vector.shape_cast %5 : vector<1x1x8x32xbf16> to vector<8x32xbf16>
    %c0_8 = arith.constant 0 : index
    %c0_9 = arith.constant 0 : index
    %c0_10 = arith.constant 0 : index
    %c0_11 = arith.constant 0 : index
    %7 = vector.load %arg5[%c0_8, %c0_9, %c0_10, %c0_11] : memref<1x1x8x32xbf16, #tpu.memory_space<vmem>>, vector<1x1x8x32xbf16>
    %8 = vector.shape_cast %7 : vector<1x1x8x32xbf16> to vector<8x32xbf16>
    %c0_12 = arith.constant 0 : index
    %c0_13 = arith.constant 0 : index
    %c0_14 = arith.constant 0 : index
    %9 = vector.load %arg7[%c0_12, %c0_13, %c0_14] : memref<1x1x8xf32, #tpu.memory_space<vmem>>, vector<1x1x8xf32>
    %10 = vector.shape_cast %9 : vector<1x1x8xf32> to vector<1x8xf32>
    %11 = vector.extract_strided_slice %4 {offsets = [0, 0], sizes = [8, 8], strides = [1, 1]} : vector<8x32xbf16> to vector<8x8xbf16>
    %12 = vector.extract_strided_slice %6 {offsets = [0, 0], sizes = [8, 8], strides = [1, 1]} : vector<8x32xbf16> to vector<8x8xbf16>
    %13 = vector.extract_strided_slice %8 {offsets = [0, 0], sizes = [8, 8], strides = [1, 1]} : vector<8x32xbf16> to vector<8x8xbf16>
    %cst = arith.constant dense<0.000000e+00> : vector<8x8xf32>
    %14 = tpu.matmul %11, %12, %cst {dimension_numbers = #tpu.dot_dimension_numbers<[1], [1], [0], [0], [0, 0, 1, 0], [], []>} : vector<8x8xbf16>, vector<8x8xbf16>, vector<8x8xf32> -> vector<8x8xf32>
    %c0_15 = arith.constant 0 : index
    %c0_16 = arith.constant 0 : index
    %c0_17 = arith.constant 0 : index
    %c0_18 = arith.constant 0 : index
    %15 = vector.load %arg6[%c0_15, %c0_16, %c0_17, %c0_18] : memref<1x4x8x8xf32, #tpu.memory_space<vmem>>, vector<1x1x8x8xf32>
    %16 = vector.shape_cast %15 : vector<1x1x8x8xf32> to vector<8x8xf32>
    %17 = arith.addf %14, %16 : vector<8x8xf32>
    %18 = vector.broadcast %10 : vector<1x8xf32> to vector<8x8xf32>
    %19 = arith.addf %17, %18 : vector<8x8xf32>
    %c0_19 = arith.constant 0 : index
    %c0_20 = arith.constant 0 : index
    %c0_21 = arith.constant 0 : index
    %20 = vector.load %arg9[%c0_19, %c0_20, %c0_21] : memref<4x8x1xf32, #tpu.memory_space<vmem>>, vector<1x8x1xf32>
    %21 = vector.shape_cast %20 : vector<1x8x1xf32> to vector<8x1xf32>
    %cst_22 = arith.constant dense<0xFF800000> : vector<8xf32>
    %22 = vector.multi_reduction <maximumf>, %19, %cst_22 [1] : vector<8x8xf32> to vector<8xf32>
    %23 = vector.shape_cast %22 : vector<8xf32> to vector<8x1xf32>
    %24 = arith.maximumf %21, %23 : vector<8x1xf32>
    %25 = arith.subf %21, %24 : vector<8x1xf32>
    %26 = math.exp %25 : vector<8x1xf32>
    %27 = vector.broadcast %24 : vector<8x1xf32> to vector<8x8xf32>
    %28 = arith.subf %19, %27 : vector<8x8xf32>
    %29 = math.exp %28 : vector<8x8xf32>
    %c0_23 = arith.constant 0 : index
    %c0_24 = arith.constant 0 : index
    %c0_25 = arith.constant 0 : index
    %30 = vector.load %arg10[%c0_23, %c0_24, %c0_25] : memref<4x8x1xf32, #tpu.memory_space<vmem>>, vector<1x8x1xf32>
    %31 = vector.shape_cast %30 : vector<1x8x1xf32> to vector<8x1xf32>
    %32 = arith.mulf %26, %31 : vector<8x1xf32>
    %cst_26 = arith.constant dense<0.000000e+00> : vector<8xf32>
    %33 = vector.multi_reduction <add>, %29, %cst_26 [1] : vector<8x8xf32> to vector<8xf32>
    %34 = vector.shape_cast %33 : vector<8xf32> to vector<8x1xf32>
    %35 = arith.addf %32, %34 : vector<8x1xf32>
    %c0_27 = arith.constant 0 : index
    %c0_28 = arith.constant 0 : index
    %c0_29 = arith.constant 0 : index
    %36 = vector.load %arg10[%c0_27, %c0_28, %c0_29] : memref<4x8x1xf32, #tpu.memory_space<vmem>>, vector<1x8x1xf32>
    %37 = vector.shape_cast %36 : vector<1x8x1xf32> to vector<8x1xf32>
    %38 = vector.shape_cast %35 : vector<8x1xf32> to vector<1x8x1xf32>
    tpu.vector_store %arg10[%c0_27, %c0_28, %c0_29], %38 {strides = array<i32>} : memref<4x8x1xf32, #tpu.memory_space<vmem>>, vector<1x8x1xf32>,
    %c0_30 = arith.constant 0 : index
    %c0_31 = arith.constant 0 : index
    %c0_32 = arith.constant 0 : index
    %39 = vector.load %arg11[%c0_30, %c0_31, %c0_32] : memref<4x8x8xf32, #tpu.memory_space<vmem>>, vector<1x8x8xf32>
    %40 = vector.shape_cast %39 : vector<1x8x8xf32> to vector<8x8xf32>
    %41 = vector.broadcast %26 : vector<8x1xf32> to vector<8x8xf32>
    %42 = arith.mulf %41, %40 : vector<8x8xf32>
    %43 = arith.truncf %29 : vector<8x8xf32> to vector<8x8xbf16>
    %cst_33 = arith.constant dense<0.000000e+00> : vector<8x8xf32>
    %44 = tpu.matmul %43, %13, %cst_33 {dimension_numbers = #tpu.dot_dimension_numbers<[1], [0], [0], [1], [0, 0, 1, 1], [], []>} : vector<8x8xbf16>, vector<8x8xbf16>, vector<8x8xf32> -> vector<8x8xf32>
    %45 = arith.addf %42, %44 : vector<8x8xf32>
    %c0_34 = arith.constant 0 : index
    %c0_35 = arith.constant 0 : index
    %c0_36 = arith.constant 0 : index
    %46 = vector.load %arg11[%c0_34, %c0_35, %c0_36] : memref<4x8x8xf32, #tpu.memory_space<vmem>>, vector<1x8x8xf32>
    %47 = vector.shape_cast %46 : vector<1x8x8xf32> to vector<8x8xf32>
    %48 = vector.shape_cast %45 : vector<8x8xf32> to vector<1x8x8xf32>
    tpu.vector_store %arg11[%c0_34, %c0_35, %c0_36], %48 {strides = array<i32>} : memref<4x8x8xf32, #tpu.memory_space<vmem>>, vector<1x8x8xf32>,
    %c0_37 = arith.constant 0 : index
    %c0_38 = arith.constant 0 : index
    %c0_39 = arith.constant 0 : index
    %49 = vector.load %arg9[%c0_37, %c0_38, %c0_39] : memref<4x8x1xf32, #tpu.memory_space<vmem>>, vector<1x8x1xf32>
    %50 = vector.shape_cast %49 : vector<1x8x1xf32> to vector<8x1xf32>
    %51 = vector.shape_cast %24 : vector<8x1xf32> to vector<1x8x1xf32>
    tpu.vector_store %arg9[%c0_37, %c0_38, %c0_39], %51 {strides = array<i32>} : memref<4x8x1xf32, #tpu.memory_space<vmem>>, vector<1x8x1xf32>,
    %52 = vector.extract_strided_slice %4 {offsets = [0, 8], sizes = [8, 8], strides = [1, 1]} : vector<8x32xbf16> to vector<8x8xbf16>
    %53 = vector.extract_strided_slice %6 {offsets = [0, 8], sizes = [8, 8], strides = [1, 1]} : vector<8x32xbf16> to vector<8x8xbf16>
    %54 = vector.extract_strided_slice %8 {offsets = [0, 8], sizes = [8, 8], strides = [1, 1]} : vector<8x32xbf16> to vector<8x8xbf16>
    %cst_40 = arith.constant dense<0.000000e+00> : vector<8x8xf32>
    %55 = tpu.matmul %52, %53, %cst_40 {dimension_numbers = #tpu.dot_dimension_numbers<[1], [1], [0], [0], [0, 0, 1, 0], [], []>} : vector<8x8xbf16>, vector<8x8xbf16>, vector<8x8xf32> -> vector<8x8xf32>
    %c0_41 = arith.constant 0 : index
    %c1 = arith.constant 1 : index
    %c0_42 = arith.constant 0 : index
    %c0_43 = arith.constant 0 : index
    %56 = vector.load %arg6[%c0_41, %c1, %c0_42, %c0_43] : memref<1x4x8x8xf32, #tpu.memory_space<vmem>>, vector<1x1x8x8xf32>
    %57 = vector.shape_cast %56 : vector<1x1x8x8xf32> to vector<8x8xf32>
    %58 = arith.addf %55, %57 : vector<8x8xf32>
    %59 = vector.broadcast %10 : vector<1x8xf32> to vector<8x8xf32>
    %60 = arith.addf %58, %59 : vector<8x8xf32>
    %c1_44 = arith.constant 1 : index
    %c0_45 = arith.constant 0 : index
    %c0_46 = arith.constant 0 : index
    %61 = vector.load %arg9[%c1_44, %c0_45, %c0_46] : memref<4x8x1xf32, #tpu.memory_space<vmem>>, vector<1x8x1xf32>
    %62 = vector.shape_cast %61 : vector<1x8x1xf32> to vector<8x1xf32>
    %cst_47 = arith.constant dense<0xFF800000> : vector<8xf32>
    %63 = vector.multi_reduction <maximumf>, %60, %cst_47 [1] : vector<8x8xf32> to vector<8xf32>
    %64 = vector.shape_cast %63 : vector<8xf32> to vector<8x1xf32>
    %65 = arith.maximumf %62, %64 : vector<8x1xf32>
    %66 = arith.subf %62, %65 : vector<8x1xf32>
    %67 = math.exp %66 : vector<8x1xf32>
    %68 = vector.broadcast %65 : vector<8x1xf32> to vector<8x8xf32>
    %69 = arith.subf %60, %68 : vector<8x8xf32>
    %70 = math.exp %69 : vector<8x8xf32>
    %c1_48 = arith.constant 1 : index
    %c0_49 = arith.constant 0 : index
    %c0_50 = arith.constant 0 : index
    %71 = vector.load %arg10[%c1_48, %c0_49, %c0_50] : memref<4x8x1xf32, #tpu.memory_space<vmem>>, vector<1x8x1xf32>
    %72 = vector.shape_cast %71 : vector<1x8x1xf32> to vector<8x1xf32>
    %73 = arith.mulf %67, %72 : vector<8x1xf32>
    %cst_51 = arith.constant dense<0.000000e+00> : vector<8xf32>
    %74 = vector.multi_reduction <add>, %70, %cst_51 [1] : vector<8x8xf32> to vector<8xf32>
    %75 = vector.shape_cast %74 : vector<8xf32> to vector<8x1xf32>
    %76 = arith.addf %73, %75 : vector<8x1xf32>
    %c1_52 = arith.constant 1 : index
    %c0_53 = arith.constant 0 : index
    %c0_54 = arith.constant 0 : index
    %77 = vector.load %arg10[%c1_52, %c0_53, %c0_54] : memref<4x8x1xf32, #tpu.memory_space<vmem>>, vector<1x8x1xf32>
    %78 = vector.shape_cast %77 : vector<1x8x1xf32> to vector<8x1xf32>
    %79 = vector.shape_cast %76 : vector<8x1xf32> to vector<1x8x1xf32>
    tpu.vector_store %arg10[%c1_52, %c0_53, %c0_54], %79 {strides = array<i32>} : memref<4x8x1xf32, #tpu.memory_space<vmem>>, vector<1x8x1xf32>,
    %c1_55 = arith.constant 1 : index
    %c0_56 = arith.constant 0 : index
    %c0_57 = arith.constant 0 : index
    %80 = vector.load %arg11[%c1_55, %c0_56, %c0_57] : memref<4x8x8xf32, #tpu.memory_space<vmem>>, vector<1x8x8xf32>
    %81 = vector.shape_cast %80 : vector<1x8x8xf32> to vector<8x8xf32>
    %82 = vector.broadcast %67 : vector<8x1xf32> to vector<8x8xf32>
    %83 = arith.mulf %82, %81 : vector<8x8xf32>
    %84 = arith.truncf %70 : vector<8x8xf32> to vector<8x8xbf16>
    %cst_58 = arith.constant dense<0.000000e+00> : vector<8x8xf32>
    %85 = tpu.matmul %84, %54, %cst_58 {dimension_numbers = #tpu.dot_dimension_numbers<[1], [0], [0], [1], [0, 0, 1, 1], [], []>} : vector<8x8xbf16>, vector<8x8xbf16>, vector<8x8xf32> -> vector<8x8xf32>
    %86 = arith.addf %83, %85 : vector<8x8xf32>
    %c1_59 = arith.constant 1 : index
    %c0_60 = arith.constant 0 : index
    %c0_61 = arith.constant 0 : index
    %87 = vector.load %arg11[%c1_59, %c0_60, %c0_61] : memref<4x8x8xf32, #tpu.memory_space<vmem>>, vector<1x8x8xf32>
    %88 = vector.shape_cast %87 : vector<1x8x8xf32> to vector<8x8xf32>
    %89 = vector.shape_cast %86 : vector<8x8xf32> to vector<1x8x8xf32>
    tpu.vector_store %arg11[%c1_59, %c0_60, %c0_61], %89 {strides = array<i32>} : memref<4x8x8xf32, #tpu.memory_space<vmem>>, vector<1x8x8xf32>,
    %c1_62 = arith.constant 1 : index
    %c0_63 = arith.constant 0 : index
    %c0_64 = arith.constant 0 : index
    %90 = vector.load %arg9[%c1_62, %c0_63, %c0_64] : memref<4x8x1xf32, #tpu.memory_space<vmem>>, vector<1x8x1xf32>
    %91 = vector.shape_cast %90 : vector<1x8x1xf32> to vector<8x1xf32>
    %92 = vector.shape_cast %65 : vector<8x1xf32> to vector<1x8x1xf32>
    tpu.vector_store %arg9[%c1_62, %c0_63, %c0_64], %92 {strides = array<i32>} : memref<4x8x1xf32, #tpu.memory_space<vmem>>, vector<1x8x1xf32>,
    %93 = vector.extract_strided_slice %4 {offsets = [0, 16], sizes = [8, 8], strides = [1, 1]} : vector<8x32xbf16> to vector<8x8xbf16>
    %94 = vector.extract_strided_slice %6 {offsets = [0, 16], sizes = [8, 8], strides = [1, 1]} : vector<8x32xbf16> to vector<8x8xbf16>
    %95 = vector.extract_strided_slice %8 {offsets = [0, 16], sizes = [8, 8], strides = [1, 1]} : vector<8x32xbf16> to vector<8x8xbf16>
    %cst_65 = arith.constant dense<0.000000e+00> : vector<8x8xf32>
    %96 = tpu.matmul %93, %94, %cst_65 {dimension_numbers = #tpu.dot_dimension_numbers<[1], [1], [0], [0], [0, 0, 1, 0], [], []>} : vector<8x8xbf16>, vector<8x8xbf16>, vector<8x8xf32> -> vector<8x8xf32>
    %c0_66 = arith.constant 0 : index
    %c2 = arith.constant 2 : index
    %c0_67 = arith.constant 0 : index
    %c0_68 = arith.constant 0 : index
    %97 = vector.load %arg6[%c0_66, %c2, %c0_67, %c0_68] : memref<1x4x8x8xf32, #tpu.memory_space<vmem>>, vector<1x1x8x8xf32>
    %98 = vector.shape_cast %97 : vector<1x1x8x8xf32> to vector<8x8xf32>
    %99 = arith.addf %96, %98 : vector<8x8xf32>
    %100 = vector.broadcast %10 : vector<1x8xf32> to vector<8x8xf32>
    %101 = arith.addf %99, %100 : vector<8x8xf32>
    %c2_69 = arith.constant 2 : index
    %c0_70 = arith.constant 0 : index
    %c0_71 = arith.constant 0 : index
    %102 = vector.load %arg9[%c2_69, %c0_70, %c0_71] : memref<4x8x1xf32, #tpu.memory_space<vmem>>, vector<1x8x1xf32>
    %103 = vector.shape_cast %102 : vector<1x8x1xf32> to vector<8x1xf32>
    %cst_72 = arith.constant dense<0xFF800000> : vector<8xf32>
    %104 = vector.multi_reduction <maximumf>, %101, %cst_72 [1] : vector<8x8xf32> to vector<8xf32>
    %105 = vector.shape_cast %104 : vector<8xf32> to vector<8x1xf32>
    %106 = arith.maximumf %103, %105 : vector<8x1xf32>
    %107 = arith.subf %103, %106 : vector<8x1xf32>
    %108 = math.exp %107 : vector<8x1xf32>
    %109 = vector.broadcast %106 : vector<8x1xf32> to vector<8x8xf32>
    %110 = arith.subf %101, %109 : vector<8x8xf32>
    %111 = math.exp %110 : vector<8x8xf32>
    %c2_73 = arith.constant 2 : index
    %c0_74 = arith.constant 0 : index
    %c0_75 = arith.constant 0 : index
    %112 = vector.load %arg10[%c2_73, %c0_74, %c0_75] : memref<4x8x1xf32, #tpu.memory_space<vmem>>, vector<1x8x1xf32>
    %113 = vector.shape_cast %112 : vector<1x8x1xf32> to vector<8x1xf32>
    %114 = arith.mulf %108, %113 : vector<8x1xf32>
    %cst_76 = arith.constant dense<0.000000e+00> : vector<8xf32>
    %115 = vector.multi_reduction <add>, %111, %cst_76 [1] : vector<8x8xf32> to vector<8xf32>
    %116 = vector.shape_cast %115 : vector<8xf32> to vector<8x1xf32>
    %117 = arith.addf %114, %116 : vector<8x1xf32>
    %c2_77 = arith.constant 2 : index
    %c0_78 = arith.constant 0 : index
    %c0_79 = arith.constant 0 : index
    %118 = vector.load %arg10[%c2_77, %c0_78, %c0_79] : memref<4x8x1xf32, #tpu.memory_space<vmem>>, vector<1x8x1xf32>
    %119 = vector.shape_cast %118 : vector<1x8x1xf32> to vector<8x1xf32>
    %120 = vector.shape_cast %117 : vector<8x1xf32> to vector<1x8x1xf32>
    tpu.vector_store %arg10[%c2_77, %c0_78, %c0_79], %120 {strides = array<i32>} : memref<4x8x1xf32, #tpu.memory_space<vmem>>, vector<1x8x1xf32>,
    %c2_80 = arith.constant 2 : index
    %c0_81 = arith.constant 0 : index
    %c0_82 = arith.constant 0 : index
    %121 = vector.load %arg11[%c2_80, %c0_81, %c0_82] : memref<4x8x8xf32, #tpu.memory_space<vmem>>, vector<1x8x8xf32>
    %122 = vector.shape_cast %121 : vector<1x8x8xf32> to vector<8x8xf32>
    %123 = vector.broadcast %108 : vector<8x1xf32> to vector<8x8xf32>
    %124 = arith.mulf %123, %122 : vector<8x8xf32>
    %125 = arith.truncf %111 : vector<8x8xf32> to vector<8x8xbf16>
    %cst_83 = arith.constant dense<0.000000e+00> : vector<8x8xf32>
    %126 = tpu.matmul %125, %95, %cst_83 {dimension_numbers = #tpu.dot_dimension_numbers<[1], [0], [0], [1], [0, 0, 1, 1], [], []>} : vector<8x8xbf16>, vector<8x8xbf16>, vector<8x8xf32> -> vector<8x8xf32>
    %127 = arith.addf %124, %126 : vector<8x8xf32>
    %c2_84 = arith.constant 2 : index
    %c0_85 = arith.constant 0 : index
    %c0_86 = arith.constant 0 : index
    %128 = vector.load %arg11[%c2_84, %c0_85, %c0_86] : memref<4x8x8xf32, #tpu.memory_space<vmem>>, vector<1x8x8xf32>
    %129 = vector.shape_cast %128 : vector<1x8x8xf32> to vector<8x8xf32>
    %130 = vector.shape_cast %127 : vector<8x8xf32> to vector<1x8x8xf32>
    tpu.vector_store %arg11[%c2_84, %c0_85, %c0_86], %130 {strides = array<i32>} : memref<4x8x8xf32, #tpu.memory_space<vmem>>, vector<1x8x8xf32>,
    %c2_87 = arith.constant 2 : index
    %c0_88 = arith.constant 0 : index
    %c0_89 = arith.constant 0 : index
    %131 = vector.load %arg9[%c2_87, %c0_88, %c0_89] : memref<4x8x1xf32, #tpu.memory_space<vmem>>, vector<1x8x1xf32>
    %132 = vector.shape_cast %131 : vector<1x8x1xf32> to vector<8x1xf32>
    %133 = vector.shape_cast %106 : vector<8x1xf32> to vector<1x8x1xf32>
    tpu.vector_store %arg9[%c2_87, %c0_88, %c0_89], %133 {strides = array<i32>} : memref<4x8x1xf32, #tpu.memory_space<vmem>>, vector<1x8x1xf32>,
    %134 = vector.extract_strided_slice %4 {offsets = [0, 24], sizes = [8, 8], strides = [1, 1]} : vector<8x32xbf16> to vector<8x8xbf16>
    %135 = vector.extract_strided_slice %6 {offsets = [0, 24], sizes = [8, 8], strides = [1, 1]} : vector<8x32xbf16> to vector<8x8xbf16>
    %136 = vector.extract_strided_slice %8 {offsets = [0, 24], sizes = [8, 8], strides = [1, 1]} : vector<8x32xbf16> to vector<8x8xbf16>
    %cst_90 = arith.constant dense<0.000000e+00> : vector<8x8xf32>
    %137 = tpu.matmul %134, %135, %cst_90 {dimension_numbers = #tpu.dot_dimension_numbers<[1], [1], [0], [0], [0, 0, 1, 0], [], []>} : vector<8x8xbf16>, vector<8x8xbf16>, vector<8x8xf32> -> vector<8x8xf32>
    %c0_91 = arith.constant 0 : index
    %c3 = arith.constant 3 : index
    %c0_92 = arith.constant 0 : index
    %c0_93 = arith.constant 0 : index
    %138 = vector.load %arg6[%c0_91, %c3, %c0_92, %c0_93] : memref<1x4x8x8xf32, #tpu.memory_space<vmem>>, vector<1x1x8x8xf32>
    %139 = vector.shape_cast %138 : vector<1x1x8x8xf32> to vector<8x8xf32>
    %140 = arith.addf %137, %139 : vector<8x8xf32>
    %141 = vector.broadcast %10 : vector<1x8xf32> to vector<8x8xf32>
    %142 = arith.addf %140, %141 : vector<8x8xf32>
    %c3_94 = arith.constant 3 : index
    %c0_95 = arith.constant 0 : index
    %c0_96 = arith.constant 0 : index
    %143 = vector.load %arg9[%c3_94, %c0_95, %c0_96] : memref<4x8x1xf32, #tpu.memory_space<vmem>>, vector<1x8x1xf32>
    %144 = vector.shape_cast %143 : vector<1x8x1xf32> to vector<8x1xf32>
    %cst_97 = arith.constant dense<0xFF800000> : vector<8xf32>
    %145 = vector.multi_reduction <maximumf>, %142, %cst_97 [1] : vector<8x8xf32> to vector<8xf32>
    %146 = vector.shape_cast %145 : vector<8xf32> to vector<8x1xf32>
    %147 = arith.maximumf %144, %146 : vector<8x1xf32>
    %148 = arith.subf %144, %147 : vector<8x1xf32>
    %149 = math.exp %148 : vector<8x1xf32>
    %150 = vector.broadcast %147 : vector<8x1xf32> to vector<8x8xf32>
    %151 = arith.subf %142, %150 : vector<8x8xf32>
    %152 = math.exp %151 : vector<8x8xf32>
    %c3_98 = arith.constant 3 : index
    %c0_99 = arith.constant 0 : index
    %c0_100 = arith.constant 0 : index
    %153 = vector.load %arg10[%c3_98, %c0_99, %c0_100] : memref<4x8x1xf32, #tpu.memory_space<vmem>>, vector<1x8x1xf32>
    %154 = vector.shape_cast %153 : vector<1x8x1xf32> to vector<8x1xf32>
    %155 = arith.mulf %149, %154 : vector<8x1xf32>
    %cst_101 = arith.constant dense<0.000000e+00> : vector<8xf32>
    %156 = vector.multi_reduction <add>, %152, %cst_101 [1] : vector<8x8xf32> to vector<8xf32>
    %157 = vector.shape_cast %156 : vector<8xf32> to vector<8x1xf32>
    %158 = arith.addf %155, %157 : vector<8x1xf32>
    %c3_102 = arith.constant 3 : index
    %c0_103 = arith.constant 0 : index
    %c0_104 = arith.constant 0 : index
    %159 = vector.load %arg10[%c3_102, %c0_103, %c0_104] : memref<4x8x1xf32, #tpu.memory_space<vmem>>, vector<1x8x1xf32>
    %160 = vector.shape_cast %159 : vector<1x8x1xf32> to vector<8x1xf32>
    %161 = vector.shape_cast %158 : vector<8x1xf32> to vector<1x8x1xf32>
    tpu.vector_store %arg10[%c3_102, %c0_103, %c0_104], %161 {strides = array<i32>} : memref<4x8x1xf32, #tpu.memory_space<vmem>>, vector<1x8x1xf32>,
    %c3_105 = arith.constant 3 : index
    %c0_106 = arith.constant 0 : index
    %c0_107 = arith.constant 0 : index
    %162 = vector.load %arg11[%c3_105, %c0_106, %c0_107] : memref<4x8x8xf32, #tpu.memory_space<vmem>>, vector<1x8x8xf32>
    %163 = vector.shape_cast %162 : vector<1x8x8xf32> to vector<8x8xf32>
    %164 = vector.broadcast %149 : vector<8x1xf32> to vector<8x8xf32>
    %165 = arith.mulf %164, %163 : vector<8x8xf32>
    %166 = arith.truncf %152 : vector<8x8xf32> to vector<8x8xbf16>
    %cst_108 = arith.constant dense<0.000000e+00> : vector<8x8xf32>
    %167 = tpu.matmul %166, %136, %cst_108 {dimension_numbers = #tpu.dot_dimension_numbers<[1], [0], [0], [1], [0, 0, 1, 1], [], []>} : vector<8x8xbf16>, vector<8x8xbf16>, vector<8x8xf32> -> vector<8x8xf32>
    %168 = arith.addf %165, %167 : vector<8x8xf32>
    %c3_109 = arith.constant 3 : index
    %c0_110 = arith.constant 0 : index
    %c0_111 = arith.constant 0 : index
    %169 = vector.load %arg11[%c3_109, %c0_110, %c0_111] : memref<4x8x8xf32, #tpu.memory_space<vmem>>, vector<1x8x8xf32>
    %170 = vector.shape_cast %169 : vector<1x8x8xf32> to vector<8x8xf32>
    %171 = vector.shape_cast %168 : vector<8x8xf32> to vector<1x8x8xf32>
    tpu.vector_store %arg11[%c3_109, %c0_110, %c0_111], %171 {strides = array<i32>} : memref<4x8x8xf32, #tpu.memory_space<vmem>>, vector<1x8x8xf32>,
    %c3_112 = arith.constant 3 : index
    %c0_113 = arith.constant 0 : index
    %c0_114 = arith.constant 0 : index
    %172 = vector.load %arg9[%c3_112, %c0_113, %c0_114] : memref<4x8x1xf32, #tpu.memory_space<vmem>>, vector<1x8x1xf32>
    %173 = vector.shape_cast %172 : vector<1x8x1xf32> to vector<8x1xf32>
    %174 = vector.shape_cast %147 : vector<8x1xf32> to vector<1x8x1xf32>
    tpu.vector_store %arg9[%c3_112, %c0_113, %c0_114], %174 {strides = array<i32>} : memref<4x8x1xf32, #tpu.memory_space<vmem>>, vector<1x8x1xf32>,
    %c0_i32_115 = arith.constant 0 : i32
    %175 = arith.cmpi eq, %arg2, %c0_i32_115 : i32
    %176 = arith.extui %175 : i1 to i32
    %c0_i32_116 = arith.constant 0 : i32
    %177 = arith.cmpi ne, %176, %c0_i32_116 : i32
    scf.if %177 {
      %c0_117 = arith.constant 0 : index
      %c0_118 = arith.constant 0 : index
      %c0_119 = arith.constant 0 : index
      %178 = vector.load %arg11[%c0_117, %c0_118, %c0_119] : memref<4x8x8xf32, #tpu.memory_space<vmem>>, vector<1x8x8xf32>
      %179 = vector.shape_cast %178 : vector<1x8x8xf32> to vector<8x8xf32>
      %c0_120 = arith.constant 0 : index
      %c0_121 = arith.constant 0 : index
      %c0_122 = arith.constant 0 : index
      %180 = vector.load %arg10[%c0_120, %c0_121, %c0_122] : memref<4x8x1xf32, #tpu.memory_space<vmem>>, vector<1x8x1xf32>
      %181 = vector.shape_cast %180 : vector<1x8x1xf32> to vector<8x1xf32>
      %182 = tpu.reciprocal %181 {approx = true} : vector<8x1xf32> -> vector<8x1xf32>
      %183 = vector.broadcast %182 : vector<8x1xf32> to vector<8x8xf32>
      %184 = arith.mulf %179, %183 : vector<8x8xf32>
      %c1_123 = arith.constant 1 : index
      %c0_124 = arith.constant 0 : index
      %c0_125 = arith.constant 0 : index
      %185 = vector.load %arg11[%c1_123, %c0_124, %c0_125] : memref<4x8x8xf32, #tpu.memory_space<vmem>>, vector<1x8x8xf32>
      %186 = vector.shape_cast %185 : vector<1x8x8xf32> to vector<8x8xf32>
      %c1_126 = arith.constant 1 : index
      %c0_127 = arith.constant 0 : index
      %c0_128 = arith.constant 0 : index
      %187 = vector.load %arg10[%c1_126, %c0_127, %c0_128] : memref<4x8x1xf32, #tpu.memory_space<vmem>>, vector<1x8x1xf32>
      %188 = vector.shape_cast %187 : vector<1x8x1xf32> to vector<8x1xf32>
      %189 = tpu.reciprocal %188 {approx = true} : vector<8x1xf32> -> vector<8x1xf32>
      %190 = vector.broadcast %189 : vector<8x1xf32> to vector<8x8xf32>
      %191 = arith.mulf %186, %190 : vector<8x8xf32>
      %c2_129 = arith.constant 2 : index
      %c0_130 = arith.constant 0 : index
      %c0_131 = arith.constant 0 : index
      %192 = vector.load %arg11[%c2_129, %c0_130, %c0_131] : memref<4x8x8xf32, #tpu.memory_space<vmem>>, vector<1x8x8xf32>
      %193 = vector.shape_cast %192 : vector<1x8x8xf32> to vector<8x8xf32>
      %c2_132 = arith.constant 2 : index
      %c0_133 = arith.constant 0 : index
      %c0_134 = arith.constant 0 : index
      %194 = vector.load %arg10[%c2_132, %c0_133, %c0_134] : memref<4x8x1xf32, #tpu.memory_space<vmem>>, vector<1x8x1xf32>
      %195 = vector.shape_cast %194 : vector<1x8x1xf32> to vector<8x1xf32>
      %196 = tpu.reciprocal %195 {approx = true} : vector<8x1xf32> -> vector<8x1xf32>
      %197 = vector.broadcast %196 : vector<8x1xf32> to vector<8x8xf32>
      %198 = arith.mulf %193, %197 : vector<8x8xf32>
      %c3_135 = arith.constant 3 : index
      %c0_136 = arith.constant 0 : index
      %c0_137 = arith.constant 0 : index
      %199 = vector.load %arg11[%c3_135, %c0_136, %c0_137] : memref<4x8x8xf32, #tpu.memory_space<vmem>>, vector<1x8x8xf32>
      %200 = vector.shape_cast %199 : vector<1x8x8xf32> to vector<8x8xf32>
      %c3_138 = arith.constant 3 : index
      %c0_139 = arith.constant 0 : index
      %c0_140 = arith.constant 0 : index
      %201 = vector.load %arg10[%c3_138, %c0_139, %c0_140] : memref<4x8x1xf32, #tpu.memory_space<vmem>>, vector<1x8x1xf32>
      %202 = vector.shape_cast %201 : vector<1x8x1xf32> to vector<8x1xf32>
      %203 = tpu.reciprocal %202 {approx = true} : vector<8x1xf32> -> vector<8x1xf32>
      %204 = vector.broadcast %203 : vector<8x1xf32> to vector<8x8xf32>
      %205 = arith.mulf %200, %204 : vector<8x8xf32>
      %206 = tpu.concatenate %184, %191, %198, %205 in 1 : vector<8x8xf32>, vector<8x8xf32>, vector<8x8xf32>, vector<8x8xf32> -> vector<8x32xf32>
      %207 = arith.truncf %206 : vector<8x32xf32> to vector<8x32xbf16>
      %c0_141 = arith.constant 0 : index
      %c0_142 = arith.constant 0 : index
      %c0_143 = arith.constant 0 : index
      %208 = vector.load %arg8[%c0_141, %c0_142, %c0_143] : memref<1x8x32xbf16, #tpu.memory_space<vmem>>, vector<1x8x32xbf16>
      %209 = vector.shape_cast %208 : vector<1x8x32xbf16> to vector<8x32xbf16>
      %210 = vector.shape_cast %207 : vector<8x32xbf16> to vector<1x8x32xbf16>
      tpu.vector_store %arg8[%c0_141, %c0_142, %c0_143], %210 {strides = array<i32>} : memref<1x8x32xbf16, #tpu.memory_space<vmem>>, vector<1x8x32xbf16>,
    } else {
    }
    return
  }
  func.func @transform_0(%arg0: i32, %arg1: i32, %arg2: i32) -> (i32, i32, i32, i32) {
    %c0_i32 = arith.constant 0 : i32
    %c0_i32_0 = arith.constant 0 : i32
    %c0_i32_1 = arith.constant 0 : i32
    return %c0_i32, %arg0, %arg1, %c0_i32_0 : i32, i32, i32, i32
  }
  func.func @transform_1(%arg0: i32, %arg1: i32, %arg2: i32) -> (i32, i32, i32, i32) {
    %c1_i32 = arith.constant 1 : i32
    %c0_i32 = arith.constant 0 : i32
    %c0_i32_0 = arith.constant 0 : i32
    return %c1_i32, %arg0, %arg2, %c0_i32 : i32, i32, i32, i32
  }
  func.func @transform_2(%arg0: i32, %arg1: i32, %arg2: i32) -> (i32, i32, i32, i32) {
    %c2_i32 = arith.constant 2 : i32
    %c0_i32 = arith.constant 0 : i32
    %c0_i32_0 = arith.constant 0 : i32
    return %c2_i32, %arg0, %arg2, %c0_i32 : i32, i32, i32, i32
  }
  func.func @transform_3(%arg0: i32, %arg1: i32, %arg2: i32) -> (i32, i32, i32, i32) {
    %c0_i32 = arith.constant 0 : i32
    %c0_i32_0 = arith.constant 0 : i32
    %c0_i32_1 = arith.constant 0 : i32
    return %c0_i32, %c0_i32_0, %arg1, %arg2 : i32, i32, i32, i32
  }
  func.func @transform_4(%arg0: i32, %arg1: i32, %arg2: i32) -> (i32, i32, i32) {
    %c0_i32 = arith.constant 0 : i32
    %c0_i32_0 = arith.constant 0 : i32
    return %arg0, %c0_i32, %arg2 : i32, i32, i32
  }
  func.func @transform_5(%arg0: i32, %arg1: i32, %arg2: i32) -> (i32, i32, i32) {
    %c0_i32 = arith.constant 0 : i32
    %c0_i32_0 = arith.constant 0 : i32
    return %arg0, %arg1, %c0_i32 : i32, i32, i32
  }
}

module attributes {stable_mosaic.version = 11 : i64} {
  func.func @_matmul_residual_kernel(%arg0: i32, %arg1: i32, %arg2: i32, %arg3: memref<16x32xbf16, #tpu.memory_space<vmem>>, %arg4: memref<32x32xbf16, #tpu.memory_space<vmem>>, %arg5: memref<16x32xf32, #tpu.memory_space<vmem>>, %arg6: memref<16x32xf32, #tpu.memory_space<vmem>>, %arg7: memref<16x32xf32, #tpu.memory_space<vmem>>) attributes {dimension_semantics = [#tpu.dimension_semantics<parallel>, #tpu.dimension_semantics<parallel>, #tpu.dimension_semantics<arbitrary>], iteration_bounds = array<i64: 1, 1, 1>, scalar_prefetch = 0 : i64, scratch_operands = 1 : i64, tpu.core_type = #tpu.core_type<tc>, window_params = [{transform_indices = @transform_0, window_bounds = array<i64: 16, 32>}, {transform_indices = @transform_1, window_bounds = array<i64: 32, 32>}, {transform_indices = @transform_2, window_bounds = array<i64: 16, 32>}, {transform_indices = @transform_3, window_bounds = array<i64: 16, 32>}]} {
    %c0_i32 = arith.constant 0 : i32
    %0 = arith.cmpi eq, %arg2, %c0_i32 : i32
    %1 = arith.extui %0 : i1 to i32
    %c0_i32_0 = arith.constant 0 : i32
    %2 = arith.cmpi ne, %1, %c0_i32_0 : i32
    scf.if %2 {
      %cst_10 = arith.constant 0.000000e+00 : f32
      %12 = vector.broadcast %cst_10 : f32 to vector<16x32xf32>
      %c0_11 = arith.constant 0 : index
      %c0_12 = arith.constant 0 : index
      %13 = vector.load %arg7[%c0_11, %c0_12] : memref<16x32xf32, #tpu.memory_space<vmem>>, vector<16x32xf32>
      tpu.vector_store %arg7[%c0_11, %c0_12], %12 {strides = array<i32>} : memref<16x32xf32, #tpu.memory_space<vmem>>, vector<16x32xf32>,
    } else {
    }
    %c0 = arith.constant 0 : index
    %c0_1 = arith.constant 0 : index
    %3 = vector.load %arg7[%c0, %c0_1] : memref<16x32xf32, #tpu.memory_space<vmem>>, vector<16x32xf32>
    %c0_2 = arith.constant 0 : index
    %c0_3 = arith.constant 0 : index
    %4 = vector.load %arg3[%c0_2, %c0_3] : memref<16x32xbf16, #tpu.memory_space<vmem>>, vector<16x32xbf16>
    %c0_4 = arith.constant 0 : index
    %c0_5 = arith.constant 0 : index
    %5 = vector.load %arg4[%c0_4, %c0_5] : memref<32x32xbf16, #tpu.memory_space<vmem>>, vector<32x32xbf16>
    %cst = arith.constant dense<0.000000e+00> : vector<16x32xf32>
    %6 = tpu.matmul %4, %5, %cst {dimension_numbers = #tpu.dot_dimension_numbers<[1], [0], [0], [1], [0, 0, 1, 1], [], []>} : vector<16x32xbf16>, vector<32x32xbf16>, vector<16x32xf32> -> vector<16x32xf32>
    %7 = arith.addf %3, %6 : vector<16x32xf32>
    %c0_6 = arith.constant 0 : index
    %c0_7 = arith.constant 0 : index
    %8 = vector.load %arg7[%c0_6, %c0_7] : memref<16x32xf32, #tpu.memory_space<vmem>>, vector<16x32xf32>
    tpu.vector_store %arg7[%c0_6, %c0_7], %7 {strides = array<i32>} : memref<16x32xf32, #tpu.memory_space<vmem>>, vector<16x32xf32>,
    %c0_i32_8 = arith.constant 0 : i32
    %9 = arith.cmpi eq, %arg2, %c0_i32_8 : i32
    %10 = arith.extui %9 : i1 to i32
    %c0_i32_9 = arith.constant 0 : i32
    %11 = arith.cmpi ne, %10, %c0_i32_9 : i32
    scf.if %11 {
      %c0_10 = arith.constant 0 : index
      %c0_11 = arith.constant 0 : index
      %12 = vector.load %arg7[%c0_10, %c0_11] : memref<16x32xf32, #tpu.memory_space<vmem>>, vector<16x32xf32>
      %c0_12 = arith.constant 0 : index
      %c0_13 = arith.constant 0 : index
      %13 = vector.load %arg5[%c0_12, %c0_13] : memref<16x32xf32, #tpu.memory_space<vmem>>, vector<16x32xf32>
      %14 = arith.addf %12, %13 : vector<16x32xf32>
      %c0_14 = arith.constant 0 : index
      %c0_15 = arith.constant 0 : index
      %15 = vector.load %arg6[%c0_14, %c0_15] : memref<16x32xf32, #tpu.memory_space<vmem>>, vector<16x32xf32>
      tpu.vector_store %arg6[%c0_14, %c0_15], %14 {strides = array<i32>} : memref<16x32xf32, #tpu.memory_space<vmem>>, vector<16x32xf32>,
    } else {
    }
    return
  }
  func.func @transform_0(%arg0: i32, %arg1: i32, %arg2: i32) -> (i32, i32) {
    %c0_i32 = arith.constant 0 : i32
    return %arg0, %arg2 : i32, i32
  }
  func.func @transform_1(%arg0: i32, %arg1: i32, %arg2: i32) -> (i32, i32) {
    %c0_i32 = arith.constant 0 : i32
    return %arg2, %arg1 : i32, i32
  }
  func.func @transform_2(%arg0: i32, %arg1: i32, %arg2: i32) -> (i32, i32) {
    %c0_i32 = arith.constant 0 : i32
    return %arg0, %arg1 : i32, i32
  }
  func.func @transform_3(%arg0: i32, %arg1: i32, %arg2: i32) -> (i32, i32) {
    %c0_i32 = arith.constant 0 : i32
    return %arg0, %arg1 : i32, i32
  }
}

module attributes {stable_mosaic.version = 11 : i64} {
  func.func @_ln_gated_ff_kernel(%arg0: i32, %arg1: i32, %arg2: memref<16x32xf32, #tpu.memory_space<vmem>>, %arg3: memref<1x32xf32, #tpu.memory_space<vmem>>, %arg4: memref<32x64xbf16, #tpu.memory_space<vmem>>, %arg5: memref<32x64xbf16, #tpu.memory_space<vmem>>, %arg6: memref<64x32xbf16, #tpu.memory_space<vmem>>, %arg7: memref<16x32xf32, #tpu.memory_space<vmem>>, %arg8: memref<16x32xf32, #tpu.memory_space<vmem>>, %arg9: memref<16x32xbf16, #tpu.memory_space<vmem>>) attributes {dimension_semantics = [#tpu.dimension_semantics<parallel>, #tpu.dimension_semantics<arbitrary>], iteration_bounds = array<i64: 1, 1>, scalar_prefetch = 0 : i64, scratch_operands = 2 : i64, tpu.core_type = #tpu.core_type<tc>, window_params = [{transform_indices = @transform_0, window_bounds = array<i64: 16, 32>}, {pipeline_mode = #tpu.pipeline_mode<synchronous>, transform_indices = @transform_1, window_bounds = array<i64: 1, 32>}, {transform_indices = @transform_2, window_bounds = array<i64: 32, 64>}, {transform_indices = @transform_3, window_bounds = array<i64: 32, 64>}, {transform_indices = @transform_4, window_bounds = array<i64: 64, 32>}, {transform_indices = @transform_5, window_bounds = array<i64: 16, 32>}]} {
    %c0_i32 = arith.constant 0 : i32
    %0 = arith.cmpi eq, %arg1, %c0_i32 : i32
    %1 = arith.extui %0 : i1 to i32
    %c0_i32_0 = arith.constant 0 : i32
    %2 = arith.cmpi ne, %1, %c0_i32_0 : i32
    scf.if %2 {
      %cst_20 = arith.constant 0.000000e+00 : f32
      %31 = vector.broadcast %cst_20 : f32 to vector<16x32xf32>
      %c0_21 = arith.constant 0 : index
      %c0_22 = arith.constant 0 : index
      %32 = vector.load %arg8[%c0_21, %c0_22] : memref<16x32xf32, #tpu.memory_space<vmem>>, vector<16x32xf32>
      tpu.vector_store %arg8[%c0_21, %c0_22], %31 {strides = array<i32>} : memref<16x32xf32, #tpu.memory_space<vmem>>, vector<16x32xf32>,
      %c0_23 = arith.constant 0 : index
      %c0_24 = arith.constant 0 : index
      %33 = vector.load %arg2[%c0_23, %c0_24] : memref<16x32xf32, #tpu.memory_space<vmem>>, vector<16x32xf32>
      %34 = arith.mulf %33, %33 : vector<16x32xf32>
      %cst_25 = arith.constant dense<0.000000e+00> : vector<16xf32>
      %35 = vector.multi_reduction <add>, %34, %cst_25 [1] : vector<16x32xf32> to vector<16xf32>
      %36 = vector.shape_cast %35 : vector<16xf32> to vector<16x1xf32>
      %cst_26 = arith.constant 3.200000e+01 : f32
      %37 = vector.broadcast %cst_26 : f32 to vector<16x1xf32>
      %38 = arith.divf %36, %37 : vector<16x1xf32>
      %cst_27 = arith.constant 9.99999997E-7 : f32
      %39 = vector.broadcast %cst_27 : f32 to vector<16x1xf32>
      %40 = arith.addf %38, %39 : vector<16x1xf32>
      %41 = math.rsqrt %40 : vector<16x1xf32>
      %42 = vector.broadcast %41 : vector<16x1xf32> to vector<16x32xf32>
      %43 = arith.mulf %33, %42 : vector<16x32xf32>
      %c0_28 = arith.constant 0 : index
      %c0_29 = arith.constant 0 : index
      %44 = vector.load %arg3[%c0_28, %c0_29] : memref<1x32xf32, #tpu.memory_space<vmem>>, vector<1x32xf32>
      %45 = vector.broadcast %44 : vector<1x32xf32> to vector<16x32xf32>
      %46 = arith.mulf %43, %45 : vector<16x32xf32>
      %47 = arith.truncf %46 : vector<16x32xf32> to vector<16x32xbf16>
      %c0_30 = arith.constant 0 : index
      %c0_31 = arith.constant 0 : index
      %48 = vector.load %arg9[%c0_30, %c0_31] : memref<16x32xbf16, #tpu.memory_space<vmem>>, vector<16x32xbf16>
      tpu.vector_store %arg9[%c0_30, %c0_31], %47 {strides = array<i32>} : memref<16x32xbf16, #tpu.memory_space<vmem>>, vector<16x32xbf16>,
    } else {
    }
    %c0 = arith.constant 0 : index
    %c0_1 = arith.constant 0 : index
    %3 = vector.load %arg9[%c0, %c0_1] : memref<16x32xbf16, #tpu.memory_space<vmem>>, vector<16x32xbf16>
    %c0_2 = arith.constant 0 : index
    %c0_3 = arith.constant 0 : index
    %4 = vector.load %arg4[%c0_2, %c0_3] : memref<32x64xbf16, #tpu.memory_space<vmem>>, vector<32x64xbf16>
    %cst = arith.constant dense<0.000000e+00> : vector<16x64xf32>
    %5 = tpu.matmul %3, %4, %cst {dimension_numbers = #tpu.dot_dimension_numbers<[1], [0], [0], [1], [0, 0, 1, 1], [], []>} : vector<16x32xbf16>, vector<32x64xbf16>, vector<16x64xf32> -> vector<16x64xf32>
    %c0_4 = arith.constant 0 : index
    %c0_5 = arith.constant 0 : index
    %6 = vector.load %arg5[%c0_4, %c0_5] : memref<32x64xbf16, #tpu.memory_space<vmem>>, vector<32x64xbf16>
    %cst_6 = arith.constant dense<0.000000e+00> : vector<16x64xf32>
    %7 = tpu.matmul %3, %6, %cst_6 {dimension_numbers = #tpu.dot_dimension_numbers<[1], [0], [0], [1], [0, 0, 1, 1], [], []>} : vector<16x32xbf16>, vector<32x64xbf16>, vector<16x64xf32> -> vector<16x64xf32>
    %cst_7 = arith.constant 5.000000e-01 : f32
    %8 = vector.broadcast %cst_7 : f32 to vector<16x64xf32>
    %9 = arith.mulf %8, %5 : vector<16x64xf32>
    %cst_8 = arith.constant 4.471500e-02 : f32
    %10 = vector.broadcast %cst_8 : f32 to vector<16x64xf32>
    %11 = arith.mulf %10, %5 : vector<16x64xf32>
    %12 = arith.mulf %11, %5 : vector<16x64xf32>
    %13 = arith.mulf %12, %5 : vector<16x64xf32>
    %14 = arith.addf %5, %13 : vector<16x64xf32>
    %cst_9 = arith.constant 0.797884583 : f32
    %15 = vector.broadcast %cst_9 : f32 to vector<16x64xf32>
    %16 = arith.mulf %15, %14 : vector<16x64xf32>
    %17 = math.tanh %16 : vector<16x64xf32>
    %cst_10 = arith.constant 1.000000e+00 : f32
    %18 = vector.broadcast %cst_10 : f32 to vector<16x64xf32>
    %19 = arith.addf %18, %17 : vector<16x64xf32>
    %20 = arith.mulf %9, %19 : vector<16x64xf32>
    %21 = arith.mulf %20, %7 : vector<16x64xf32>
    %22 = arith.truncf %21 : vector<16x64xf32> to vector<16x64xbf16>
    %c0_11 = arith.constant 0 : index
    %c0_12 = arith.constant 0 : index
    %23 = vector.load %arg8[%c0_11, %c0_12] : memref<16x32xf32, #tpu.memory_space<vmem>>, vector<16x32xf32>
    %c0_13 = arith.constant 0 : index
    %c0_14 = arith.constant 0 : index
    %24 = vector.load %arg6[%c0_13, %c0_14] : memref<64x32xbf16, #tpu.memory_space<vmem>>, vector<64x32xbf16>
    %cst_15 = arith.constant dense<0.000000e+00> : vector<16x32xf32>
    %25 = tpu.matmul %22, %24, %cst_15 {dimension_numbers = #tpu.dot_dimension_numbers<[1], [0], [0], [1], [0, 0, 1, 1], [], []>} : vector<16x64xbf16>, vector<64x32xbf16>, vector<16x32xf32> -> vector<16x32xf32>
    %26 = arith.addf %23, %25 : vector<16x32xf32>
    %c0_16 = arith.constant 0 : index
    %c0_17 = arith.constant 0 : index
    %27 = vector.load %arg8[%c0_16, %c0_17] : memref<16x32xf32, #tpu.memory_space<vmem>>, vector<16x32xf32>
    tpu.vector_store %arg8[%c0_16, %c0_17], %26 {strides = array<i32>} : memref<16x32xf32, #tpu.memory_space<vmem>>, vector<16x32xf32>,
    %c0_i32_18 = arith.constant 0 : i32
    %28 = arith.cmpi eq, %arg1, %c0_i32_18 : i32
    %29 = arith.extui %28 : i1 to i32
    %c0_i32_19 = arith.constant 0 : i32
    %30 = arith.cmpi ne, %29, %c0_i32_19 : i32
    scf.if %30 {
      %c0_20 = arith.constant 0 : index
      %c0_21 = arith.constant 0 : index
      %31 = vector.load %arg8[%c0_20, %c0_21] : memref<16x32xf32, #tpu.memory_space<vmem>>, vector<16x32xf32>
      %c0_22 = arith.constant 0 : index
      %c0_23 = arith.constant 0 : index
      %32 = vector.load %arg2[%c0_22, %c0_23] : memref<16x32xf32, #tpu.memory_space<vmem>>, vector<16x32xf32>
      %33 = arith.addf %31, %32 : vector<16x32xf32>
      %c0_24 = arith.constant 0 : index
      %c0_25 = arith.constant 0 : index
      %34 = vector.load %arg7[%c0_24, %c0_25] : memref<16x32xf32, #tpu.memory_space<vmem>>, vector<16x32xf32>
      tpu.vector_store %arg7[%c0_24, %c0_25], %33 {strides = array<i32>} : memref<16x32xf32, #tpu.memory_space<vmem>>, vector<16x32xf32>,
    } else {
    }
    return
  }
  func.func @transform_0(%arg0: i32, %arg1: i32) -> (i32, i32) {
    %c0_i32 = arith.constant 0 : i32
    %c0_i32_0 = arith.constant 0 : i32
    return %arg0, %c0_i32 : i32, i32
  }
  func.func @transform_1(%arg0: i32, %arg1: i32) -> (i32, i32) {
    %c0_i32 = arith.constant 0 : i32
    %c0_i32_0 = arith.constant 0 : i32
    %c0_i32_1 = arith.constant 0 : i32
    return %c0_i32, %c0_i32_0 : i32, i32
  }
  func.func @transform_2(%arg0: i32, %arg1: i32) -> (i32, i32) {
    %c0_i32 = arith.constant 0 : i32
    %c0_i32_0 = arith.constant 0 : i32
    return %c0_i32, %arg1 : i32, i32
  }
  func.func @transform_3(%arg0: i32, %arg1: i32) -> (i32, i32) {
    %c0_i32 = arith.constant 0 : i32
    %c0_i32_0 = arith.constant 0 : i32
    return %c0_i32, %arg1 : i32, i32
  }
  func.func @transform_4(%arg0: i32, %arg1: i32) -> (i32, i32) {
    %c0_i32 = arith.constant 0 : i32
    %c0_i32_0 = arith.constant 0 : i32
    return %arg1, %c0_i32 : i32, i32
  }
  func.func @transform_5(%arg0: i32, %arg1: i32) -> (i32, i32) {
    %c0_i32 = arith.constant 0 : i32
    %c0_i32_0 = arith.constant 0 : i32
    return %arg0, %c0_i32 : i32, i32
  }
}

module attributes {stable_mosaic.version = 11 : i64} {
  func.func @_rmsnorm_kernel(%arg0: i32, %arg1: memref<16x32xf32, #tpu.memory_space<vmem>>, %arg2: memref<1x32xf32, #tpu.memory_space<vmem>>, %arg3: memref<16x32xf32, #tpu.memory_space<vmem>>) attributes {dimension_semantics = [#tpu.dimension_semantics<parallel>], iteration_bounds = array<i64: 1>, scalar_prefetch = 0 : i64, scratch_operands = 0 : i64, tpu.core_type = #tpu.core_type<tc>, window_params = [{transform_indices = @transform_0, window_bounds = array<i64: 16, 32>}, {pipeline_mode = #tpu.pipeline_mode<synchronous>, transform_indices = @transform_1, window_bounds = array<i64: 1, 32>}, {transform_indices = @transform_2, window_bounds = array<i64: 16, 32>}]} {
    %c0 = arith.constant 0 : index
    %c0_0 = arith.constant 0 : index
    %0 = vector.load %arg1[%c0, %c0_0] : memref<16x32xf32, #tpu.memory_space<vmem>>, vector<16x32xf32>
    %1 = arith.mulf %0, %0 : vector<16x32xf32>
    %cst = arith.constant dense<0.000000e+00> : vector<16xf32>
    %2 = vector.multi_reduction <add>, %1, %cst [1] : vector<16x32xf32> to vector<16xf32>
    %3 = vector.shape_cast %2 : vector<16xf32> to vector<16x1xf32>
    %cst_1 = arith.constant 3.200000e+01 : f32
    %4 = vector.broadcast %cst_1 : f32 to vector<16x1xf32>
    %5 = arith.divf %3, %4 : vector<16x1xf32>
    %cst_2 = arith.constant 9.99999997E-7 : f32
    %6 = vector.broadcast %cst_2 : f32 to vector<16x1xf32>
    %7 = arith.addf %5, %6 : vector<16x1xf32>
    %8 = math.rsqrt %7 : vector<16x1xf32>
    %9 = vector.broadcast %8 : vector<16x1xf32> to vector<16x32xf32>
    %10 = arith.mulf %0, %9 : vector<16x32xf32>
    %c0_3 = arith.constant 0 : index
    %c0_4 = arith.constant 0 : index
    %11 = vector.load %arg2[%c0_3, %c0_4] : memref<1x32xf32, #tpu.memory_space<vmem>>, vector<1x32xf32>
    %12 = vector.broadcast %11 : vector<1x32xf32> to vector<16x32xf32>
    %13 = arith.mulf %10, %12 : vector<16x32xf32>
    %c0_5 = arith.constant 0 : index
    %c0_6 = arith.constant 0 : index
    %14 = vector.load %arg3[%c0_5, %c0_6] : memref<16x32xf32, #tpu.memory_space<vmem>>, vector<16x32xf32>
    tpu.vector_store %arg3[%c0_5, %c0_6], %13 {strides = array<i32>} : memref<16x32xf32, #tpu.memory_space<vmem>>, vector<16x32xf32>,
    return
  }
  func.func @transform_0(%arg0: i32) -> (i32, i32) {
    %c0_i32 = arith.constant 0 : i32
    %c0_i32_0 = arith.constant 0 : i32
    return %arg0, %c0_i32 : i32, i32
  }
  func.func @transform_1(%arg0: i32) -> (i32, i32) {
    %c0_i32 = arith.constant 0 : i32
    %c0_i32_0 = arith.constant 0 : i32
    %c0_i32_1 = arith.constant 0 : i32
    return %c0_i32, %c0_i32_0 : i32, i32
  }
  func.func @transform_2(%arg0: i32) -> (i32, i32) {
    %c0_i32 = arith.constant 0 : i32
    %c0_i32_0 = arith.constant 0 : i32
    return %arg0, %c0_i32 : i32, i32
  }
}

</mosaic_0001>

<llo_original>
// kernel: t5_stack_forward.9
$region0: #{t5_stack_forward.9}
  #allocation0 [shape = 'u32[]', space=smem, size = 0x4, offset = 0x4, fixed_abs, tag = 'smem constant byte address 0x4 - core index']
  #allocation1 [shape = 'u32[144,128]{1,0:T(1,128)}', space=vmem, size = 0x12000, scoped, tag = 'internal scratch']
  #allocation2 [shape = 'bf16[16,32]{1,0:T(16,128)(2,1)}', space=vmem, size = 0x1000, scoped, tag = 'scratch operand']
  %s0 = inlined_call_operand.hbm [shape: f32[16,32], index: 0, kind: input, shape index: {}]
  %s1 = inlined_call_operand.hbm [shape: f32[1,32], index: 1, kind: input, shape index: {}]
  %s2 = inlined_call_operand.hbm [shape: bf16[3,32,32], index: 2, kind: input, shape index: {}]
  %s3 = inlined_call_operand.hbm [shape: bf16[3,16,32], index: 3, kind: output, shape index: {}]
  %s4 = sld [smem:[#allocation0]]
  $region61: #{t5_stack_forward.9} parent=0
    _
  %s6 = ssub.s32 1, %s4
  %s7 = scalar_select 0, %s6, %s4
  $region1: #{t5_stack_forward.9} parent=0
    #allocation3 [shape = 'u8[8192]{0}', space=vmem, size = 0x2000, scoped, tag = 'input window, operand 0, single buffered']
    #allocation4 [shape = 's32[2]{0}', space=sflag, size = 0x8, scoped, tag = 'scoped memory for t5_stack_forward.9']
    #allocation5 [shape = 's32[2]{0}', space=sflag, size = 0x8, scoped, tag = 'scoped memory for t5_stack_forward.9']
    #allocation6 [shape = 'u8[512]{0}', space=vmem, size = 0x400, scoped, tag = 'input window, operand 1, single buffered']
    #allocation7 [shape = 's32[1]{0}', space=sflag, size = 0x4, scoped, tag = 'scoped memory for t5_stack_forward.9']
    #allocation8 [shape = 'u8[16384]{0}', space=vmem, size = 0x4000, scoped, tag = 'input window, operand 2']
    #allocation9 [shape = 'u8[8192]{0}', space=vmem, size = 0x2000, scoped, tag = 'output window, operand 0']
    %8 = vsyncpa [#allocation4], 0
    %9 = vsyncpa [#allocation7], 0
    %10 = vsyncpa [#allocation5], 0
    %s11 = scalar_lea.sflag [#allocation5], 1
    %12 = vsyncpa %s11, 0
    loop: start=0, step=1, limit=5
    $region2: #{t5_stack_forward.9} parent=1 // loop_pre_header
      _
    $region3: #{t5_stack_forward.9} parent=1 // loop_header
      %s14 = sphi 0, %s18
      %p15 = scmp.ge.s32.totalorder %s14, 5
      %s21 = sphi 0, %s40
      %s22 = sphi 0, %s36
      %s23 = sphi 0, %s32
      %s24 = sphi 0, %s21
      %s25 = sphi 0, %s22
      %s26 = sphi 0, %s23
      %s27 = sphi 0, %s24
      %s28 = sphi 0, %s25
      %s29 = sphi 0, %s26
      %s43 = sphi 0, %s45
      %s46 = sphi 0, %s43
      %s47 = sphi 0, %s46
      %s63 = sphi 0, %s47
      %s67 = sphi 0, %s67
      %s69 = sphi 0, %s67
      %s70 = sphi 0, %s69
      %s84 = sphi 0, %s70
      %s92 = sphi 0, %s94
      %s95 = sphi 0, %s92
      %s96 = sphi 0, %s95
      %s112 = sphi 0, %s96
      %s122 = sphi 0, %s124
      %s125 = sphi 0, %s122
      %s126 = sphi 0, %s125
      %s142 = sphi 0, %s126
    $region4: #{t5_stack_forward.9} parent=1 // loop_header_branch
      %17 = sbr.rel (%p15) target = $region8
    $region5: #{t5_stack_forward.9} parent=1 // loop_body
      %s19 = ssub.s32 %s14, 1
      %s20 = ssub.s32 %s14, 2
      %s30 = sadd.s32 1, %s23
      %p31 = scmp.ge.s32.totalorder %s30, 1
      %s32 = scalar_select %p31, 0, %s30
      %s33 = sadd.s32 1, %s22
      %s34 = scalar_select %p31, %s33, %s22
      %p35 = scmp.ge.s32.totalorder %s34, 3
      %s36 = scalar_select %p35, 0, %s34
      %s37 = sadd.s32 1, %s21
      %s38 = scalar_select %p35, %s37, %s21
      %p39 = scmp.ge.s32.totalorder %s38, 1
      %s40 = scalar_select %p39, 0, %s38
      %s41 = ssub.s32 %s21, %s40
      %p42 = scmp.eq.s32.totalorder %s41, 0
      %s44 = sadd.s32 %s43, 1
      %s45 = scalar_select %p42, %s43, %s44
      %p48 = pneg %p42
      %p49 = scmp.eq.s32.totalorder %s14, 2
      %p50 = por %p48, %p49
      %p51 = scmp.ne.s32.totalorder %s43, %s46
      %p52 = scmp.eq.s32.totalorder %s14, 0
      %p53 = por %p51, %p52
      %p54 = scmp.ne.s32.totalorder %s43, %s46
      %p55 = scmp.eq.s32.totalorder %s19, 2
      %p56 = por %p54, %p55
      %p57 = scmp.ne.s32.totalorder %s46, %s47
      %p58 = scmp.eq.s32.totalorder %s19, 0
      %p59 = por %p57, %p58
      %p60 = scmp.ne.s32.totalorder %s46, %s47
      %p61 = scmp.eq.s32.totalorder %s20, 2
      %p62 = por %p60, %p61
      %p64 = scmp.ne.s32.totalorder %s47, %s63
      %p65 = scmp.eq.s32.totalorder %s20, 0
      %p66 = por %p64, %p65
      %s68 = sadd.s32 %s67, 1
      %p71 = scmp.eq.s32.totalorder %s14, 2
      %p72 = scmp.ne.s32.totalorder %s67, %s69
      %p73 = scmp.eq.s32.totalorder %s14, 0
      %p74 = por %p72, %p73
      %p75 = scmp.ne.s32.totalorder %s67, %s69
      %p76 = scmp.eq.s32.totalorder %s19, 2
      %p77 = por %p75, %p76
      %p78 = scmp.ne.s32.totalorder %s69, %s70
      %p79 = scmp.eq.s32.totalorder %s19, 0
      %p80 = por %p78, %p79
      %p81 = scmp.ne.s32.totalorder %s69, %s70
      %p82 = scmp.eq.s32.totalorder %s20, 2
      %p83 = por %p81, %p82
      %p85 = scmp.ne.s32.totalorder %s70, %s84
      %p86 = scmp.eq.s32.totalorder %s20, 0
      %p87 = por %p85, %p86
      %s88 = ssub.s32 %s22, %s36
      %s89 = ssub.s32 %s23, %s32
      %s90 = sor.u32 %s88, %s89
      %p91 = scmp.eq.s32.totalorder %s90, 0
      %s93 = sadd.s32 %s92, 1
      %s94 = scalar_select %p91, %s92, %s93
      %p97 = pneg %p91
      %p98 = scmp.eq.s32.totalorder %s14, 2
      %p99 = por %p97, %p98
      %p100 = scmp.ne.s32.totalorder %s92, %s95
      %p101 = scmp.eq.s32.totalorder %s14, 0
      %p102 = por %p100, %p101
      %p103 = scmp.ne.s32.totalorder %s92, %s95
      %p104 = scmp.eq.s32.totalorder %s19, 2
      %p105 = por %p103, %p104
      %p106 = scmp.ne.s32.totalorder %s95, %s96
      %p107 = scmp.eq.s32.totalorder %s19, 0
      %p108 = por %p106, %p107
      %p109 = scmp.ne.s32.totalorder %s95, %s96
      %p110 = scmp.eq.s32.totalorder %s20, 2
      %p111 = por %p109, %p110
      %p113 = scmp.ne.s32.totalorder %s96, %s112
      %p114 = scmp.eq.s32.totalorder %s20, 0
      %p115 = por %p113, %p114
      %s116 = ssub.s32 %s22, %s36
      %s117 = ssub.s32 %s21, %s40
      %s118 = sor.u32 %s116, %s117
      %s119 = ssub.s32 %s23, %s32
      %s120 = sor.u32 %s118, %s119
      %p121 = scmp.eq.s32.totalorder %s120, 0
      %s123 = sadd.s32 %s122, 1
      %s124 = scalar_select %p121, %s122, %s123
      %p127 = pneg %p121
      %p128 = scmp.eq.s32.totalorder %s14, 2
      %p129 = por %p127, %p128
      %p130 = scmp.ne.s32.totalorder %s122, %s125
      %p131 = scmp.eq.s32.totalorder %s14, 0
      %p132 = por %p130, %p131
      %p133 = scmp.ne.s32.totalorder %s122, %s125
      %p134 = scmp.eq.s32.totalorder %s19, 2
      %p135 = por %p133, %p134
      %p136 = scmp.ne.s32.totalorder %s125, %s126
      %p137 = scmp.eq.s32.totalorder %s19, 0
      %p138 = por %p136, %p137
      %p139 = scmp.ne.s32.totalorder %s125, %s126
      %p140 = scmp.eq.s32.totalorder %s20, 2
      %p141 = por %p139, %p140
      %p143 = scmp.ne.s32.totalorder %s126, %s142
      %p144 = scmp.eq.s32.totalorder %s20, 0
      %p145 = por %p143, %p144
      %p146 = scmp.le.s32.totalorder 1, %s14
      %p147 = scmp.lt.s32.totalorder %s14, 4
      %p148 = pnand %p146, %p147
      %p149 = pneg %p148
      // Predicated region
      $region9: #{t5_stack_forward.9} parent=5 // pred_check
        _
      $region10: #{t5_stack_forward.9} parent=5 // pred_check_branch
        %151 = sbr.rel (%p148) target = $region12
      $region11: #{t5_stack_forward.9} parent=5 // pred_region
        %s152 = ssub.s32 %s14, 1
        // Predicated region
        $region13: #{t5_stack_forward.9} parent=11 // pred_check
          %p153 = pneg %p59
        $region14: #{t5_stack_forward.9} parent=11 // pred_check_branch
          %155 = sbr.rel (%p153) target = $region16
        $region15: #{t5_stack_forward.9} parent=11 // pred_region
          %s156 = smul.u32 2, %s24
          %s158 = ssub.s32 256, 256
          %159 = vsyncadd [#allocation4], %s158
          %s160 = smul.addr %s156, 128
          %s161 = scalar_lea.hbm %s0, %s160
          %s162 = sshll.u32 [#allocation3], 4
          %s163 = int_to_ptr.vmem [resolvable:$true] %s162
          %168 = dma.hbm_to_vmem [thread:$0]  %s161, 256, %s163, [#allocation4], 128, 128, 8
        $region16: #{t5_stack_forward.9} parent=11 // pred_fallthru
          _
        // Predicated region
        $region17: #{t5_stack_forward.9} parent=11 // pred_check
          %p169 = pneg %p80
        $region18: #{t5_stack_forward.9} parent=11 // pred_check_branch
          %171 = sbr.rel (%p169) target = $region20
        $region19: #{t5_stack_forward.9} parent=11 // pred_region
          %s173 = ssub.s32 16, 16
          %174 = vsyncadd [#allocation7], %s173
          %s176 = sshll.u32 [#allocation6], 4
          %s177 = int_to_ptr.vmem [resolvable:$true] %s176
          %179 = dma.hbm_to_vmem [thread:$0]  %s1, 16, %s177, [#allocation7]
        $region20: #{t5_stack_forward.9} parent=11 // pred_fallthru
          _
      $region12: #{t5_stack_forward.9} parent=5 // pred_fallthru
        _
      %p180 = scmp.lt.s32.totalorder %s14, 3
      // Predicated region
      $region21: #{t5_stack_forward.9} parent=5 // pred_check
        %p181 = pneg %p180
      $region22: #{t5_stack_forward.9} parent=5 // pred_check_branch
        %183 = sbr.rel (%p181) target = $region24
      $region23: #{t5_stack_forward.9} parent=5 // pred_region
        // Predicated region
        $region25: #{t5_stack_forward.9} parent=23 // pred_check
          %p184 = pneg %p102
        $region26: #{t5_stack_forward.9} parent=23 // pred_check_branch
          %186 = sbr.rel (%p184) target = $region28
        $region27: #{t5_stack_forward.9} parent=23 // pred_region
          %s187 = sand.u32 %s14, 1
          %s188 = scalar_lea.sflag [#allocation4], %s187
          %s189 = sand.u32 %s92, 1
          %s190 = smul.addr %s189, 16
          %s191 = scalar_lea.vmem [#allocation8], %s190
          %s193 = ssub.s32 256, 256
          %194 = vsyncadd %s188, %s193
          %s195 = smul.addr %s22, 4
          %s196 = sadd.s32 %s23, %s195
          %s197 = smul.addr %s196, 64
          %s198 = scalar_lea.hbm %s2, %s197
          %s199 = sshll.u32 %s191, 4
          %s200 = int_to_ptr.vmem [resolvable:$true] %s199
          %205 = dma.hbm_to_vmem [thread:$0]  %s198, 256, %s200, %s188, 64, 64, 4
        $region28: #{t5_stack_forward.9} parent=23 // pred_fallthru
          _
      $region24: #{t5_stack_forward.9} parent=5 // pred_fallthru
        _
      %p206 = scmp.le.s32.totalorder 1, %s14
      %p207 = scmp.lt.s32.totalorder %s14, 4
      %p208 = pnand %p206, %p207
      %p209 = pneg %p208
      // Predicated region
      $region29: #{t5_stack_forward.9} parent=5 // pred_check
        _
      $region30: #{t5_stack_forward.9} parent=5 // pred_check_branch
        %211 = sbr.rel (%p208) target = $region32
      $region31: #{t5_stack_forward.9} parent=5 // pred_region
        %s212 = ssub.s32 %s14, 1
        // Predicated region
        $region33: #{t5_stack_forward.9} parent=31 // pred_check
          %p213 = pneg %p59
        $region34: #{t5_stack_forward.9} parent=31 // pred_check_branch
          %215 = sbr.rel (%p213) target = $region36
        $region35: #{t5_stack_forward.9} parent=31 // pred_region
          %216 = dma.done [#allocation4], 256
        $region36: #{t5_stack_forward.9} parent=31 // pred_fallthru
          _
        // Predicated region
        $region37: #{t5_stack_forward.9} parent=31 // pred_check
          %p217 = pneg %p80
        $region38: #{t5_stack_forward.9} parent=31 // pred_check_branch
          %219 = sbr.rel (%p217) target = $region40
        $region39: #{t5_stack_forward.9} parent=31 // pred_region
          %220 = dma.done [#allocation7], 16
        $region40: #{t5_stack_forward.9} parent=31 // pred_fallthru
          _
        %s221 = sand.u32 %s19, 1
        %s222 = scalar_lea.sflag [#allocation4], %s221
        %s223 = sand.u32 %s95, 1
        %s224 = smul.addr %s223, 16
        %s225 = scalar_lea.vmem [#allocation8], %s224
        // Predicated region
        $region41: #{t5_stack_forward.9} parent=31 // pred_check
          %p226 = pneg %p108
        $region42: #{t5_stack_forward.9} parent=31 // pred_check_branch
          %228 = sbr.rel (%p226) target = $region44
        $region43: #{t5_stack_forward.9} parent=31 // pred_region
          %229 = dma.done %s222, 256
        $region44: #{t5_stack_forward.9} parent=31 // pred_fallthru
          _
        %p230 = pneg %p59
        %p231 = pneg %p56
        %p232 = pneg %p80
        %p233 = pneg %p77
        %s234 = sand.u32 %s19, 1
        %s235 = scalar_lea.sflag [#allocation4], %s234
        %s236 = sand.u32 %s95, 1
        %s237 = smul.addr %s236, 16
        %s238 = scalar_lea.vmem [#allocation8], %s237
        %p239 = pneg %p108
        %p240 = pneg %p105
        %p241 = pneg %p138
        %p242 = pneg %p135
        %s243 = sand.u32 %s125, 1
        %s244 = scalar_lea.sflag [#allocation5], %s243
        %s245 = sand.u32 %s125, 1
        %s246 = smul.addr %s245, 8
        %s247 = scalar_lea.vmem [#allocation9], %s246
        %s248 = smul.u32 2, %s24
        %s249 = smul.u32 2, %s24
        %p251 = scmp.eq.s32.totalorder %s25, 0
        %p252 = scmp.eq.s32.totalorder %s26, 0
        %p253 = pnand %p251, %p252
        %p254 = pneg %p253
        // Predicated region
        $region45: #{t5_stack_forward.9} parent=31 // pred_check
          _
        $region46: #{t5_stack_forward.9} parent=31 // pred_check_branch
          %256 = sbr.rel (%p253) target = $region48
        $region47: #{t5_stack_forward.9} parent=31 // pred_region
          %v257 = vld [vmem:[#allocation3] sm:$0xff]
          %v258 = vld [vmem:[#allocation3 + $0x8] sm:$0xff]
          %v259 = vmul.f32 %v257, %v257
          %v260 = vmul.f32 %v258, %v258
          %vm261 = vcmask 261120
          %v262 = vsel %vm261, %v259, 0.0
          %263 = vadd.xlane.f32.xlu0 %v262
          %v264 = vpop.xlane.xlu0 %263
          %v265 = vsel %vm261, %v260, 0.0
          %266 = vadd.xlane.f32.xlu0 %v265
          %v267 = vpop.xlane.xlu0 %266
          %v268 = vrcp.pop 32.0
          %v269 = vmul.f32 %v264, %v268
          %v270 = vmul.f32 %v267, %v268
          %v271 = vadd.f32 %v269, 1e-06
          %v272 = vadd.f32 %v270, 1e-06
          %v273 = vrsqrt.pop %v271
          %v274 = vrsqrt.pop %v272
          %v275 = vmul.f32 %v257, %v273
          %v276 = vmul.f32 %v258, %v274
          %v277 = vld [vmem:[#allocation6] sm:$0x1]
          %v279 = vlaneseq
          %v280 = vshrl.u32 %v279, 7
          %v281 = vsub.s32 0, %v280
          %v282 = vrot.slane %v277, %v281
          %v284 = vmul.f32 %v275, %v282
          %v285 = vmul.f32 %v276, %v282
          %v286 = vpack.c.bf16 %v285, %v284
          %287 = vst.msk [vmem:[#allocation2] sm:$0xff] %vm261, %v286
        $region48: #{t5_stack_forward.9} parent=31 // pred_fallthru
          _
        %v288 = vld [vmem:[#allocation2] sm:$0xff]
        %v289 = vld [vmem:[%s225] sm:$0xf]
        %v290 = vld [vmem:[%s225 + $0x4] sm:$0xf]
        %v291 = vld [vmem:[%s225 + $0x8] sm:$0xf]
        %v292 = vld [vmem:[%s225 + $0xc] sm:$0xf]
        %v297 = vunpack.c.l.b16 %v289
        %v298 = vunpack.c.l.b16 %v290
        %v299 = vunpack.c.l.b16 %v291
        %v300 = vunpack.c.l.b16 %v292
        %v301 = vpack.c.b16 %v298, %v297
        %v302 = vpack.c.b16 %v300, %v299
        %vm305 = vcmask 261120
        %v307 = vsel %vm305, %v288, 0
        %309 = vmatprep.subr.bf16.mxu0 0
        %310 = vmatpush1.bf16.msra.mxu0 %v301
        %311 = vmatprep.subr.bf16.mxu0 0
        %312 = vmatpush1.bf16.msra.mxu0 %v302
        %313 = vmatprep.subr.bf16.mxu0 0
        %314 = vmatpush1.bf16.msra.mxu0 0
        %315 = vmatprep.subr.bf16.mxu0 0
        %316 = vmatpush1.bf16.msra.mxu0 0
        %317 = vmatprep.subr.bf16.mxu0 0
        %318 = vmatpush1.bf16.msra.mxu0 0
        %319 = vmatprep.subr.bf16.mxu0 0
        %320 = vmatpush1.bf16.msra.mxu0 0
        %321 = vmatprep.subr.bf16.mxu0 0
        %322 = vmatpush1.bf16.msra.mxu0 0
        %323 = vmatprep.subr.bf16.mxu0 0
        %324 = vmatpush1.bf16.msra.mxu0 0
        %325 = vmatprep.subr.bf16.mxu0 0
        %326 = vmatpush1.bf16.msra.mxu0 0
        %327 = vmatprep.subr.bf16.mxu0 0
        %328 = vmatpush1.bf16.msra.mxu0 0
        %329 = vmatprep.subr.bf16.mxu0 0
        %330 = vmatpush1.bf16.msra.mxu0 0
        %331 = vmatprep.subr.bf16.mxu0 0
        %332 = vmatpush1.bf16.msra.mxu0 0
        %333 = vmatprep.subr.bf16.mxu0 0
        %334 = vmatpush1.bf16.msra.mxu0 0
        %335 = vmatprep.subr.bf16.mxu0 0
        %336 = vmatpush1.bf16.msra.mxu0 0
        %337 = vmatprep.subr.bf16.mxu0 0
        %338 = vmatpush1.bf16.msra.mxu0 0
        %339 = vmatprep.subr.bf16.mxu0 0
        %340 = vmatpush1.bf16.msra.mxu0 0
        %341 = vmatprep.mubr.bf16.mxu0 0
        %342 = vmatmul.mubr.bf16.gmra.mrb[0].mxu0 %v307
        %v343 = vpop.f32.mrb[0].mxu0
        %v344 = vadd.f32 0.0, %v343
        %v345 = vpop.f32.mrb[0].mxu0
        %v346 = vpop.f32.mrb[0].mxu0
        %v347 = vadd.f32 0.0, %v346
        %v348 = vpop.f32.mrb[0].mxu0
        %349 = vdwg.mxu0
        %v350 = vpack.c.bf16 %v347, %v344
        %v352 = vunpack.c.l.b16 %v350
        %v353 = vunpack.c.h.b16 %v350
        %v354 = vpack.c.b16 %v352, %v352
        %v355 = vpack.c.b16 %v353, %v353
        %vm358 = vcmask 257024
        %359 = vst.msk [vmem:[%s247] sm:$0xf] %vm358, %v354
        %360 = vst.msk [vmem:[%s247 + $0x4] sm:$0xf] %vm358, %v355
        %s361 = sand.u32 %s125, 1
        %s362 = scalar_lea.sflag [#allocation5], %s361
        %s363 = sand.u32 %s125, 1
        %s364 = smul.addr %s363, 8
        %s365 = scalar_lea.vmem [#allocation9], %s364
        // Predicated region
        $region49: #{t5_stack_forward.9} parent=31 // pred_check
          %p366 = pneg %p135
        $region50: #{t5_stack_forward.9} parent=31 // pred_check_branch
          %368 = sbr.rel (%p366) target = $region52
        $region51: #{t5_stack_forward.9} parent=31 // pred_region
          %s369 = smul.u32 2, %s24
          %s371 = ssub.s32 128, 128
          %372 = vsyncadd %s362, %s371
          %s373 = sadd.s32 %s26, %s369
          %s374 = smul.addr %s25, 2
          %s375 = sadd.s32 %s373, %s374
          %s376 = smul.addr %s375, 64
          %s377 = scalar_lea.hbm %s3, %s376
          %s378 = sshll.u32 %s365, 4
          %s379 = int_to_ptr.vmem [resolvable:$true] %s378
          %384 = dma.vmem_to_hbm [thread:$0]  %s379, 128, %s377, %s362, 64, 64, 4
        $region52: #{t5_stack_forward.9} parent=31 // pred_fallthru
          _
      $region32: #{t5_stack_forward.9} parent=5 // pred_fallthru
        _
      %p385 = scmp.le.s32.totalorder 2, %s14
      // Predicated region
      $region53: #{t5_stack_forward.9} parent=5 // pred_check
        %p386 = pneg %p385
      $region54: #{t5_stack_forward.9} parent=5 // pred_check_branch
        %388 = sbr.rel (%p386) target = $region56
      $region55: #{t5_stack_forward.9} parent=5 // pred_region
        %s389 = ssub.s32 %s14, 2
        // Predicated region
        $region57: #{t5_stack_forward.9} parent=55 // pred_check
          %p390 = pneg %p141
        $region58: #{t5_stack_forward.9} parent=55 // pred_check_branch
          %392 = sbr.rel (%p390) target = $region60
        $region59: #{t5_stack_forward.9} parent=55 // pred_region
          %s393 = sand.u32 %s126, 1
          %s394 = scalar_lea.sflag [#allocation5], %s393
          %s395 = sand.u32 %s126, 1
          %s396 = smul.addr %s395, 8
          %s397 = scalar_lea.vmem [#allocation9], %s396
          %398 = dma.done %s394, 128
        $region60: #{t5_stack_forward.9} parent=55 // pred_fallthru
          _
      $region56: #{t5_stack_forward.9} parent=5 // pred_fallthru
        _
    $region6: #{t5_stack_forward.9} parent=1 // loop_footer
      %s18 = sadd.s32 1, %s14
    $region7: #{t5_stack_forward.9} parent=1 // loop_footer_branch
      %13 = sbr.rel target = $region3
    $region8: #{t5_stack_forward.9} parent=1 // loop_exit
      _
    %399 = vsyncpa [#allocation4], 1
    %s400 = scalar_lea.sflag [#allocation4], 1
    %401 = vsyncpa %s400, 1
    %402 = vsyncpa [#allocation7], 1
    %403 = vsyncpa [#allocation5], 1
    %s404 = scalar_lea.sflag [#allocation5], 1
    %405 = vsyncpa %s404, 1

// kernel: t5_stack_forward.11
$region0: #{t5_stack_forward.11}
  #allocation0 [shape = 'u32[]', space=smem, size = 0x4, offset = 0x4, fixed_abs, tag = 'smem constant byte address 0x4 - core index']
  #allocation1 [shape = 'u32[144,128]{1,0:T(1,128)}', space=vmem, size = 0x12000, scoped, tag = 'internal scratch']
  #allocation2 [shape = 'f32[16,32]{1,0:T(8,128)}', space=vmem, size = 0x2000, scoped, tag = 'scratch operand']
  %s0 = inlined_call_operand.hbm [shape: bf16[16,32], index: 0, kind: input, shape index: {}]
  %s1 = inlined_call_operand.hbm [shape: bf16[32,32], index: 1, kind: input, shape index: {}]
  %s2 = inlined_call_operand.hbm [shape: f32[16,32], index: 2, kind: input, shape index: {}]
  %s3 = inlined_call_operand.hbm [shape: f32[16,32], index: 3, kind: output, shape index: {}]
  %s4 = sld [smem:[#allocation0]]
  $region42: #{t5_stack_forward.11} parent=0
    _
  %s6 = ssub.s32 1, %s4
  %s7 = scalar_select 0, %s6, %s4
  $region1: #{t5_stack_forward.11} parent=0
    #allocation3 [shape = 'u8[4096]{0}', space=vmem, size = 0x1000, scoped, tag = 'input window, operand 0, single buffered']
    #allocation4 [shape = 's32[1]{0}', space=sflag, size = 0x4, scoped, tag = 'scoped memory for t5_stack_forward.11']
    #allocation5 [shape = 's32[1]{0}', space=sflag, size = 0x4, scoped, tag = 'scoped memory for t5_stack_forward.11']
    #allocation6 [shape = 'u8[8192]{0}', space=vmem, size = 0x2000, scoped, tag = 'input window, operand 1, single buffered']
    #allocation7 [shape = 's32[1]{0}', space=sflag, size = 0x4, scoped, tag = 'scoped memory for t5_stack_forward.11']
    #allocation8 [shape = 'u8[8192]{0}', space=vmem, size = 0x2000, scoped, tag = 'input window, operand 2, single buffered']
    #allocation9 [shape = 'u8[8192]{0}', space=vmem, size = 0x2000, scoped, tag = 'output window, operand 0, single buffered']
    %8 = vsyncpa [#allocation4], 0
    %9 = vsyncpa [#allocation7], 0
    %10 = vsyncpa [#allocation5], 0
    // Predicated region
    $region2: #{t5_stack_forward.11} parent=1 // pred_check
      _
    $region3: #{t5_stack_forward.11} parent=1 // pred_check_branch
      %12 = sbr.rel (0) target = $region5
    $region4: #{t5_stack_forward.11} parent=1 // pred_region
      %s14 = ssub.s32 128, 128
      %15 = vsyncadd [#allocation4], %s14
      %s16 = sshll.u32 [#allocation3], 4
      %s17 = int_to_ptr.vmem [resolvable:$true] %s16
      %22 = dma.hbm_to_vmem [thread:$0]  %s0, 128, %s17, [#allocation4], 64, 64, 4
    $region5: #{t5_stack_forward.11} parent=1 // pred_fallthru
      _
    // Predicated region
    $region6: #{t5_stack_forward.11} parent=1 // pred_check
      _
    $region7: #{t5_stack_forward.11} parent=1 // pred_check_branch
      %24 = sbr.rel (0) target = $region9
    $region8: #{t5_stack_forward.11} parent=1 // pred_region
      %s26 = ssub.s32 256, 256
      %27 = vsyncadd [#allocation7], %s26
      %s28 = sshll.u32 [#allocation6], 4
      %s29 = int_to_ptr.vmem [resolvable:$true] %s28
      %34 = dma.hbm_to_vmem [thread:$0]  %s1, 256, %s29, [#allocation7], 64, 64, 4
    $region9: #{t5_stack_forward.11} parent=1 // pred_fallthru
      _
    // Predicated region
    $region10: #{t5_stack_forward.11} parent=1 // pred_check
      _
    $region11: #{t5_stack_forward.11} parent=1 // pred_check_branch
      %36 = sbr.rel (0) target = $region13
    $region12: #{t5_stack_forward.11} parent=1 // pred_region
      %s38 = ssub.s32 256, 256
      %39 = vsyncadd [#allocation7], %s38
      %s40 = sshll.u32 [#allocation8], 4
      %s41 = int_to_ptr.vmem [resolvable:$true] %s40
      %46 = dma.hbm_to_vmem [thread:$0]  %s2, 256, %s41, [#allocation7], 128, 128, 8
    $region13: #{t5_stack_forward.11} parent=1 // pred_fallthru
      _
    // Predicated region
    $region14: #{t5_stack_forward.11} parent=1 // pred_check
      _
    $region15: #{t5_stack_forward.11} parent=1 // pred_check_branch
      %48 = sbr.rel (0) target = $region17
    $region16: #{t5_stack_forward.11} parent=1 // pred_region
      %49 = dma.done [#allocation4], 128
    $region17: #{t5_stack_forward.11} parent=1 // pred_fallthru
      _
    // Predicated region
    $region18: #{t5_stack_forward.11} parent=1 // pred_check
      _
    $region19: #{t5_stack_forward.11} parent=1 // pred_check_branch
      %51 = sbr.rel (0) target = $region21
    $region20: #{t5_stack_forward.11} parent=1 // pred_region
      %52 = dma.done [#allocation7], 256
    $region21: #{t5_stack_forward.11} parent=1 // pred_fallthru
      _
    // Predicated region
    $region22: #{t5_stack_forward.11} parent=1 // pred_check
      _
    $region23: #{t5_stack_forward.11} parent=1 // pred_check_branch
      %54 = sbr.rel (0) target = $region25
    $region24: #{t5_stack_forward.11} parent=1 // pred_region
      %55 = dma.done [#allocation7], 256
    $region25: #{t5_stack_forward.11} parent=1 // pred_fallthru
      _
    %p57 = scmp.eq.s32.totalorder 0, 0
    // Predicated region
    $region26: #{t5_stack_forward.11} parent=1 // pred_check
      %p58 = pneg %p57
    $region27: #{t5_stack_forward.11} parent=1 // pred_check_branch
      %60 = sbr.rel (%p58) target = $region29
    $region28: #{t5_stack_forward.11} parent=1 // pred_region
      %vm61 = vcmask 261120
      %62 = vst.msk [vmem:[#allocation2] sm:$0xff] %vm61, 0.0
      %63 = vst.msk [vmem:[#allocation2 + $0x8] sm:$0xff] %vm61, 0.0
    $region29: #{t5_stack_forward.11} parent=1 // pred_fallthru
      _
    %v64 = vld [vmem:[#allocation2] sm:$0xff]
    %v65 = vld [vmem:[#allocation2 + $0x8] sm:$0xff]
    %v66 = vld [vmem:[#allocation3] sm:$0xf]
    %v67 = vld [vmem:[#allocation3 + $0x4] sm:$0xf]
    %v68 = vld [vmem:[#allocation6] sm:$0xf]
    %v69 = vld [vmem:[#allocation6 + $0x4] sm:$0xf]
    %v70 = vld [vmem:[#allocation6 + $0x8] sm:$0xf]
    %v71 = vld [vmem:[#allocation6 + $0xc] sm:$0xf]
    %v74 = vunpack.c.l.b16 %v66
    %v75 = vunpack.c.l.b16 %v67
    %v76 = vpack.c.b16 %v75, %v74
    %v81 = vunpack.c.l.b16 %v68
    %v82 = vunpack.c.l.b16 %v69
    %v83 = vunpack.c.l.b16 %v70
    %v84 = vunpack.c.l.b16 %v71
    %v85 = vpack.c.b16 %v82, %v81
    %v86 = vpack.c.b16 %v84, %v83
    %vm89 = vcmask 261120
    %v91 = vsel %vm89, %v76, 0
    %93 = vmatprep.subr.bf16.mxu0 0
    %94 = vmatpush1.bf16.msra.mxu0 %v85
    %95 = vmatprep.subr.bf16.mxu0 0
    %96 = vmatpush1.bf16.msra.mxu0 %v86
    %97 = vmatprep.subr.bf16.mxu0 0
    %98 = vmatpush1.bf16.msra.mxu0 0
    %99 = vmatprep.subr.bf16.mxu0 0
    %100 = vmatpush1.bf16.msra.mxu0 0
    %101 = vmatprep.subr.bf16.mxu0 0
    %102 = vmatpush1.bf16.msra.mxu0 0
    %103 = vmatprep.subr.bf16.mxu0 0
    %104 = vmatpush1.bf16.msra.mxu0 0
    %105 = vmatprep.subr.bf16.mxu0 0
    %106 = vmatpush1.bf16.msra.mxu0 0
    %107 = vmatprep.subr.bf16.mxu0 0
    %108 = vmatpush1.bf16.msra.mxu0 0
    %109 = vmatprep.subr.bf16.mxu0 0
    %110 = vmatpush1.bf16.msra.mxu0 0
    %111 = vmatprep.subr.bf16.mxu0 0
    %112 = vmatpush1.bf16.msra.mxu0 0
    %113 = vmatprep.subr.bf16.mxu0 0
    %114 = vmatpush1.bf16.msra.mxu0 0
    %115 = vmatprep.subr.bf16.mxu0 0
    %116 = vmatpush1.bf16.msra.mxu0 0
    %117 = vmatprep.subr.bf16.mxu0 0
    %118 = vmatpush1.bf16.msra.mxu0 0
    %119 = vmatprep.subr.bf16.mxu0 0
    %120 = vmatpush1.bf16.msra.mxu0 0
    %121 = vmatprep.subr.bf16.mxu0 0
    %122 = vmatpush1.bf16.msra.mxu0 0
    %123 = vmatprep.subr.bf16.mxu0 0
    %124 = vmatpush1.bf16.msra.mxu0 0
    %125 = vmatprep.mubr.bf16.mxu0 0
    %126 = vmatmul.mubr.bf16.gmra.mrb[0].mxu0 %v91
    %v127 = vpop.f32.mrb[0].mxu0
    %v128 = vadd.f32 0.0, %v127
    %v129 = vpop.f32.mrb[0].mxu0
    %v130 = vpop.f32.mrb[0].mxu0
    %v131 = vadd.f32 0.0, %v130
    %v132 = vpop.f32.mrb[0].mxu0
    %133 = vdwg.mxu0
    %v134 = vadd.f32 %v64, %v128
    %v135 = vadd.f32 %v65, %v131
    %136 = vst.msk [vmem:[#allocation2] sm:$0xff] %vm89, %v134
    %137 = vst.msk [vmem:[#allocation2 + $0x8] sm:$0xff] %vm89, %v135
    // Predicated region
    $region30: #{t5_stack_forward.11} parent=1 // pred_check
      %p138 = pneg %p57
    $region31: #{t5_stack_forward.11} parent=1 // pred_check_branch
      %140 = sbr.rel (%p138) target = $region33
    $region32: #{t5_stack_forward.11} parent=1 // pred_region
      %v141 = vld [vmem:[#allocation2] sm:$0xff]
      %v142 = vld [vmem:[#allocation2 + $0x8] sm:$0xff]
      %v143 = vld [vmem:[#allocation8] sm:$0xff]
      %v144 = vld [vmem:[#allocation8 + $0x8] sm:$0xff]
      %v145 = vadd.f32 %v141, %v143
      %v146 = vadd.f32 %v142, %v144
      %147 = vst.msk [vmem:[#allocation9] sm:$0xff] %vm89, %v145
      %148 = vst.msk [vmem:[#allocation9 + $0x8] sm:$0xff] %vm89, %v146
    $region33: #{t5_stack_forward.11} parent=1 // pred_fallthru
      _
    // Predicated region
    $region34: #{t5_stack_forward.11} parent=1 // pred_check
      _
    $region35: #{t5_stack_forward.11} parent=1 // pred_check_branch
      %150 = sbr.rel (0) target = $region37
    $region36: #{t5_stack_forward.11} parent=1 // pred_region
      %s152 = ssub.s32 256, 256
      %153 = vsyncadd [#allocation5], %s152
      %s154 = sshll.u32 [#allocation9], 4
      %s155 = int_to_ptr.vmem [resolvable:$true] %s154
      %160 = dma.vmem_to_hbm [thread:$0]  %s155, 256, %s3, [#allocation5], 128, 128, 8
    $region37: #{t5_stack_forward.11} parent=1 // pred_fallthru
      _
    // Predicated region
    $region38: #{t5_stack_forward.11} parent=1 // pred_check
      _
    $region39: #{t5_stack_forward.11} parent=1 // pred_check_branch
      %162 = sbr.rel (0) target = $region41
    $region40: #{t5_stack_forward.11} parent=1 // pred_region
      %163 = dma.done [#allocation5], 256
    $region41: #{t5_stack_forward.11} parent=1 // pred_fallthru
      _
    %164 = vsyncpa [#allocation4], 1
    %165 = vsyncpa [#allocation7], 1
    %166 = vsyncpa [#allocation5], 1

// kernel: t5_stack_forward.10
$region0: #{t5_stack_forward.10}
  #allocation0 [shape = 'u32[]', space=smem, size = 0x4, offset = 0x4, fixed_abs, tag = 'smem constant byte address 0x4 - core index']
  #allocation1 [shape = 'u32[144,128]{1,0:T(1,128)}', space=vmem, size = 0x12000, scoped, tag = 'internal scratch']
  #allocation2 [shape = 'f32[4,8,1]{2,1,0:T(8,128)}', space=vmem, size = 0x4000, scoped, tag = 'scratch operand']
  #allocation3 [shape = 'f32[4,8,1]{2,1,0:T(8,128)}', space=vmem, size = 0x4000, scoped, tag = 'scratch operand']
  #allocation4 [shape = 'f32[4,8,8]{2,1,0:T(8,128)}', space=vmem, size = 0x4000, scoped, tag = 'scratch operand']
  %s0 = inlined_call_operand.hbm [shape: bf16[3,2,8,32], index: 0, kind: input, shape index: {}, may-alias: {0,1,2}]
  %s1 = inlined_call_operand.hbm [shape: bf16[3,2,8,32], index: 1, kind: input, shape index: {}, may-alias: {0,1,2}]
  %s2 = inlined_call_operand.hbm [shape: bf16[3,2,8,32], index: 2, kind: input, shape index: {}, may-alias: {0,1,2}]
  %s3 = inlined_call_operand.hbm [shape: f32[1,4,8,8], index: 3, kind: input, shape index: {}]
  %s4 = inlined_call_operand.hbm [shape: f32[2,1,8], index: 4, kind: input, shape index: {}]
  %s5 = inlined_call_operand.hbm [shape: bf16[2,8,32], index: 5, kind: output, shape index: {}]
  %s6 = sld [smem:[#allocation0]]
  $region81: #{t5_stack_forward.10} parent=0
    _
  %s8 = ssub.s32 1, %s6
  %s9 = scalar_select 0, %s8, %s6
  $region1: #{t5_stack_forward.10} parent=0
    #allocation5 [shape = 'u8[4096]{0}', space=vmem, size = 0x1000, scoped, tag = 'input window, operand 0']
    #allocation6 [shape = 's32[2]{0}', space=sflag, size = 0x8, scoped, tag = 'scoped memory for t5_stack_forward.10']
    #allocation7 [shape = 's32[2]{0}', space=sflag, size = 0x8, scoped, tag = 'scoped memory for t5_stack_forward.10']
    #allocation8 [shape = 'u8[4096]{0}', space=vmem, size = 0x1000, scoped, tag = 'input window, operand 1']
    #allocation9 [shape = 's32[2]{0}', space=sflag, size = 0x8, scoped, tag = 'scoped memory for t5_stack_forward.10']
    #allocation10 [shape = 'u8[4096]{0}', space=vmem, size = 0x1000, scoped, tag = 'input window, operand 2']
    #allocation11 [shape = 'u8[16384]{0}', space=vmem, size = 0x4000, scoped, tag = 'input window, operand 3, single buffered']
    #allocation12 [shape = 's32[1]{0}', space=sflag, size = 0x4, scoped, tag = 'scoped memory for t5_stack_forward.10']
    #allocation13 [shape = 'u8[1024]{0}', space=vmem, size = 0x400, scoped, tag = 'input window, operand 4']
    #allocation14 [shape = 'u8[4096]{0}', space=vmem, size = 0x1000, scoped, tag = 'output window, operand 0']
    %10 = vsyncpa [#allocation6], 0
    %s11 = scalar_lea.sflag [#allocation6], 1
    %12 = vsyncpa %s11, 0
    %13 = vsyncpa [#allocation9], 0
    %s14 = scalar_lea.sflag [#allocation9], 1
    %15 = vsyncpa %s14, 0
    %16 = vsyncpa [#allocation12], 0
    %17 = vsyncpa [#allocation7], 0
    %s18 = scalar_lea.sflag [#allocation7], 1
    %19 = vsyncpa %s18, 0
    loop: start=0, step=1, limit=4
    $region2: #{t5_stack_forward.10} parent=1 // loop_pre_header
      _
    $region3: #{t5_stack_forward.10} parent=1 // loop_header
      %s21 = sphi 0, %s25
      %p22 = scmp.ge.s32.totalorder %s21, 4
      %s28 = sphi 0, %s47
      %s29 = sphi 0, %s43
      %s30 = sphi 0, %s39
      %s31 = sphi 0, %s28
      %s32 = sphi 0, %s29
      %s33 = sphi 0, %s30
      %s34 = sphi 0, %s31
      %s35 = sphi 0, %s32
      %s36 = sphi 0, %s33
      %s52 = sphi 0, %s54
      %s55 = sphi 0, %s52
      %s56 = sphi 0, %s55
      %s72 = sphi 0, %s56
      %s80 = sphi 0, %s82
      %s83 = sphi 0, %s80
      %s84 = sphi 0, %s83
      %s100 = sphi 0, %s84
      %s108 = sphi 0, %s110
      %s111 = sphi 0, %s108
      %s112 = sphi 0, %s111
      %s128 = sphi 0, %s112
      %s136 = sphi 0, %s138
      %s139 = sphi 0, %s136
      %s140 = sphi 0, %s139
      %s156 = sphi 0, %s140
      %s164 = sphi 0, %s166
      %s167 = sphi 0, %s164
      %s168 = sphi 0, %s167
      %s184 = sphi 0, %s168
      %s192 = sphi 0, %s194
      %s195 = sphi 0, %s192
      %s196 = sphi 0, %s195
      %s212 = sphi 0, %s196
    $region4: #{t5_stack_forward.10} parent=1 // loop_header_branch
      %24 = sbr.rel (%p22) target = $region8
    $region5: #{t5_stack_forward.10} parent=1 // loop_body
      %s26 = ssub.s32 %s21, 1
      %s27 = ssub.s32 %s21, 2
      %s37 = sadd.s32 1, %s30
      %p38 = scmp.ge.s32.totalorder %s37, 1
      %s39 = scalar_select %p38, 0, %s37
      %s40 = sadd.s32 1, %s29
      %s41 = scalar_select %p38, %s40, %s29
      %p42 = scmp.ge.s32.totalorder %s41, 1
      %s43 = scalar_select %p42, 0, %s41
      %s44 = sadd.s32 1, %s28
      %s45 = scalar_select %p42, %s44, %s28
      %p46 = scmp.ge.s32.totalorder %s45, 2
      %s47 = scalar_select %p46, 0, %s45
      %s48 = ssub.s32 %s28, %s47
      %s49 = ssub.s32 %s29, %s43
      %s50 = sor.u32 %s48, %s49
      %p51 = scmp.eq.s32.totalorder %s50, 0
      %s53 = sadd.s32 %s52, 1
      %s54 = scalar_select %p51, %s52, %s53
      %p57 = pneg %p51
      %p58 = scmp.eq.s32.totalorder %s21, 1
      %p59 = por %p57, %p58
      %p60 = scmp.ne.s32.totalorder %s52, %s55
      %p61 = scmp.eq.s32.totalorder %s21, 0
      %p62 = por %p60, %p61
      %p63 = scmp.ne.s32.totalorder %s52, %s55
      %p64 = scmp.eq.s32.totalorder %s26, 1
      %p65 = por %p63, %p64
      %p66 = scmp.ne.s32.totalorder %s55, %s56
      %p67 = scmp.eq.s32.totalorder %s26, 0
      %p68 = por %p66, %p67
      %p69 = scmp.ne.s32.totalorder %s55, %s56
      %p70 = scmp.eq.s32.totalorder %s27, 1
      %p71 = por %p69, %p70
      %p73 = scmp.ne.s32.totalorder %s56, %s72
      %p74 = scmp.eq.s32.totalorder %s27, 0
      %p75 = por %p73, %p74
      %s76 = ssub.s32 %s28, %s47
      %s77 = ssub.s32 %s30, %s39
      %s78 = sor.u32 %s76, %s77
      %p79 = scmp.eq.s32.totalorder %s78, 0
      %s81 = sadd.s32 %s80, 1
      %s82 = scalar_select %p79, %s80, %s81
      %p85 = pneg %p79
      %p86 = scmp.eq.s32.totalorder %s21, 1
      %p87 = por %p85, %p86
      %p88 = scmp.ne.s32.totalorder %s80, %s83
      %p89 = scmp.eq.s32.totalorder %s21, 0
      %p90 = por %p88, %p89
      %p91 = scmp.ne.s32.totalorder %s80, %s83
      %p92 = scmp.eq.s32.totalorder %s26, 1
      %p93 = por %p91, %p92
      %p94 = scmp.ne.s32.totalorder %s83, %s84
      %p95 = scmp.eq.s32.totalorder %s26, 0
      %p96 = por %p94, %p95
      %p97 = scmp.ne.s32.totalorder %s83, %s84
      %p98 = scmp.eq.s32.totalorder %s27, 1
      %p99 = por %p97, %p98
      %p101 = scmp.ne.s32.totalorder %s84, %s100
      %p102 = scmp.eq.s32.totalorder %s27, 0
      %p103 = por %p101, %p102
      %s104 = ssub.s32 %s28, %s47
      %s105 = ssub.s32 %s30, %s39
      %s106 = sor.u32 %s104, %s105
      %p107 = scmp.eq.s32.totalorder %s106, 0
      %s109 = sadd.s32 %s108, 1
      %s110 = scalar_select %p107, %s108, %s109
      %p113 = pneg %p107
      %p114 = scmp.eq.s32.totalorder %s21, 1
      %p115 = por %p113, %p114
      %p116 = scmp.ne.s32.totalorder %s108, %s111
      %p117 = scmp.eq.s32.totalorder %s21, 0
      %p118 = por %p116, %p117
      %p119 = scmp.ne.s32.totalorder %s108, %s111
      %p120 = scmp.eq.s32.totalorder %s26, 1
      %p121 = por %p119, %p120
      %p122 = scmp.ne.s32.totalorder %s111, %s112
      %p123 = scmp.eq.s32.totalorder %s26, 0
      %p124 = por %p122, %p123
      %p125 = scmp.ne.s32.totalorder %s111, %s112
      %p126 = scmp.eq.s32.totalorder %s27, 1
      %p127 = por %p125, %p126
      %p129 = scmp.ne.s32.totalorder %s112, %s128
      %p130 = scmp.eq.s32.totalorder %s27, 0
      %p131 = por %p129, %p130
      %s132 = ssub.s32 %s29, %s43
      %s133 = ssub.s32 %s30, %s39
      %s134 = sor.u32 %s132, %s133
      %p135 = scmp.eq.s32.totalorder %s134, 0
      %s137 = sadd.s32 %s136, 1
      %s138 = scalar_select %p135, %s136, %s137
      %p141 = pneg %p135
      %p142 = scmp.eq.s32.totalorder %s21, 1
      %p143 = por %p141, %p142
      %p144 = scmp.ne.s32.totalorder %s136, %s139
      %p145 = scmp.eq.s32.totalorder %s21, 0
      %p146 = por %p144, %p145
      %p147 = scmp.ne.s32.totalorder %s136, %s139
      %p148 = scmp.eq.s32.totalorder %s26, 1
      %p149 = por %p147, %p148
      %p150 = scmp.ne.s32.totalorder %s139, %s140
      %p151 = scmp.eq.s32.totalorder %s26, 0
      %p152 = por %p150, %p151
      %p153 = scmp.ne.s32.totalorder %s139, %s140
      %p154 = scmp.eq.s32.totalorder %s27, 1
      %p155 = por %p153, %p154
      %p157 = scmp.ne.s32.totalorder %s140, %s156
      %p158 = scmp.eq.s32.totalorder %s27, 0
      %p159 = por %p157, %p158
      %s160 = ssub.s32 %s28, %s47
      %s161 = ssub.s32 %s30, %s39
      %s162 = sor.u32 %s160, %s161
      %p163 = scmp.eq.s32.totalorder %s162, 0
      %s165 = sadd.s32 %s164, 1
      %s166 = scalar_select %p163, %s164, %s165
      %p169 = pneg %p163
      %p170 = scmp.eq.s32.totalorder %s21, 1
      %p171 = por %p169, %p170
      %p172 = scmp.ne.s32.totalorder %s164, %s167
      %p173 = scmp.eq.s32.totalorder %s21, 0
      %p174 = por %p172, %p173
      %p175 = scmp.ne.s32.totalorder %s164, %s167
      %p176 = scmp.eq.s32.totalorder %s26, 1
      %p177 = por %p175, %p176
      %p178 = scmp.ne.s32.totalorder %s167, %s168
      %p179 = scmp.eq.s32.totalorder %s26, 0
      %p180 = por %p178, %p179
      %p181 = scmp.ne.s32.totalorder %s167, %s168
      %p182 = scmp.eq.s32.totalorder %s27, 1
      %p183 = por %p181, %p182
      %p185 = scmp.ne.s32.totalorder %s168, %s184
      %p186 = scmp.eq.s32.totalorder %s27, 0
      %p187 = por %p185, %p186
      %s188 = ssub.s32 %s28, %s47
      %s189 = ssub.s32 %s29, %s43
      %s190 = sor.u32 %s188, %s189
      %p191 = scmp.eq.s32.totalorder %s190, 0
      %s193 = sadd.s32 %s192, 1
      %s194 = scalar_select %p191, %s192, %s193
      %p197 = pneg %p191
      %p198 = scmp.eq.s32.totalorder %s21, 1
      %p199 = por %p197, %p198
      %p200 = scmp.ne.s32.totalorder %s192, %s195
      %p201 = scmp.eq.s32.totalorder %s21, 0
      %p202 = por %p200, %p201
      %p203 = scmp.ne.s32.totalorder %s192, %s195
      %p204 = scmp.eq.s32.totalorder %s26, 1
      %p205 = por %p203, %p204
      %p206 = scmp.ne.s32.totalorder %s195, %s196
      %p207 = scmp.eq.s32.totalorder %s26, 0
      %p208 = por %p206, %p207
      %p209 = scmp.ne.s32.totalorder %s195, %s196
      %p210 = scmp.eq.s32.totalorder %s27, 1
      %p211 = por %p209, %p210
      %p213 = scmp.ne.s32.totalorder %s196, %s212
      %p214 = scmp.eq.s32.totalorder %s27, 0
      %p215 = por %p213, %p214
      %p216 = scmp.le.s32.totalorder 1, %s21
      %p217 = scmp.lt.s32.totalorder %s21, 3
      %p218 = pnand %p216, %p217
      %p219 = pneg %p218
      // Predicated region
      $region9: #{t5_stack_forward.10} parent=5 // pred_check
        _
      $region10: #{t5_stack_forward.10} parent=5 // pred_check_branch
        %221 = sbr.rel (%p218) target = $region12
      $region11: #{t5_stack_forward.10} parent=5 // pred_region
        %s222 = ssub.s32 %s21, 1
        // Predicated region
        $region13: #{t5_stack_forward.10} parent=11 // pred_check
          %p223 = pneg %p152
        $region14: #{t5_stack_forward.10} parent=11 // pred_check_branch
          %225 = sbr.rel (%p223) target = $region16
        $region15: #{t5_stack_forward.10} parent=11 // pred_region
          %s227 = ssub.s32 512, 512
          %228 = vsyncadd [#allocation12], %s227
          %s229 = sadd.s32 %s33, %s32
          %s230 = smul.addr %s229, 128
          %s231 = scalar_lea.hbm %s3, %s230
          %s232 = sshll.u32 [#allocation11], 4
          %s233 = int_to_ptr.vmem [resolvable:$true] %s232
          %238 = dma.hbm_to_vmem [thread:$0]  %s231, 512, %s233, [#allocation12], 128, 128, 8
        $region16: #{t5_stack_forward.10} parent=11 // pred_fallthru
          _
      $region12: #{t5_stack_forward.10} parent=5 // pred_fallthru
        _
      %p239 = scmp.lt.s32.totalorder %s21, 2
      // Predicated region
      $region17: #{t5_stack_forward.10} parent=5 // pred_check
        %p240 = pneg %p239
      $region18: #{t5_stack_forward.10} parent=5 // pred_check_branch
        %242 = sbr.rel (%p240) target = $region20
      $region19: #{t5_stack_forward.10} parent=5 // pred_region
        // Predicated region
        $region21: #{t5_stack_forward.10} parent=19 // pred_check
          %p243 = pneg %p62
        $region22: #{t5_stack_forward.10} parent=19 // pred_check_branch
          %245 = sbr.rel (%p243) target = $region24
        $region23: #{t5_stack_forward.10} parent=19 // pred_region
          %s246 = sand.u32 %s21, 1
          %s247 = scalar_lea.sflag [#allocation6], %s246
          %s248 = sand.u32 %s52, 1
          %s249 = smul.addr %s248, 4
          %s250 = scalar_lea.vmem [#allocation5], %s249
          %s252 = ssub.s32 64, 64
          %253 = vsyncadd %s247, %s252
          %s254 = sadd.s32 %s29, %s28
          %s255 = smul.addr %s254, 64
          %s256 = scalar_lea.hbm %s0, %s255
          %s258 = sshll.u32 %s250, 4
          %s259 = int_to_ptr.vmem [resolvable:$true] %s258
          %261 = dma.hbm_to_vmem [thread:$0]  %s256, 64, %s259, %s247
        $region24: #{t5_stack_forward.10} parent=19 // pred_fallthru
          _
        // Predicated region
        $region25: #{t5_stack_forward.10} parent=19 // pred_check
          %p262 = pneg %p90
        $region26: #{t5_stack_forward.10} parent=19 // pred_check_branch
          %264 = sbr.rel (%p262) target = $region28
        $region27: #{t5_stack_forward.10} parent=19 // pred_region
          %s265 = sand.u32 %s21, 1
          %s266 = scalar_lea.sflag [#allocation9], %s265
          %s267 = sand.u32 %s80, 1
          %s268 = smul.addr %s267, 4
          %s269 = scalar_lea.vmem [#allocation8], %s268
          %s271 = ssub.s32 64, 64
          %272 = vsyncadd %s266, %s271
          %s273 = sadd.s32 %s30, %s28
          %s274 = sadd.s32 %s273, 2
          %s275 = smul.addr %s274, 64
          %s276 = scalar_lea.hbm %s1, %s275
          %s278 = sshll.u32 %s269, 4
          %s279 = int_to_ptr.vmem [resolvable:$true] %s278
          %281 = dma.hbm_to_vmem [thread:$0]  %s276, 64, %s279, %s266
        $region28: #{t5_stack_forward.10} parent=19 // pred_fallthru
          _
        // Predicated region
        $region29: #{t5_stack_forward.10} parent=19 // pred_check
          %p282 = pneg %p118
        $region30: #{t5_stack_forward.10} parent=19 // pred_check_branch
          %284 = sbr.rel (%p282) target = $region32
        $region31: #{t5_stack_forward.10} parent=19 // pred_region
          %s285 = sand.u32 %s21, 1
          %s286 = scalar_lea.sflag [#allocation9], %s285
          %s287 = sand.u32 %s108, 1
          %s288 = smul.addr %s287, 4
          %s289 = scalar_lea.vmem [#allocation10], %s288
          %s291 = ssub.s32 64, 64
          %292 = vsyncadd %s286, %s291
          %s293 = sadd.s32 %s30, %s28
          %s294 = sadd.s32 %s293, 4
          %s295 = smul.addr %s294, 64
          %s296 = scalar_lea.hbm %s2, %s295
          %s298 = sshll.u32 %s289, 4
          %s299 = int_to_ptr.vmem [resolvable:$true] %s298
          %301 = dma.hbm_to_vmem [thread:$0]  %s296, 64, %s299, %s286
        $region32: #{t5_stack_forward.10} parent=19 // pred_fallthru
          _
        // Predicated region
        $region33: #{t5_stack_forward.10} parent=19 // pred_check
          %p302 = pneg %p174
        $region34: #{t5_stack_forward.10} parent=19 // pred_check_branch
          %304 = sbr.rel (%p302) target = $region36
        $region35: #{t5_stack_forward.10} parent=19 // pred_region
          %s305 = sand.u32 %s21, 1
          %s306 = scalar_lea.sflag [#allocation6], %s305
          %s307 = sand.u32 %s164, 1
          %s308 = scalar_lea.vmem [#allocation13], %s307
          %s310 = ssub.s32 16, 16
          %311 = vsyncadd %s306, %s310
          %s312 = sadd.s32 %s30, %s28
          %s313 = smul.addr %s312, 16
          %s314 = scalar_lea.hbm %s4, %s313
          %s316 = sshll.u32 %s308, 4
          %s317 = int_to_ptr.vmem [resolvable:$true] %s316
          %319 = dma.hbm_to_vmem [thread:$0]  %s314, 16, %s317, %s306
        $region36: #{t5_stack_forward.10} parent=19 // pred_fallthru
          _
      $region20: #{t5_stack_forward.10} parent=5 // pred_fallthru
        _
      %p320 = scmp.le.s32.totalorder 1, %s21
      %p321 = scmp.lt.s32.totalorder %s21, 3
      %p322 = pnand %p320, %p321
      %p323 = pneg %p322
      // Predicated region
      $region37: #{t5_stack_forward.10} parent=5 // pred_check
        _
      $region38: #{t5_stack_forward.10} parent=5 // pred_check_branch
        %325 = sbr.rel (%p322) target = $region40
      $region39: #{t5_stack_forward.10} parent=5 // pred_region
        %s326 = ssub.s32 %s21, 1
        %s327 = sand.u32 %s26, 1
        %s328 = scalar_lea.sflag [#allocation6], %s327
        %s329 = sand.u32 %s55, 1
        %s330 = smul.addr %s329, 4
        %s331 = scalar_lea.vmem [#allocation5], %s330
        // Predicated region
        $region41: #{t5_stack_forward.10} parent=39 // pred_check
          %p332 = pneg %p68
        $region42: #{t5_stack_forward.10} parent=39 // pred_check_branch
          %334 = sbr.rel (%p332) target = $region44
        $region43: #{t5_stack_forward.10} parent=39 // pred_region
          %335 = dma.done %s328, 64
        $region44: #{t5_stack_forward.10} parent=39 // pred_fallthru
          _
        %s336 = sand.u32 %s26, 1
        %s337 = scalar_lea.sflag [#allocation9], %s336
        %s338 = sand.u32 %s83, 1
        %s339 = smul.addr %s338, 4
        %s340 = scalar_lea.vmem [#allocation8], %s339
        // Predicated region
        $region45: #{t5_stack_forward.10} parent=39 // pred_check
          %p341 = pneg %p96
        $region46: #{t5_stack_forward.10} parent=39 // pred_check_branch
          %343 = sbr.rel (%p341) target = $region48
        $region47: #{t5_stack_forward.10} parent=39 // pred_region
          %344 = dma.done %s337, 64
        $region48: #{t5_stack_forward.10} parent=39 // pred_fallthru
          _
        %s345 = sand.u32 %s26, 1
        %s346 = scalar_lea.sflag [#allocation9], %s345
        %s347 = sand.u32 %s111, 1
        %s348 = smul.addr %s347, 4
        %s349 = scalar_lea.vmem [#allocation10], %s348
        // Predicated region
        $region49: #{t5_stack_forward.10} parent=39 // pred_check
          %p350 = pneg %p124
        $region50: #{t5_stack_forward.10} parent=39 // pred_check_branch
          %352 = sbr.rel (%p350) target = $region52
        $region51: #{t5_stack_forward.10} parent=39 // pred_region
          %353 = dma.done %s346, 64
        $region52: #{t5_stack_forward.10} parent=39 // pred_fallthru
          _
        // Predicated region
        $region53: #{t5_stack_forward.10} parent=39 // pred_check
          %p354 = pneg %p152
        $region54: #{t5_stack_forward.10} parent=39 // pred_check_branch
          %356 = sbr.rel (%p354) target = $region56
        $region55: #{t5_stack_forward.10} parent=39 // pred_region
          %357 = dma.done [#allocation12], 512
        $region56: #{t5_stack_forward.10} parent=39 // pred_fallthru
          _
        %s358 = sand.u32 %s26, 1
        %s359 = scalar_lea.sflag [#allocation6], %s358
        %s360 = sand.u32 %s167, 1
        %s361 = scalar_lea.vmem [#allocation13], %s360
        // Predicated region
        $region57: #{t5_stack_forward.10} parent=39 // pred_check
          %p362 = pneg %p180
        $region58: #{t5_stack_forward.10} parent=39 // pred_check_branch
          %364 = sbr.rel (%p362) target = $region60
        $region59: #{t5_stack_forward.10} parent=39 // pred_region
          %365 = dma.done %s359, 16
        $region60: #{t5_stack_forward.10} parent=39 // pred_fallthru
          _
        %s366 = sand.u32 %s26, 1
        %s367 = scalar_lea.sflag [#allocation6], %s366
        %s368 = sand.u32 %s55, 1
        %s369 = smul.addr %s368, 4
        %s370 = scalar_lea.vmem [#allocation5], %s369
        %p371 = pneg %p68
        %p372 = pneg %p65
        %s373 = sand.u32 %s26, 1
        %s374 = scalar_lea.sflag [#allocation9], %s373
        %s375 = sand.u32 %s83, 1
        %s376 = smul.addr %s375, 4
        %s377 = scalar_lea.vmem [#allocation8], %s376
        %p378 = pneg %p96
        %p379 = pneg %p93
        %s380 = sand.u32 %s26, 1
        %s381 = scalar_lea.sflag [#allocation9], %s380
        %s382 = sand.u32 %s111, 1
        %s383 = smul.addr %s382, 4
        %s384 = scalar_lea.vmem [#allocation10], %s383
        %p385 = pneg %p124
        %p386 = pneg %p121
        %p387 = pneg %p152
        %p388 = pneg %p149
        %s389 = sand.u32 %s26, 1
        %s390 = scalar_lea.sflag [#allocation6], %s389
        %s391 = sand.u32 %s167, 1
        %s392 = scalar_lea.vmem [#allocation13], %s391
        %p393 = pneg %p180
        %p394 = pneg %p177
        %p395 = pneg %p208
        %p396 = pneg %p205
        %s397 = sand.u32 %s195, 1
        %s398 = scalar_lea.sflag [#allocation7], %s397
        %s399 = sand.u32 %s195, 1
        %s400 = smul.addr %s399, 4
        %s401 = scalar_lea.vmem [#allocation14], %s400
        %p403 = scmp.eq.s32.totalorder %s33, 0
        // Predicated region
        $region61: #{t5_stack_forward.10} parent=39 // pred_check
          %p404 = pneg %p403
        $region62: #{t5_stack_forward.10} parent=39 // pred_check_branch
          %406 = sbr.rel (%p404) target = $region64
        $region63: #{t5_stack_forward.10} parent=39 // pred_region
          %vm407 = vcmask 7168
          %408 = vst.msk [vmem:[#allocation2] sm:$0xff] %vm407, -inf
          %409 = vst.msk [vmem:[#allocation2 + $0x8] sm:$0xff] %vm407, -inf
          %410 = vst.msk [vmem:[#allocation2 + $0x10] sm:$0xff] %vm407, -inf
          %411 = vst.msk [vmem:[#allocation2 + $0x18] sm:$0xff] %vm407, -inf
          %412 = vst.msk [vmem:[#allocation3] sm:$0xff] %vm407, 0.0
          %413 = vst.msk [vmem:[#allocation3 + $0x8] sm:$0xff] %vm407, 0.0
          %414 = vst.msk [vmem:[#allocation3 + $0x10] sm:$0xff] %vm407, 0.0
          %415 = vst.msk [vmem:[#allocation3 + $0x18] sm:$0xff] %vm407, 0.0
          %vm416 = vcmask 64512
          %417 = vst.msk [vmem:[#allocation4] sm:$0xff] %vm416, 0.0
          %418 = vst.msk [vmem:[#allocation4 + $0x8] sm:$0xff] %vm416, 0.0
          %419 = vst.msk [vmem:[#allocation4 + $0x10] sm:$0xff] %vm416, 0.0
          %420 = vst.msk [vmem:[#allocation4 + $0x18] sm:$0xff] %vm416, 0.0
        $region64: #{t5_stack_forward.10} parent=39 // pred_fallthru
          _
        %v421 = vld [vmem:[%s331] sm:$0xf]
        %v422 = vld [vmem:[%s340] sm:$0xf]
        %v423 = vld [vmem:[%s349] sm:$0xf]
        %v424 = vld [vmem:[%s361] sm:$0x1]
        %v425 = vld [vmem:[#allocation11] sm:$0xff]
        %vm426 = vcmask 64512
        %v428 = vsel %vm426, %v421, 0
        %v431 = vsel %vm426, %v422, 0
        %433 = vmatprep.subr.bf16.mxu0 0
        %434 = vmatpush1.bf16.xpose.msra.mxu0 %v431
        %435 = vmatprep.subr.bf16.mxu0 0
        %436 = vmatpush1.bf16.xpose.msra.mxu0 0
        %437 = vmatprep.subr.bf16.mxu0 0
        %438 = vmatpush1.bf16.xpose.msra.mxu0 0
        %439 = vmatprep.subr.bf16.mxu0 0
        %440 = vmatpush1.bf16.xpose.msra.mxu0 0
        %441 = vmatprep.subr.bf16.mxu0 0
        %442 = vmatpush1.bf16.xpose.msra.mxu0 0
        %443 = vmatprep.subr.bf16.mxu0 0
        %444 = vmatpush1.bf16.xpose.msra.mxu0 0
        %445 = vmatprep.subr.bf16.mxu0 0
        %446 = vmatpush1.bf16.xpose.msra.mxu0 0
        %447 = vmatprep.subr.bf16.mxu0 0
        %448 = vmatpush1.bf16.xpose.msra.mxu0 0
        %449 = vmatprep.subr.bf16.mxu0 0
        %450 = vmatpush1.bf16.xpose.msra.mxu0 0
        %451 = vmatprep.subr.bf16.mxu0 0
        %452 = vmatpush1.bf16.xpose.msra.mxu0 0
        %453 = vmatprep.subr.bf16.mxu0 0
        %454 = vmatpush1.bf16.xpose.msra.mxu0 0
        %455 = vmatprep.subr.bf16.mxu0 0
        %456 = vmatpush1.bf16.xpose.msra.mxu0 0
        %457 = vmatprep.subr.bf16.mxu0 0
        %458 = vmatpush1.bf16.xpose.msra.mxu0 0
        %459 = vmatprep.subr.bf16.mxu0 0
        %460 = vmatpush1.bf16.xpose.msra.mxu0 0
        %461 = vmatprep.subr.bf16.mxu0 0
        %462 = vmatpush1.bf16.xpose.msra.mxu0 0
        %463 = vmatprep.subr.bf16.mxu0 0
        %464 = vmatpush1.bf16.xpose.msra.mxu0 0
        %465 = vmatprep.mubr.bf16.mxu0 0
        %466 = vmatmul.mubr.bf16.gmra.mrb[0].mxu0 %v428
        %v467 = vpop.f32.mrb[0].mxu0
        %v468 = vadd.f32 %v425, %v467
        %v469 = vpop.f32.mrb[0].mxu0
        %v470 = vpop.f32.mrb[0].mxu0
        %v471 = vpop.f32.mrb[0].mxu0
        %472 = vdwg.mxu0
        %v474 = vlaneseq
        %v475 = vshrl.u32 %v474, 7
        %v476 = vsub.s32 0, %v475
        %v477 = vrot.slane %v424, %v476
        %v479 = vadd.f32 %v468, %v477
        %v480 = vld [vmem:[#allocation2] sm:$0xff]
        %v481 = vsel %vm426, %v479, -inf
        %482 = vmax.xlane.f32.xlu0 %v481
        %v483 = vpop.xlane.xlu0 %482
        %v484 = vmax.f32 %v480, %v483
        %v485 = vsub.f32 %v480, %v484
        %v486 = vmul.f32 %v485, 1.442695
        %v487 = vpow.pop %v486
        %489 = vset.pattern.permute.xlu0 0
        %490 = vperm.xlu0 %489, %v484
        %v491 = vpop.permute.xlu0 %490
        %v493 = vsub.f32 %v479, %v491
        %v494 = vmul.f32 %v493, 1.442695
        %v495 = vpow.pop %v494
        %v496 = vld [vmem:[#allocation3] sm:$0xff]
        %v497 = vmul.f32 %v487, %v496
        %v498 = vsel %vm426, %v495, 0.0
        %499 = vadd.xlane.f32.xlu0 %v498
        %v500 = vpop.xlane.xlu0 %499
        %v501 = vadd.f32 %v497, %v500
        %vm502 = vcmask 7168
        %503 = vst.msk [vmem:[#allocation3] sm:$0xff] %vm502, %v501
        %v504 = vld [vmem:[#allocation4] sm:$0xff]
        %506 = vset.pattern.permute.xlu0 0
        %507 = vperm.xlu0 %506, %v487
        %v508 = vpop.permute.xlu0 %507
        %v510 = vmul.f32 %v508, %v504
        %v511 = vpack.c.bf16 %v495, %v495
        %v513 = vsel %vm426, %v511, 0
        %vm515 = vcmask 1043456
        %v517 = vsel %vm515, %v423, 0
        %519 = vmatprep.subr.bf16.mxu0 0
        %520 = vmatpush1.bf16.msra.mxu0 %v517
        %521 = vmatprep.subr.bf16.mxu0 0
        %522 = vmatpush1.bf16.msra.mxu0 0
        %523 = vmatprep.subr.bf16.mxu0 0
        %524 = vmatpush1.bf16.msra.mxu0 0
        %525 = vmatprep.subr.bf16.mxu0 0
        %526 = vmatpush1.bf16.msra.mxu0 0
        %527 = vmatprep.subr.bf16.mxu0 0
        %528 = vmatpush1.bf16.msra.mxu0 0
        %529 = vmatprep.subr.bf16.mxu0 0
        %530 = vmatpush1.bf16.msra.mxu0 0
        %531 = vmatprep.subr.bf16.mxu0 0
        %532 = vmatpush1.bf16.msra.mxu0 0
        %533 = vmatprep.subr.bf16.mxu0 0
        %534 = vmatpush1.bf16.msra.mxu0 0
        %535 = vmatprep.subr.bf16.mxu0 0
        %536 = vmatpush1.bf16.msra.mxu0 0
        %537 = vmatprep.subr.bf16.mxu0 0
        %538 = vmatpush1.bf16.msra.mxu0 0
        %539 = vmatprep.subr.bf16.mxu0 0
        %540 = vmatpush1.bf16.msra.mxu0 0
        %541 = vmatprep.subr.bf16.mxu0 0
        %542 = vmatpush1.bf16.msra.mxu0 0
        %543 = vmatprep.subr.bf16.mxu0 0
        %544 = vmatpush1.bf16.msra.mxu0 0
        %545 = vmatprep.subr.bf16.mxu0 0
        %546 = vmatpush1.bf16.msra.mxu0 0
        %547 = vmatprep.subr.bf16.mxu0 0
        %548 = vmatpush1.bf16.msra.mxu0 0
        %549 = vmatprep.subr.bf16.mxu0 0
        %550 = vmatpush1.bf16.msra.mxu0 0
        %551 = vmatprep.mubr.bf16.mxu0 0
        %552 = vmatmul.mubr.bf16.gmra.mrb[0].mxu0 %v513
        %v553 = vpop.f32.mrb[0].mxu0
        %v554 = vadd.f32 0.0, %v553
        %v555 = vpop.f32.mrb[0].mxu0
        %v556 = vpop.f32.mrb[0].mxu0
        %v557 = vpop.f32.mrb[0].mxu0
        %558 = vdwg.mxu0
        %v559 = vadd.f32 %v510, %v554
        %560 = vst.msk [vmem:[#allocation4] sm:$0xff] %vm426, %v559
        %561 = vst.msk [vmem:[#allocation2] sm:$0xff] %vm502, %v484
        %s562 = scalar_lea.vmem [#allocation11], 8
        %v563 = vld [vmem:[%s562] sm:$0xff]
        %v565 = vunpack.c.l.b16 %v421
        %v566 = vpack.c.b16 %v565, %v565
        %567 = vrot.lane.b32.xlu0 %v566, 120
        %v568 = vpop.permute.xlu0 %567
        %v570 = vunpack.c.l.b16 %v422
        %v571 = vpack.c.b16 %v570, %v570
        %572 = vrot.lane.b32.xlu0 %v571, 120
        %v573 = vpop.permute.xlu0 %572
        %v575 = vsel %vm426, %v568, 0
        %v578 = vsel %vm426, %v573, 0
        %580 = vmatprep.subr.bf16.mxu0 0
        %581 = vmatpush1.bf16.xpose.msra.mxu0 %v578
        %582 = vmatprep.subr.bf16.mxu0 0
        %583 = vmatpush1.bf16.xpose.msra.mxu0 0
        %584 = vmatprep.subr.bf16.mxu0 0
        %585 = vmatpush1.bf16.xpose.msra.mxu0 0
        %586 = vmatprep.subr.bf16.mxu0 0
        %587 = vmatpush1.bf16.xpose.msra.mxu0 0
        %588 = vmatprep.subr.bf16.mxu0 0
        %589 = vmatpush1.bf16.xpose.msra.mxu0 0
        %590 = vmatprep.subr.bf16.mxu0 0
        %591 = vmatpush1.bf16.xpose.msra.mxu0 0
        %592 = vmatprep.subr.bf16.mxu0 0
        %593 = vmatpush1.bf16.xpose.msra.mxu0 0
        %594 = vmatprep.subr.bf16.mxu0 0
        %595 = vmatpush1.bf16.xpose.msra.mxu0 0
        %596 = vmatprep.subr.bf16.mxu0 0
        %597 = vmatpush1.bf16.xpose.msra.mxu0 0
        %598 = vmatprep.subr.bf16.mxu0 0
        %599 = vmatpush1.bf16.xpose.msra.mxu0 0
        %600 = vmatprep.subr.bf16.mxu0 0
        %601 = vmatpush1.bf16.xpose.msra.mxu0 0
        %602 = vmatprep.subr.bf16.mxu0 0
        %603 = vmatpush1.bf16.xpose.msra.mxu0 0
        %604 = vmatprep.subr.bf16.mxu0 0
        %605 = vmatpush1.bf16.xpose.msra.mxu0 0
        %606 = vmatprep.subr.bf16.mxu0 0
        %607 = vmatpush1.bf16.xpose.msra.mxu0 0
        %608 = vmatprep.subr.bf16.mxu0 0
        %609 = vmatpush1.bf16.xpose.msra.mxu0 0
        %610 = vmatprep.subr.bf16.mxu0 0
        %611 = vmatpush1.bf16.xpose.msra.mxu0 0
        %612 = vmatprep.mubr.bf16.mxu0 0
        %613 = vmatmul.mubr.bf16.gmra.mrb[0].mxu0 %v575
        %v614 = vpop.f32.mrb[0].mxu0
        %v615 = vadd.f32 %v563, %v614
        %v616 = vpop.f32.mrb[0].mxu0
        %v617 = vpop.f32.mrb[0].mxu0
        %v618 = vpop.f32.mrb[0].mxu0
        %619 = vdwg.mxu0
        %v620 = vadd.f32 %v615, %v477
        %s621 = scalar_lea.vmem [#allocation2], 8
        %v622 = vld [vmem:[%s621] sm:$0xff]
        %v623 = vsel %vm426, %v620, -inf
        %624 = vmax.xlane.f32.xlu0 %v623
        %v625 = vpop.xlane.xlu0 %624
        %v626 = vmax.f32 %v622, %v625
        %v627 = vsub.f32 %v622, %v626
        %v628 = vmul.f32 %v627, 1.442695
        %v629 = vpow.pop %v628
        %631 = vset.pattern.permute.xlu0 0
        %632 = vperm.xlu0 %631, %v626
        %v633 = vpop.permute.xlu0 %632
        %v635 = vsub.f32 %v620, %v633
        %v636 = vmul.f32 %v635, 1.442695
        %v637 = vpow.pop %v636
        %s638 = scalar_lea.vmem [#allocation3], 8
        %v639 = vld [vmem:[%s638] sm:$0xff]
        %v640 = vmul.f32 %v629, %v639
        %v641 = vsel %vm426, %v637, 0.0
        %642 = vadd.xlane.f32.xlu0 %v641
        %v643 = vpop.xlane.xlu0 %642
        %v644 = vadd.f32 %v640, %v643
        %645 = vst.msk [vmem:[%s638] sm:$0xff] %vm502, %v644
        %s646 = scalar_lea.vmem [#allocation4], 8
        %v647 = vld [vmem:[%s646] sm:$0xff]
        %649 = vset.pattern.permute.xlu0 0
        %650 = vperm.xlu0 %649, %v629
        %v651 = vpop.permute.xlu0 %650
        %v653 = vmul.f32 %v651, %v647
        %v654 = vpack.c.bf16 %v637, %v637
        %v656 = vunpack.c.l.b16 %v423
        %v657 = vpack.c.b16 %v656, %v656
        %658 = vrot.lane.b32.xlu0 %v657, 120
        %v659 = vpop.permute.xlu0 %658
        %v661 = vsel %vm426, %v654, 0
        %v664 = vsel %vm515, %v659, 0
        %666 = vmatprep.subr.bf16.mxu0 0
        %667 = vmatpush1.bf16.msra.mxu0 %v664
        %668 = vmatprep.subr.bf16.mxu0 0
        %669 = vmatpush1.bf16.msra.mxu0 0
        %670 = vmatprep.subr.bf16.mxu0 0
        %671 = vmatpush1.bf16.msra.mxu0 0
        %672 = vmatprep.subr.bf16.mxu0 0
        %673 = vmatpush1.bf16.msra.mxu0 0
        %674 = vmatprep.subr.bf16.mxu0 0
        %675 = vmatpush1.bf16.msra.mxu0 0
        %676 = vmatprep.subr.bf16.mxu0 0
        %677 = vmatpush1.bf16.msra.mxu0 0
        %678 = vmatprep.subr.bf16.mxu0 0
        %679 = vmatpush1.bf16.msra.mxu0 0
        %680 = vmatprep.subr.bf16.mxu0 0
        %681 = vmatpush1.bf16.msra.mxu0 0
        %682 = vmatprep.subr.bf16.mxu0 0
        %683 = vmatpush1.bf16.msra.mxu0 0
        %684 = vmatprep.subr.bf16.mxu0 0
        %685 = vmatpush1.bf16.msra.mxu0 0
        %686 = vmatprep.subr.bf16.mxu0 0
        %687 = vmatpush1.bf16.msra.mxu0 0
        %688 = vmatprep.subr.bf16.mxu0 0
        %689 = vmatpush1.bf16.msra.mxu0 0
        %690 = vmatprep.subr.bf16.mxu0 0
        %691 = vmatpush1.bf16.msra.mxu0 0
        %692 = vmatprep.subr.bf16.mxu0 0
        %693 = vmatpush1.bf16.msra.mxu0 0
        %694 = vmatprep.subr.bf16.mxu0 0
        %695 = vmatpush1.bf16.msra.mxu0 0
        %696 = vmatprep.subr.bf16.mxu0 0
        %697 = vmatpush1.bf16.msra.mxu0 0
        %698 = vmatprep.mubr.bf16.mxu0 0
        %699 = vmatmul.mubr.bf16.gmra.mrb[0].mxu0 %v661
        %v700 = vpop.f32.mrb[0].mxu0
        %v701 = vadd.f32 0.0, %v700
        %v702 = vpop.f32.mrb[0].mxu0
        %v703 = vpop.f32.mrb[0].mxu0
        %v704 = vpop.f32.mrb[0].mxu0
        %705 = vdwg.mxu0
        %v706 = vadd.f32 %v653, %v701
        %707 = vst.msk [vmem:[%s646] sm:$0xff] %vm426, %v706
        %708 = vst.msk [vmem:[%s621] sm:$0xff] %vm502, %v626
        %s709 = scalar_lea.vmem [#allocation11], 16
        %v710 = vld [vmem:[%s709] sm:$0xff]
        %711 = vrot.lane.b32.xlu0 %v566, 112
        %v712 = vpop.permute.xlu0 %711
        %713 = vrot.lane.b32.xlu0 %v571, 112
        %v714 = vpop.permute.xlu0 %713
        %v716 = vsel %vm426, %v712, 0
        %v719 = vsel %vm426, %v714, 0
        %721 = vmatprep.subr.bf16.mxu0 0
        %722 = vmatpush1.bf16.xpose.msra.mxu0 %v719
        %723 = vmatprep.subr.bf16.mxu0 0
        %724 = vmatpush1.bf16.xpose.msra.mxu0 0
        %725 = vmatprep.subr.bf16.mxu0 0
        %726 = vmatpush1.bf16.xpose.msra.mxu0 0
        %727 = vmatprep.subr.bf16.mxu0 0
        %728 = vmatpush1.bf16.xpose.msra.mxu0 0
        %729 = vmatprep.subr.bf16.mxu0 0
        %730 = vmatpush1.bf16.xpose.msra.mxu0 0
        %731 = vmatprep.subr.bf16.mxu0 0
        %732 = vmatpush1.bf16.xpose.msra.mxu0 0
        %733 = vmatprep.subr.bf16.mxu0 0
        %734 = vmatpush1.bf16.xpose.msra.mxu0 0
        %735 = vmatprep.subr.bf16.mxu0 0
        %736 = vmatpush1.bf16.xpose.msra.mxu0 0
        %737 = vmatprep.subr.bf16.mxu0 0
        %738 = vmatpush1.bf16.xpose.msra.mxu0 0
        %739 = vmatprep.subr.bf16.mxu0 0
        %740 = vmatpush1.bf16.xpose.msra.mxu0 0
        %741 = vmatprep.subr.bf16.mxu0 0
        %742 = vmatpush1.bf16.xpose.msra.mxu0 0
        %743 = vmatprep.subr.bf16.mxu0 0
        %744 = vmatpush1.bf16.xpose.msra.mxu0 0
        %745 = vmatprep.subr.bf16.mxu0 0
        %746 = vmatpush1.bf16.xpose.msra.mxu0 0
        %747 = vmatprep.subr.bf16.mxu0 0
        %748 = vmatpush1.bf16.xpose.msra.mxu0 0
        %749 = vmatprep.subr.bf16.mxu0 0
        %750 = vmatpush1.bf16.xpose.msra.mxu0 0
        %751 = vmatprep.subr.bf16.mxu0 0
        %752 = vmatpush1.bf16.xpose.msra.mxu0 0
        %753 = vmatprep.mubr.bf16.mxu0 0
        %754 = vmatmul.mubr.bf16.gmra.mrb[0].mxu0 %v716
        %v755 = vpop.f32.mrb[0].mxu0
        %v756 = vadd.f32 %v710, %v755
        %v757 = vpop.f32.mrb[0].mxu0
        %v758 = vpop.f32.mrb[0].mxu0
        %v759 = vpop.f32.mrb[0].mxu0
        %760 = vdwg.mxu0
        %v761 = vadd.f32 %v756, %v477
        %s762 = scalar_lea.vmem [#allocation2], 16
        %v763 = vld [vmem:[%s762] sm:$0xff]
        %v764 = vsel %vm426, %v761, -inf
        %765 = vmax.xlane.f32.xlu0 %v764
        %v766 = vpop.xlane.xlu0 %765
        %v767 = vmax.f32 %v763, %v766
        %v768 = vsub.f32 %v763, %v767
        %v769 = vmul.f32 %v768, 1.442695
        %v770 = vpow.pop %v769
        %772 = vset.pattern.permute.xlu0 0
        %773 = vperm.xlu0 %772, %v767
        %v774 = vpop.permute.xlu0 %773
        %v776 = vsub.f32 %v761, %v774
        %v777 = vmul.f32 %v776, 1.442695
        %v778 = vpow.pop %v777
        %s779 = scalar_lea.vmem [#allocation3], 16
        %v780 = vld [vmem:[%s779] sm:$0xff]
        %v781 = vmul.f32 %v770, %v780
        %v782 = vsel %vm426, %v778, 0.0
        %783 = vadd.xlane.f32.xlu0 %v782
        %v784 = vpop.xlane.xlu0 %783
        %v785 = vadd.f32 %v781, %v784
        %786 = vst.msk [vmem:[%s779] sm:$0xff] %vm502, %v785
        %s787 = scalar_lea.vmem [#allocation4], 16
        %v788 = vld [vmem:[%s787] sm:$0xff]
        %790 = vset.pattern.permute.xlu0 0
        %791 = vperm.xlu0 %790, %v770
        %v792 = vpop.permute.xlu0 %791
        %v794 = vmul.f32 %v792, %v788
        %v795 = vpack.c.bf16 %v778, %v778
        %796 = vrot.lane.b32.xlu0 %v657, 112
        %v797 = vpop.permute.xlu0 %796
        %v799 = vsel %vm426, %v795, 0
        %v802 = vsel %vm515, %v797, 0
        %804 = vmatprep.subr.bf16.mxu0 0
        %805 = vmatpush1.bf16.msra.mxu0 %v802
        %806 = vmatprep.subr.bf16.mxu0 0
        %807 = vmatpush1.bf16.msra.mxu0 0
        %808 = vmatprep.subr.bf16.mxu0 0
        %809 = vmatpush1.bf16.msra.mxu0 0
        %810 = vmatprep.subr.bf16.mxu0 0
        %811 = vmatpush1.bf16.msra.mxu0 0
        %812 = vmatprep.subr.bf16.mxu0 0
        %813 = vmatpush1.bf16.msra.mxu0 0
        %814 = vmatprep.subr.bf16.mxu0 0
        %815 = vmatpush1.bf16.msra.mxu0 0
        %816 = vmatprep.subr.bf16.mxu0 0
        %817 = vmatpush1.bf16.msra.mxu0 0
        %818 = vmatprep.subr.bf16.mxu0 0
        %819 = vmatpush1.bf16.msra.mxu0 0
        %820 = vmatprep.subr.bf16.mxu0 0
        %821 = vmatpush1.bf16.msra.mxu0 0
        %822 = vmatprep.subr.bf16.mxu0 0
        %823 = vmatpush1.bf16.msra.mxu0 0
        %824 = vmatprep.subr.bf16.mxu0 0
        %825 = vmatpush1.bf16.msra.mxu0 0
        %826 = vmatprep.subr.bf16.mxu0 0
        %827 = vmatpush1.bf16.msra.mxu0 0
        %828 = vmatprep.subr.bf16.mxu0 0
        %829 = vmatpush1.bf16.msra.mxu0 0
        %830 = vmatprep.subr.bf16.mxu0 0
        %831 = vmatpush1.bf16.msra.mxu0 0
        %832 = vmatprep.subr.bf16.mxu0 0
        %833 = vmatpush1.bf16.msra.mxu0 0
        %834 = vmatprep.subr.bf16.mxu0 0
        %835 = vmatpush1.bf16.msra.mxu0 0
        %836 = vmatprep.mubr.bf16.mxu0 0
        %837 = vmatmul.mubr.bf16.gmra.mrb[0].mxu0 %v799
        %v838 = vpop.f32.mrb[0].mxu0
        %v839 = vadd.f32 0.0, %v838
        %v840 = vpop.f32.mrb[0].mxu0
        %v841 = vpop.f32.mrb[0].mxu0
        %v842 = vpop.f32.mrb[0].mxu0
        %843 = vdwg.mxu0
        %v844 = vadd.f32 %v794, %v839
        %845 = vst.msk [vmem:[%s787] sm:$0xff] %vm426, %v844
        %846 = vst.msk [vmem:[%s762] sm:$0xff] %vm502, %v767
        %s847 = scalar_lea.vmem [#allocation11], 24
        %v848 = vld [vmem:[%s847] sm:$0xff]
        %849 = vrot.lane.b32.xlu0 %v566, 104
        %v850 = vpop.permute.xlu0 %849
        %851 = vrot.lane.b32.xlu0 %v571, 104
        %v852 = vpop.permute.xlu0 %851
        %v854 = vsel %vm426, %v850, 0
        %v857 = vsel %vm426, %v852, 0
        %859 = vmatprep.subr.bf16.mxu0 0
        %860 = vmatpush1.bf16.xpose.msra.mxu0 %v857
        %861 = vmatprep.subr.bf16.mxu0 0
        %862 = vmatpush1.bf16.xpose.msra.mxu0 0
        %863 = vmatprep.subr.bf16.mxu0 0
        %864 = vmatpush1.bf16.xpose.msra.mxu0 0
        %865 = vmatprep.subr.bf16.mxu0 0
        %866 = vmatpush1.bf16.xpose.msra.mxu0 0
        %867 = vmatprep.subr.bf16.mxu0 0
        %868 = vmatpush1.bf16.xpose.msra.mxu0 0
        %869 = vmatprep.subr.bf16.mxu0 0
        %870 = vmatpush1.bf16.xpose.msra.mxu0 0
        %871 = vmatprep.subr.bf16.mxu0 0
        %872 = vmatpush1.bf16.xpose.msra.mxu0 0
        %873 = vmatprep.subr.bf16.mxu0 0
        %874 = vmatpush1.bf16.xpose.msra.mxu0 0
        %875 = vmatprep.subr.bf16.mxu0 0
        %876 = vmatpush1.bf16.xpose.msra.mxu0 0
        %877 = vmatprep.subr.bf16.mxu0 0
        %878 = vmatpush1.bf16.xpose.msra.mxu0 0
        %879 = vmatprep.subr.bf16.mxu0 0
        %880 = vmatpush1.bf16.xpose.msra.mxu0 0
        %881 = vmatprep.subr.bf16.mxu0 0
        %882 = vmatpush1.bf16.xpose.msra.mxu0 0
        %883 = vmatprep.subr.bf16.mxu0 0
        %884 = vmatpush1.bf16.xpose.msra.mxu0 0
        %885 = vmatprep.subr.bf16.mxu0 0
        %886 = vmatpush1.bf16.xpose.msra.mxu0 0
        %887 = vmatprep.subr.bf16.mxu0 0
        %888 = vmatpush1.bf16.xpose.msra.mxu0 0
        %889 = vmatprep.subr.bf16.mxu0 0
        %890 = vmatpush1.bf16.xpose.msra.mxu0 0
        %891 = vmatprep.mubr.bf16.mxu0 0
        %892 = vmatmul.mubr.bf16.gmra.mrb[0].mxu0 %v854
        %v893 = vpop.f32.mrb[0].mxu0
        %v894 = vadd.f32 %v848, %v893
        %v895 = vpop.f32.mrb[0].mxu0
        %v896 = vpop.f32.mrb[0].mxu0
        %v897 = vpop.f32.mrb[0].mxu0
        %898 = vdwg.mxu0
        %v899 = vadd.f32 %v894, %v477
        %s900 = scalar_lea.vmem [#allocation2], 24
        %v901 = vld [vmem:[%s900] sm:$0xff]
        %v902 = vsel %vm426, %v899, -inf
        %903 = vmax.xlane.f32.xlu0 %v902
        %v904 = vpop.xlane.xlu0 %903
        %v905 = vmax.f32 %v901, %v904
        %v906 = vsub.f32 %v901, %v905
        %v907 = vmul.f32 %v906, 1.442695
        %v908 = vpow.pop %v907
        %910 = vset.pattern.permute.xlu0 0
        %911 = vperm.xlu0 %910, %v905
        %v912 = vpop.permute.xlu0 %911
        %v914 = vsub.f32 %v899, %v912
        %v915 = vmul.f32 %v914, 1.442695
        %v916 = vpow.pop %v915
        %s917 = scalar_lea.vmem [#allocation3], 24
        %v918 = vld [vmem:[%s917] sm:$0xff]
        %v919 = vmul.f32 %v908, %v918
        %v920 = vsel %vm426, %v916, 0.0
        %921 = vadd.xlane.f32.xlu0 %v920
        %v922 = vpop.xlane.xlu0 %921
        %v923 = vadd.f32 %v919, %v922
        %924 = vst.msk [vmem:[%s917] sm:$0xff] %vm502, %v923
        %s925 = scalar_lea.vmem [#allocation4], 24
        %v926 = vld [vmem:[%s925] sm:$0xff]
        %928 = vset.pattern.permute.xlu0 0
        %929 = vperm.xlu0 %928, %v908
        %v930 = vpop.permute.xlu0 %929
        %v932 = vmul.f32 %v930, %v926
        %v933 = vpack.c.bf16 %v916, %v916
        %934 = vrot.lane.b32.xlu0 %v657, 104
        %v935 = vpop.permute.xlu0 %934
        %v937 = vsel %vm426, %v933, 0
        %v940 = vsel %vm515, %v935, 0
        %942 = vmatprep.subr.bf16.mxu0 0
        %943 = vmatpush1.bf16.msra.mxu0 %v940
        %944 = vmatprep.subr.bf16.mxu0 0
        %945 = vmatpush1.bf16.msra.mxu0 0
        %946 = vmatprep.subr.bf16.mxu0 0
        %947 = vmatpush1.bf16.msra.mxu0 0
        %948 = vmatprep.subr.bf16.mxu0 0
        %949 = vmatpush1.bf16.msra.mxu0 0
        %950 = vmatprep.subr.bf16.mxu0 0
        %951 = vmatpush1.bf16.msra.mxu0 0
        %952 = vmatprep.subr.bf16.mxu0 0
        %953 = vmatpush1.bf16.msra.mxu0 0
        %954 = vmatprep.subr.bf16.mxu0 0
        %955 = vmatpush1.bf16.msra.mxu0 0
        %956 = vmatprep.subr.bf16.mxu0 0
        %957 = vmatpush1.bf16.msra.mxu0 0
        %958 = vmatprep.subr.bf16.mxu0 0
        %959 = vmatpush1.bf16.msra.mxu0 0
        %960 = vmatprep.subr.bf16.mxu0 0
        %961 = vmatpush1.bf16.msra.mxu0 0
        %962 = vmatprep.subr.bf16.mxu0 0
        %963 = vmatpush1.bf16.msra.mxu0 0
        %964 = vmatprep.subr.bf16.mxu0 0
        %965 = vmatpush1.bf16.msra.mxu0 0
        %966 = vmatprep.subr.bf16.mxu0 0
        %967 = vmatpush1.bf16.msra.mxu0 0
        %968 = vmatprep.subr.bf16.mxu0 0
        %969 = vmatpush1.bf16.msra.mxu0 0
        %970 = vmatprep.subr.bf16.mxu0 0
        %971 = vmatpush1.bf16.msra.mxu0 0
        %972 = vmatprep.subr.bf16.mxu0 0
        %973 = vmatpush1.bf16.msra.mxu0 0
        %974 = vmatprep.mubr.bf16.mxu0 0
        %975 = vmatmul.mubr.bf16.gmra.mrb[0].mxu0 %v937
        %v976 = vpop.f32.mrb[0].mxu0
        %v977 = vadd.f32 0.0, %v976
        %v978 = vpop.f32.mrb[0].mxu0
        %v979 = vpop.f32.mrb[0].mxu0
        %v980 = vpop.f32.mrb[0].mxu0
        %981 = vdwg.mxu0
        %v982 = vadd.f32 %v932, %v977
        %983 = vst.msk [vmem:[%s925] sm:$0xff] %vm426, %v982
        %984 = vst.msk [vmem:[%s900] sm:$0xff] %vm502, %v905
        // Predicated region
        $region65: #{t5_stack_forward.10} parent=39 // pred_check
          %p985 = pneg %p403
        $region66: #{t5_stack_forward.10} parent=39 // pred_check_branch
          %987 = sbr.rel (%p985) target = $region68
        $region67: #{t5_stack_forward.10} parent=39 // pred_region
          %v988 = vld [vmem:[#allocation4] sm:$0xff]
          %v989 = vld [vmem:[#allocation3] sm:$0xff]
          %v990 = vrcp.pop %v989
          %992 = vset.pattern.permute.xlu0 0
          %993 = vperm.xlu0 %992, %v990
          %v994 = vpop.permute.xlu0 %993
          %v996 = vmul.f32 %v988, %v994
          %v997 = vld [vmem:[%s646] sm:$0xff]
          %v998 = vld [vmem:[%s638] sm:$0xff]
          %v999 = vrcp.pop %v998
          %1001 = vset.pattern.permute.xlu0 0
          %1002 = vperm.xlu0 %1001, %v999
          %v1003 = vpop.permute.xlu0 %1002
          %v1005 = vmul.f32 %v997, %v1003
          %v1006 = vld [vmem:[%s787] sm:$0xff]
          %v1007 = vld [vmem:[%s779] sm:$0xff]
          %v1008 = vrcp.pop %v1007
          %1010 = vset.pattern.permute.xlu0 0
          %1011 = vperm.xlu0 %1010, %v1008
          %v1012 = vpop.permute.xlu0 %1011
          %v1014 = vmul.f32 %v1006, %v1012
          %v1015 = vld [vmem:[%s925] sm:$0xff]
          %v1016 = vld [vmem:[%s917] sm:$0xff]
          %v1017 = vrcp.pop %v1016
          %1019 = vset.pattern.permute.xlu0 0
          %1020 = vperm.xlu0 %1019, %v1017
          %v1021 = vpop.permute.xlu0 %1020
          %v1023 = vmul.f32 %v1015, %v1021
          %1025 = vrot.lane.b32.xlu0 %v1005, 8
          %v1026 = vpop.permute.xlu0 %1025
          %1029 = vrot.lane.b32.xlu0 %v1014, 16
          %v1030 = vpop.permute.xlu0 %1029
          %1033 = vrot.lane.b32.xlu0 %v1023, 24
          %v1034 = vpop.permute.xlu0 %1033
          %v1036 = vsel %vm426, %v996, %v1026
          %vm1037 = vcmask 130048
          %v1038 = vsel %vm1037, %v1036, %v1030
          %vm1039 = vcmask 195584
          %v1040 = vsel %vm1039, %v1038, %v1034
          %v1041 = vpack.c.bf16 %v1040, %v1040
          %vm1042 = vcmask 257024
          %1043 = vst.msk [vmem:[%s401] sm:$0xf] %vm1042, %v1041
        $region68: #{t5_stack_forward.10} parent=39 // pred_fallthru
          _
        %s1044 = sand.u32 %s195, 1
        %s1045 = scalar_lea.sflag [#allocation7], %s1044
        %s1046 = sand.u32 %s195, 1
        %s1047 = smul.addr %s1046, 4
        %s1048 = scalar_lea.vmem [#allocation14], %s1047
        // Predicated region
        $region69: #{t5_stack_forward.10} parent=39 // pred_check
          %p1049 = pneg %p205
        $region70: #{t5_stack_forward.10} parent=39 // pred_check_branch
          %1051 = sbr.rel (%p1049) target = $region72
        $region71: #{t5_stack_forward.10} parent=39 // pred_region
          %s1053 = ssub.s32 64, 64
          %1054 = vsyncadd %s1045, %s1053
          %s1055 = sadd.s32 %s32, %s31
          %s1056 = smul.addr %s1055, 64
          %s1057 = scalar_lea.hbm %s5, %s1056
          %s1059 = sshll.u32 %s1048, 4
          %s1060 = int_to_ptr.vmem [resolvable:$true] %s1059
          %1062 = dma.vmem_to_hbm [thread:$0]  %s1060, 64, %s1057, %s1045
        $region72: #{t5_stack_forward.10} parent=39 // pred_fallthru
          _
      $region40: #{t5_stack_forward.10} parent=5 // pred_fallthru
        _
      %p1063 = scmp.le.s32.totalorder 2, %s21
      // Predicated region
      $region73: #{t5_stack_forward.10} parent=5 // pred_check
        %p1064 = pneg %p1063
      $region74: #{t5_stack_forward.10} parent=5 // pred_check_branch
        %1066 = sbr.rel (%p1064) target = $region76
      $region75: #{t5_stack_forward.10} parent=5 // pred_region
        %s1067 = ssub.s32 %s21, 2
        // Predicated region
        $region77: #{t5_stack_forward.10} parent=75 // pred_check
          %p1068 = pneg %p211
        $region78: #{t5_stack_forward.10} parent=75 // pred_check_branch
          %1070 = sbr.rel (%p1068) target = $region80
        $region79: #{t5_stack_forward.10} parent=75 // pred_region
          %s1071 = sand.u32 %s196, 1
          %s1072 = scalar_lea.sflag [#allocation7], %s1071
          %s1073 = sand.u32 %s196, 1
          %s1074 = smul.addr %s1073, 4
          %s1075 = scalar_lea.vmem [#allocation14], %s1074
          %1076 = dma.done %s1072, 64
        $region80: #{t5_stack_forward.10} parent=75 // pred_fallthru
          _
      $region76: #{t5_stack_forward.10} parent=5 // pred_fallthru
        _
    $region6: #{t5_stack_forward.10} parent=1 // loop_footer
      %s25 = sadd.s32 1, %s21
    $region7: #{t5_stack_forward.10} parent=1 // loop_footer_branch
      %20 = sbr.rel target = $region3
    $region8: #{t5_stack_forward.10} parent=1 // loop_exit
      _
    %1077 = vsyncpa [#allocation6], 1
    %s1078 = scalar_lea.sflag [#allocation6], 1
    %1079 = vsyncpa %s1078, 1
    %1080 = vsyncpa [#allocation9], 1
    %s1081 = scalar_lea.sflag [#allocation9], 1
    %1082 = vsyncpa %s1081, 1
    %1083 = vsyncpa [#allocation12], 1
    %1084 = vsyncpa [#allocation7], 1
    %s1085 = scalar_lea.sflag [#allocation7], 1
    %1086 = vsyncpa %s1085, 1

// kernel: t5_stack_forward.12
$region0: #{t5_stack_forward.12}
  #allocation0 [shape = 'u32[]', space=smem, size = 0x4, offset = 0x4, fixed_abs, tag = 'smem constant byte address 0x4 - core index']
  #allocation1 [shape = 'u32[144,128]{1,0:T(1,128)}', space=vmem, size = 0x12000, scoped, tag = 'internal scratch']
  #allocation2 [shape = 'f32[16,32]{1,0:T(8,128)}', space=vmem, size = 0x2000, scoped, tag = 'scratch operand']
  #allocation3 [shape = 'bf16[16,32]{1,0:T(16,128)(2,1)}', space=vmem, size = 0x1000, scoped, tag = 'scratch operand']
  %s0 = inlined_call_operand.hbm [shape: f32[16,32], index: 0, kind: input, shape index: {}]
  %s1 = inlined_call_operand.hbm [shape: f32[1,32], index: 1, kind: input, shape index: {}]
  %s2 = inlined_call_operand.hbm [shape: bf16[32,64], index: 2, kind: input, shape index: {}]
  %s3 = inlined_call_operand.hbm [shape: bf16[32,64], index: 3, kind: input, shape index: {}]
  %s4 = inlined_call_operand.hbm [shape: bf16[64,32], index: 4, kind: input, shape index: {}]
  %s5 = inlined_call_operand.hbm [shape: f32[16,32], index: 5, kind: output, shape index: {}]
  %s6 = sld [smem:[#allocation0]]
  $region58: #{t5_stack_forward.12} parent=0
    _
  %s8 = ssub.s32 1, %s6
  %s9 = scalar_select 0, %s8, %s6
  $region1: #{t5_stack_forward.12} parent=0
    #allocation4 [shape = 'u8[8192]{0}', space=vmem, size = 0x2000, scoped, tag = 'input window, operand 0, single buffered']
    #allocation5 [shape = 's32[1]{0}', space=sflag, size = 0x4, scoped, tag = 'scoped memory for t5_stack_forward.12']
    #allocation6 [shape = 's32[1]{0}', space=sflag, size = 0x4, scoped, tag = 'scoped memory for t5_stack_forward.12']
    #allocation7 [shape = 'u8[512]{0}', space=vmem, size = 0x400, scoped, tag = 'input window, operand 1, single buffered']
    #allocation8 [shape = 's32[1]{0}', space=sflag, size = 0x4, scoped, tag = 'scoped memory for t5_stack_forward.12']
    #allocation9 [shape = 'u8[8192]{0}', space=vmem, size = 0x2000, scoped, tag = 'input window, operand 2, single buffered']
    #allocation10 [shape = 'u8[8192]{0}', space=vmem, size = 0x2000, scoped, tag = 'input window, operand 3, single buffered']
    #allocation11 [shape = 's32[1]{0}', space=sflag, size = 0x4, scoped, tag = 'scoped memory for t5_stack_forward.12']
    #allocation12 [shape = 'u8[16384]{0}', space=vmem, size = 0x4000, scoped, tag = 'input window, operand 4, single buffered']
    #allocation13 [shape = 'u8[8192]{0}', space=vmem, size = 0x2000, scoped, tag = 'output window, operand 0, single buffered']
    %10 = vsyncpa [#allocation5], 0
    %11 = vsyncpa [#allocation8], 0
    %12 = vsyncpa [#allocation11], 0
    %13 = vsyncpa [#allocation6], 0
    // Predicated region
    $region2: #{t5_stack_forward.12} parent=1 // pred_check
      _
    $region3: #{t5_stack_forward.12} parent=1 // pred_check_branch
      %15 = sbr.rel (0) target = $region5
    $region4: #{t5_stack_forward.12} parent=1 // pred_region
      %s17 = ssub.s32 256, 256
      %18 = vsyncadd [#allocation5], %s17
      %s19 = sshll.u32 [#allocation4], 4
      %s20 = int_to_ptr.vmem [resolvable:$true] %s19
      %25 = dma.hbm_to_vmem [thread:$0]  %s0, 256, %s20, [#allocation5], 128, 128, 8
    $region5: #{t5_stack_forward.12} parent=1 // pred_fallthru
      _
    // Predicated region
    $region6: #{t5_stack_forward.12} parent=1 // pred_check
      _
    $region7: #{t5_stack_forward.12} parent=1 // pred_check_branch
      %27 = sbr.rel (0) target = $region9
    $region8: #{t5_stack_forward.12} parent=1 // pred_region
      %s29 = ssub.s32 16, 16
      %30 = vsyncadd [#allocation8], %s29
      %s32 = sshll.u32 [#allocation7], 4
      %s33 = int_to_ptr.vmem [resolvable:$true] %s32
      %35 = dma.hbm_to_vmem [thread:$0]  %s1, 16, %s33, [#allocation8]
    $region9: #{t5_stack_forward.12} parent=1 // pred_fallthru
      _
    // Predicated region
    $region10: #{t5_stack_forward.12} parent=1 // pred_check
      _
    $region11: #{t5_stack_forward.12} parent=1 // pred_check_branch
      %37 = sbr.rel (0) target = $region13
    $region12: #{t5_stack_forward.12} parent=1 // pred_region
      %s39 = ssub.s32 256, 256
      %40 = vsyncadd [#allocation8], %s39
      %s41 = sshll.u32 [#allocation9], 4
      %s42 = int_to_ptr.vmem [resolvable:$true] %s41
      %47 = dma.hbm_to_vmem [thread:$0]  %s2, 256, %s42, [#allocation8], 64, 64, 4
    $region13: #{t5_stack_forward.12} parent=1 // pred_fallthru
      _
    // Predicated region
    $region14: #{t5_stack_forward.12} parent=1 // pred_check
      _
    $region15: #{t5_stack_forward.12} parent=1 // pred_check_branch
      %49 = sbr.rel (0) target = $region17
    $region16: #{t5_stack_forward.12} parent=1 // pred_region
      %s51 = ssub.s32 256, 256
      %52 = vsyncadd [#allocation11], %s51
      %s53 = sshll.u32 [#allocation10], 4
      %s54 = int_to_ptr.vmem [resolvable:$true] %s53
      %59 = dma.hbm_to_vmem [thread:$0]  %s3, 256, %s54, [#allocation11], 64, 64, 4
    $region17: #{t5_stack_forward.12} parent=1 // pred_fallthru
      _
    // Predicated region
    $region18: #{t5_stack_forward.12} parent=1 // pred_check
      _
    $region19: #{t5_stack_forward.12} parent=1 // pred_check_branch
      %61 = sbr.rel (0) target = $region21
    $region20: #{t5_stack_forward.12} parent=1 // pred_region
      %s63 = ssub.s32 512, 512
      %64 = vsyncadd [#allocation11], %s63
      %s65 = sshll.u32 [#allocation12], 4
      %s66 = int_to_ptr.vmem [resolvable:$true] %s65
      %71 = dma.hbm_to_vmem [thread:$0]  %s4, 512, %s66, [#allocation11], 64, 64, 4
    $region21: #{t5_stack_forward.12} parent=1 // pred_fallthru
      _
    // Predicated region
    $region22: #{t5_stack_forward.12} parent=1 // pred_check
      _
    $region23: #{t5_stack_forward.12} parent=1 // pred_check_branch
      %73 = sbr.rel (0) target = $region25
    $region24: #{t5_stack_forward.12} parent=1 // pred_region
      %74 = dma.done [#allocation5], 256
    $region25: #{t5_stack_forward.12} parent=1 // pred_fallthru
      _
    // Predicated region
    $region26: #{t5_stack_forward.12} parent=1 // pred_check
      _
    $region27: #{t5_stack_forward.12} parent=1 // pred_check_branch
      %76 = sbr.rel (0) target = $region29
    $region28: #{t5_stack_forward.12} parent=1 // pred_region
      %77 = dma.done [#allocation8], 16
    $region29: #{t5_stack_forward.12} parent=1 // pred_fallthru
      _
    // Predicated region
    $region30: #{t5_stack_forward.12} parent=1 // pred_check
      _
    $region31: #{t5_stack_forward.12} parent=1 // pred_check_branch
      %79 = sbr.rel (0) target = $region33
    $region32: #{t5_stack_forward.12} parent=1 // pred_region
      %80 = dma.done [#allocation8], 256
    $region33: #{t5_stack_forward.12} parent=1 // pred_fallthru
      _
    // Predicated region
    $region34: #{t5_stack_forward.12} parent=1 // pred_check
      _
    $region35: #{t5_stack_forward.12} parent=1 // pred_check_branch
      %82 = sbr.rel (0) target = $region37
    $region36: #{t5_stack_forward.12} parent=1 // pred_region
      %83 = dma.done [#allocation11], 256
    $region37: #{t5_stack_forward.12} parent=1 // pred_fallthru
      _
    // Predicated region
    $region38: #{t5_stack_forward.12} parent=1 // pred_check
      _
    $region39: #{t5_stack_forward.12} parent=1 // pred_check_branch
      %85 = sbr.rel (0) target = $region41
    $region40: #{t5_stack_forward.12} parent=1 // pred_region
      %86 = dma.done [#allocation11], 512
    $region41: #{t5_stack_forward.12} parent=1 // pred_fallthru
      _
    %p88 = scmp.eq.s32.totalorder 0, 0
    // Predicated region
    $region42: #{t5_stack_forward.12} parent=1 // pred_check
      %p89 = pneg %p88
    $region43: #{t5_stack_forward.12} parent=1 // pred_check_branch
      %91 = sbr.rel (%p89) target = $region45
    $region44: #{t5_stack_forward.12} parent=1 // pred_region
      %vm92 = vcmask 261120
      %93 = vst.msk [vmem:[#allocation2] sm:$0xff] %vm92, 0.0
      %94 = vst.msk [vmem:[#allocation2 + $0x8] sm:$0xff] %vm92, 0.0
      %v95 = vld [vmem:[#allocation4] sm:$0xff]
      %v96 = vld [vmem:[#allocation4 + $0x8] sm:$0xff]
      %v97 = vmul.f32 %v95, %v95
      %v98 = vmul.f32 %v96, %v96
      %v99 = vsel %vm92, %v97, 0.0
      %100 = vadd.xlane.f32.xlu0 %v99
      %v101 = vpop.xlane.xlu0 %100
      %v102 = vsel %vm92, %v98, 0.0
      %103 = vadd.xlane.f32.xlu0 %v102
      %v104 = vpop.xlane.xlu0 %103
      %v105 = vrcp.pop 32.0
      %v106 = vmul.f32 %v101, %v105
      %v107 = vmul.f32 %v104, %v105
      %v108 = vadd.f32 %v106, 1e-06
      %v109 = vadd.f32 %v107, 1e-06
      %v110 = vrsqrt.pop %v108
      %v111 = vrsqrt.pop %v109
      %v112 = vmul.f32 %v95, %v110
      %v113 = vmul.f32 %v96, %v111
      %v114 = vld [vmem:[#allocation7] sm:$0x1]
      %v116 = vlaneseq
      %v117 = vshrl.u32 %v116, 7
      %v118 = vsub.s32 0, %v117
      %v119 = vrot.slane %v114, %v118
      %v121 = vmul.f32 %v112, %v119
      %v122 = vmul.f32 %v113, %v119
      %v123 = vpack.c.bf16 %v122, %v121
      %124 = vst.msk [vmem:[#allocation3] sm:$0xff] %vm92, %v123
    $region45: #{t5_stack_forward.12} parent=1 // pred_fallthru
      _
    %v125 = vld [vmem:[#allocation3] sm:$0xff]
    %v126 = vld [vmem:[#allocation9] sm:$0xf]
    %v127 = vld [vmem:[#allocation9 + $0x4] sm:$0xf]
    %v128 = vld [vmem:[#allocation9 + $0x8] sm:$0xf]
    %v129 = vld [vmem:[#allocation9 + $0xc] sm:$0xf]
    %v134 = vunpack.c.l.b16 %v126
    %v135 = vunpack.c.l.b16 %v127
    %v136 = vunpack.c.l.b16 %v128
    %v137 = vunpack.c.l.b16 %v129
    %v138 = vpack.c.b16 %v135, %v134
    %v139 = vpack.c.b16 %v137, %v136
    %vm142 = vcmask 261120
    %v144 = vsel %vm142, %v125, 0
    %146 = vmatprep.subr.bf16.mxu0 0
    %147 = vmatpush1.bf16.msra.mxu0 %v138
    %148 = vmatprep.subr.bf16.mxu0 0
    %149 = vmatpush1.bf16.msra.mxu0 %v139
    %150 = vmatprep.subr.bf16.mxu0 0
    %151 = vmatpush1.bf16.msra.mxu0 0
    %152 = vmatprep.subr.bf16.mxu0 0
    %153 = vmatpush1.bf16.msra.mxu0 0
    %154 = vmatprep.subr.bf16.mxu0 0
    %155 = vmatpush1.bf16.msra.mxu0 0
    %156 = vmatprep.subr.bf16.mxu0 0
    %157 = vmatpush1.bf16.msra.mxu0 0
    %158 = vmatprep.subr.bf16.mxu0 0
    %159 = vmatpush1.bf16.msra.mxu0 0
    %160 = vmatprep.subr.bf16.mxu0 0
    %161 = vmatpush1.bf16.msra.mxu0 0
    %162 = vmatprep.subr.bf16.mxu0 0
    %163 = vmatpush1.bf16.msra.mxu0 0
    %164 = vmatprep.subr.bf16.mxu0 0
    %165 = vmatpush1.bf16.msra.mxu0 0
    %166 = vmatprep.subr.bf16.mxu0 0
    %167 = vmatpush1.bf16.msra.mxu0 0
    %168 = vmatprep.subr.bf16.mxu0 0
    %169 = vmatpush1.bf16.msra.mxu0 0
    %170 = vmatprep.subr.bf16.mxu0 0
    %171 = vmatpush1.bf16.msra.mxu0 0
    %172 = vmatprep.subr.bf16.mxu0 0
    %173 = vmatpush1.bf16.msra.mxu0 0
    %174 = vmatprep.subr.bf16.mxu0 0
    %175 = vmatpush1.bf16.msra.mxu0 0
    %176 = vmatprep.subr.bf16.mxu0 0
    %177 = vmatpush1.bf16.msra.mxu0 0
    %178 = vmatprep.mubr.bf16.mxu0 0
    %179 = vmatmul.mubr.bf16.gmra.mrb[0].mxu0 %v144
    %v180 = vpop.f32.mrb[0].mxu0
    %v181 = vadd.f32 0.0, %v180
    %v182 = vpop.f32.mrb[0].mxu0
    %v183 = vpop.f32.mrb[0].mxu0
    %v184 = vadd.f32 0.0, %v183
    %v185 = vpop.f32.mrb[0].mxu0
    %186 = vdwg.mxu0
    %v187 = vld [vmem:[#allocation10] sm:$0xf]
    %v188 = vld [vmem:[#allocation10 + $0x4] sm:$0xf]
    %v189 = vld [vmem:[#allocation10 + $0x8] sm:$0xf]
    %v190 = vld [vmem:[#allocation10 + $0xc] sm:$0xf]
    %v195 = vunpack.c.l.b16 %v187
    %v196 = vunpack.c.l.b16 %v188
    %v197 = vunpack.c.l.b16 %v189
    %v198 = vunpack.c.l.b16 %v190
    %v199 = vpack.c.b16 %v196, %v195
    %v200 = vpack.c.b16 %v198, %v197
    %203 = vmatprep.subr.bf16.mxu0 0
    %204 = vmatpush1.bf16.msra.mxu0 %v199
    %205 = vmatprep.subr.bf16.mxu0 0
    %206 = vmatpush1.bf16.msra.mxu0 %v200
    %207 = vmatprep.subr.bf16.mxu0 0
    %208 = vmatpush1.bf16.msra.mxu0 0
    %209 = vmatprep.subr.bf16.mxu0 0
    %210 = vmatpush1.bf16.msra.mxu0 0
    %211 = vmatprep.subr.bf16.mxu0 0
    %212 = vmatpush1.bf16.msra.mxu0 0
    %213 = vmatprep.subr.bf16.mxu0 0
    %214 = vmatpush1.bf16.msra.mxu0 0
    %215 = vmatprep.subr.bf16.mxu0 0
    %216 = vmatpush1.bf16.msra.mxu0 0
    %217 = vmatprep.subr.bf16.mxu0 0
    %218 = vmatpush1.bf16.msra.mxu0 0
    %219 = vmatprep.subr.bf16.mxu0 0
    %220 = vmatpush1.bf16.msra.mxu0 0
    %221 = vmatprep.subr.bf16.mxu0 0
    %222 = vmatpush1.bf16.msra.mxu0 0
    %223 = vmatprep.subr.bf16.mxu0 0
    %224 = vmatpush1.bf16.msra.mxu0 0
    %225 = vmatprep.subr.bf16.mxu0 0
    %226 = vmatpush1.bf16.msra.mxu0 0
    %227 = vmatprep.subr.bf16.mxu0 0
    %228 = vmatpush1.bf16.msra.mxu0 0
    %229 = vmatprep.subr.bf16.mxu0 0
    %230 = vmatpush1.bf16.msra.mxu0 0
    %231 = vmatprep.subr.bf16.mxu0 0
    %232 = vmatpush1.bf16.msra.mxu0 0
    %233 = vmatprep.subr.bf16.mxu0 0
    %234 = vmatpush1.bf16.msra.mxu0 0
    %235 = vmatprep.mubr.bf16.mxu0 0
    %236 = vmatmul.mubr.bf16.gmra.mrb[0].mxu0 %v144
    %v237 = vpop.f32.mrb[0].mxu0
    %v238 = vadd.f32 0.0, %v237
    %v239 = vpop.f32.mrb[0].mxu0
    %v240 = vpop.f32.mrb[0].mxu0
    %v241 = vadd.f32 0.0, %v240
    %v242 = vpop.f32.mrb[0].mxu0
    %243 = vdwg.mxu0
    %v244 = vmul.f32 %v181, 0.5
    %v245 = vmul.f32 %v184, 0.5
    %v246 = vmul.f32 %v181, 0.044715
    %v247 = vmul.f32 %v184, 0.044715
    %v248 = vmul.f32 %v246, %v181
    %v249 = vmul.f32 %v247, %v184
    %v250 = vmul.f32 %v248, %v181
    %v251 = vmul.f32 %v249, %v184
    %v252 = vadd.f32 %v181, %v250
    %v253 = vadd.f32 %v184, %v251
    %v254 = vmul.f32 %v252, 0.7978846
    %v255 = vmul.f32 %v253, 0.7978846
    %v256 = vtanh.pop %v254
    %v257 = vtanh.pop %v255
    %v258 = vadd.f32 %v256, 1.0
    %v259 = vadd.f32 %v257, 1.0
    %v260 = vmul.f32 %v244, %v258
    %v261 = vmul.f32 %v245, %v259
    %v262 = vmul.f32 %v260, %v238
    %v263 = vmul.f32 %v261, %v241
    %v264 = vpack.c.bf16 %v263, %v262
    %v265 = vld [vmem:[#allocation2] sm:$0xff]
    %v266 = vld [vmem:[#allocation2 + $0x8] sm:$0xff]
    %v267 = vld [vmem:[#allocation12] sm:$0xf]
    %v268 = vld [vmem:[#allocation12 + $0x4] sm:$0xf]
    %v269 = vld [vmem:[#allocation12 + $0x8] sm:$0xf]
    %v270 = vld [vmem:[#allocation12 + $0xc] sm:$0xf]
    %v271 = vld [vmem:[#allocation12 + $0x10] sm:$0xf]
    %v272 = vld [vmem:[#allocation12 + $0x14] sm:$0xf]
    %v273 = vld [vmem:[#allocation12 + $0x18] sm:$0xf]
    %v274 = vld [vmem:[#allocation12 + $0x1c] sm:$0xf]
    %v283 = vunpack.c.l.b16 %v267
    %v284 = vunpack.c.l.b16 %v268
    %v285 = vunpack.c.l.b16 %v269
    %v286 = vunpack.c.l.b16 %v270
    %v287 = vunpack.c.l.b16 %v271
    %v288 = vunpack.c.l.b16 %v272
    %v289 = vunpack.c.l.b16 %v273
    %v290 = vunpack.c.l.b16 %v274
    %v291 = vpack.c.b16 %v284, %v283
    %v292 = vpack.c.b16 %v286, %v285
    %v293 = vpack.c.b16 %v288, %v287
    %v294 = vpack.c.b16 %v290, %v289
    %vm299 = vcmask 523264
    %v301 = vsel %vm299, %v264, 0
    %303 = vmatprep.subr.bf16.mxu0 0
    %304 = vmatpush1.bf16.msra.mxu0 %v291
    %305 = vmatprep.subr.bf16.mxu0 0
    %306 = vmatpush1.bf16.msra.mxu0 %v292
    %307 = vmatprep.subr.bf16.mxu0 0
    %308 = vmatpush1.bf16.msra.mxu0 %v293
    %309 = vmatprep.subr.bf16.mxu0 0
    %310 = vmatpush1.bf16.msra.mxu0 %v294
    %311 = vmatprep.subr.bf16.mxu0 0
    %312 = vmatpush1.bf16.msra.mxu0 0
    %313 = vmatprep.subr.bf16.mxu0 0
    %314 = vmatpush1.bf16.msra.mxu0 0
    %315 = vmatprep.subr.bf16.mxu0 0
    %316 = vmatpush1.bf16.msra.mxu0 0
    %317 = vmatprep.subr.bf16.mxu0 0
    %318 = vmatpush1.bf16.msra.mxu0 0
    %319 = vmatprep.subr.bf16.mxu0 0
    %320 = vmatpush1.bf16.msra.mxu0 0
    %321 = vmatprep.subr.bf16.mxu0 0
    %322 = vmatpush1.bf16.msra.mxu0 0
    %323 = vmatprep.subr.bf16.mxu0 0
    %324 = vmatpush1.bf16.msra.mxu0 0
    %325 = vmatprep.subr.bf16.mxu0 0
    %326 = vmatpush1.bf16.msra.mxu0 0
    %327 = vmatprep.subr.bf16.mxu0 0
    %328 = vmatpush1.bf16.msra.mxu0 0
    %329 = vmatprep.subr.bf16.mxu0 0
    %330 = vmatpush1.bf16.msra.mxu0 0
    %331 = vmatprep.subr.bf16.mxu0 0
    %332 = vmatpush1.bf16.msra.mxu0 0
    %333 = vmatprep.subr.bf16.mxu0 0
    %334 = vmatpush1.bf16.msra.mxu0 0
    %335 = vmatprep.mubr.bf16.mxu0 0
    %336 = vmatmul.mubr.bf16.gmra.mrb[0].mxu0 %v301
    %v337 = vpop.f32.mrb[0].mxu0
    %v338 = vadd.f32 0.0, %v337
    %v339 = vpop.f32.mrb[0].mxu0
    %v340 = vpop.f32.mrb[0].mxu0
    %v341 = vadd.f32 0.0, %v340
    %v342 = vpop.f32.mrb[0].mxu0
    %343 = vdwg.mxu0
    %v344 = vadd.f32 %v265, %v338
    %v345 = vadd.f32 %v266, %v341
    %346 = vst.msk [vmem:[#allocation2] sm:$0xff] %vm142, %v344
    %347 = vst.msk [vmem:[#allocation2 + $0x8] sm:$0xff] %vm142, %v345
    // Predicated region
    $region46: #{t5_stack_forward.12} parent=1 // pred_check
      %p348 = pneg %p88
    $region47: #{t5_stack_forward.12} parent=1 // pred_check_branch
      %350 = sbr.rel (%p348) target = $region49
    $region48: #{t5_stack_forward.12} parent=1 // pred_region
      %v351 = vld [vmem:[#allocation2] sm:$0xff]
      %v352 = vld [vmem:[#allocation2 + $0x8] sm:$0xff]
      %v353 = vld [vmem:[#allocation4] sm:$0xff]
      %v354 = vld [vmem:[#allocation4 + $0x8] sm:$0xff]
      %v355 = vadd.f32 %v351, %v353
      %v356 = vadd.f32 %v352, %v354
      %357 = vst.msk [vmem:[#allocation13] sm:$0xff] %vm142, %v355
      %358 = vst.msk [vmem:[#allocation13 + $0x8] sm:$0xff] %vm142, %v356
    $region49: #{t5_stack_forward.12} parent=1 // pred_fallthru
      _
    // Predicated region
    $region50: #{t5_stack_forward.12} parent=1 // pred_check
      _
    $region51: #{t5_stack_forward.12} parent=1 // pred_check_branch
      %360 = sbr.rel (0) target = $region53
    $region52: #{t5_stack_forward.12} parent=1 // pred_region
      %s362 = ssub.s32 256, 256
      %363 = vsyncadd [#allocation6], %s362
      %s364 = sshll.u32 [#allocation13], 4
      %s365 = int_to_ptr.vmem [resolvable:$true] %s364
      %370 = dma.vmem_to_hbm [thread:$0]  %s365, 256, %s5, [#allocation6], 128, 128, 8
    $region53: #{t5_stack_forward.12} parent=1 // pred_fallthru
      _
    // Predicated region
    $region54: #{t5_stack_forward.12} parent=1 // pred_check
      _
    $region55: #{t5_stack_forward.12} parent=1 // pred_check_branch
      %372 = sbr.rel (0) target = $region57
    $region56: #{t5_stack_forward.12} parent=1 // pred_region
      %373 = dma.done [#allocation6], 256
    $region57: #{t5_stack_forward.12} parent=1 // pred_fallthru
      _
    %374 = vsyncpa [#allocation5], 1
    %375 = vsyncpa [#allocation8], 1
    %376 = vsyncpa [#allocation11], 1
    %377 = vsyncpa [#allocation6], 1

// kernel: t5_stack_forward.17
$region0: #{t5_stack_forward.17}
  #allocation0 [shape = 'u32[]', space=smem, size = 0x4, offset = 0x4, fixed_abs, tag = 'smem constant byte address 0x4 - core index']
  #allocation1 [shape = 'u32[144,128]{1,0:T(1,128)}', space=vmem, size = 0x12000, scoped, tag = 'internal scratch']
  %s0 = inlined_call_operand.hbm [shape: f32[16,32], index: 0, kind: input, shape index: {}]
  %s1 = inlined_call_operand.hbm [shape: f32[1,32], index: 1, kind: input, shape index: {}]
  %s2 = inlined_call_operand.hbm [shape: f32[16,32], index: 2, kind: output, shape index: {}]
  %s3 = sld [smem:[#allocation0]]
  $region26: #{t5_stack_forward.17} parent=0
    _
  %s5 = ssub.s32 1, %s3
  %s6 = scalar_select 0, %s5, %s3
  $region1: #{t5_stack_forward.17} parent=0
    #allocation2 [shape = 'u8[8192]{0}', space=vmem, size = 0x2000, scoped, tag = 'input window, operand 0, single buffered']
    #allocation3 [shape = 's32[1]{0}', space=sflag, size = 0x4, scoped, tag = 'scoped memory for t5_stack_forward.17']
    #allocation4 [shape = 's32[1]{0}', space=sflag, size = 0x4, scoped, tag = 'scoped memory for t5_stack_forward.17']
    #allocation5 [shape = 'u8[512]{0}', space=vmem, size = 0x400, scoped, tag = 'input window, operand 1, single buffered']
    #allocation6 [shape = 's32[1]{0}', space=sflag, size = 0x4, scoped, tag = 'scoped memory for t5_stack_forward.17']
    #allocation7 [shape = 'u8[8192]{0}', space=vmem, size = 0x2000, scoped, tag = 'output window, operand 0, single buffered']
    %7 = vsyncpa [#allocation3], 0
    %8 = vsyncpa [#allocation6], 0
    %9 = vsyncpa [#allocation4], 0
    // Predicated region
    $region2: #{t5_stack_forward.17} parent=1 // pred_check
      _
    $region3: #{t5_stack_forward.17} parent=1 // pred_check_branch
      %11 = sbr.rel (0) target = $region5
    $region4: #{t5_stack_forward.17} parent=1 // pred_region
      %s13 = ssub.s32 256, 256
      %14 = vsyncadd [#allocation3], %s13
      %s15 = sshll.u32 [#allocation2], 4
      %s16 = int_to_ptr.vmem [resolvable:$true] %s15
      %21 = dma.hbm_to_vmem [thread:$0]  %s0, 256, %s16, [#allocation3], 128, 128, 8
    $region5: #{t5_stack_forward.17} parent=1 // pred_fallthru
      _
    // Predicated region
    $region6: #{t5_stack_forward.17} parent=1 // pred_check
      _
    $region7: #{t5_stack_forward.17} parent=1 // pred_check_branch
      %23 = sbr.rel (0) target = $region9
    $region8: #{t5_stack_forward.17} parent=1 // pred_region
      %s25 = ssub.s32 16, 16
      %26 = vsyncadd [#allocation6], %s25
      %s28 = sshll.u32 [#allocation5], 4
      %s29 = int_to_ptr.vmem [resolvable:$true] %s28
      %31 = dma.hbm_to_vmem [thread:$0]  %s1, 16, %s29, [#allocation6]
    $region9: #{t5_stack_forward.17} parent=1 // pred_fallthru
      _
    // Predicated region
    $region10: #{t5_stack_forward.17} parent=1 // pred_check
      _
    $region11: #{t5_stack_forward.17} parent=1 // pred_check_branch
      %33 = sbr.rel (0) target = $region13
    $region12: #{t5_stack_forward.17} parent=1 // pred_region
      %34 = dma.done [#allocation3], 256
    $region13: #{t5_stack_forward.17} parent=1 // pred_fallthru
      _
    // Predicated region
    $region14: #{t5_stack_forward.17} parent=1 // pred_check
      _
    $region15: #{t5_stack_forward.17} parent=1 // pred_check_branch
      %36 = sbr.rel (0) target = $region17
    $region16: #{t5_stack_forward.17} parent=1 // pred_region
      %37 = dma.done [#allocation6], 16
    $region17: #{t5_stack_forward.17} parent=1 // pred_fallthru
      _
    %v38 = vld [vmem:[#allocation2] sm:$0xff]
    %v39 = vld [vmem:[#allocation2 + $0x8] sm:$0xff]
    %v40 = vmul.f32 %v38, %v38
    %v41 = vmul.f32 %v39, %v39
    %vm42 = vcmask 261120
    %v43 = vsel %vm42, %v40, 0.0
    %44 = vadd.xlane.f32.xlu0 %v43
    %v45 = vpop.xlane.xlu0 %44
    %v46 = vsel %vm42, %v41, 0.0
    %47 = vadd.xlane.f32.xlu0 %v46
    %v48 = vpop.xlane.xlu0 %47
    %v49 = vrcp.pop 32.0
    %v50 = vmul.f32 %v45, %v49
    %v51 = vmul.f32 %v48, %v49
    %v52 = vadd.f32 %v50, 1e-06
    %v53 = vadd.f32 %v51, 1e-06
    %v54 = vrsqrt.pop %v52
    %v55 = vrsqrt.pop %v53
    %v56 = vmul.f32 %v38, %v54
    %v57 = vmul.f32 %v39, %v55
    %v58 = vld [vmem:[#allocation5] sm:$0x1]
    %v60 = vlaneseq
    %v61 = vshrl.u32 %v60, 7
    %v62 = vsub.s32 0, %v61
    %v63 = vrot.slane %v58, %v62
    %v65 = vmul.f32 %v56, %v63
    %v66 = vmul.f32 %v57, %v63
    %67 = vst.msk [vmem:[#allocation7] sm:$0xff] %vm42, %v65
    %68 = vst.msk [vmem:[#allocation7 + $0x8] sm:$0xff] %vm42, %v66
    // Predicated region
    $region18: #{t5_stack_forward.17} parent=1 // pred_check
      _
    $region19: #{t5_stack_forward.17} parent=1 // pred_check_branch
      %70 = sbr.rel (0) target = $region21
    $region20: #{t5_stack_forward.17} parent=1 // pred_region
      %s72 = ssub.s32 256, 256
      %73 = vsyncadd [#allocation4], %s72
      %s74 = sshll.u32 [#allocation7], 4
      %s75 = int_to_ptr.vmem [resolvable:$true] %s74
      %80 = dma.vmem_to_hbm [thread:$0]  %s75, 256, %s2, [#allocation4], 128, 128, 8
    $region21: #{t5_stack_forward.17} parent=1 // pred_fallthru
      _
    // Predicated region
    $region22: #{t5_stack_forward.17} parent=1 // pred_check
      _
    $region23: #{t5_stack_forward.17} parent=1 // pred_check_branch
      %82 = sbr.rel (0) target = $region25
    $region24: #{t5_stack_forward.17} parent=1 // pred_region
      %83 = dma.done [#allocation4], 256
    $region25: #{t5_stack_forward.17} parent=1 // pred_fallthru
      _
    %84 = vsyncpa [#allocation3], 1
    %85 = vsyncpa [#allocation6], 1
    %86 = vsyncpa [#allocation4], 1

</llo_original>
